<compile_context>
chip_gen: v7x
topology: tpu7x:2x2x1
jax: 0.10.0
libtpu: 0.0.40
codegen_flags: <defaults>
</compile_context>

<pallas_src>
import jax
import jax.numpy as jnp
from jax.experimental import pallas as pl
from jax.experimental.pallas import tpu as pltpu


def _round_up(n, m):
    return ((n + m - 1) // m) * m


def _leaky_relu(x, slope=0.2):
    return jnp.where(x > 0, x, slope * x)


def generator_kernel(x_ref,
                     w1_ref, b1_ref,
                     w2_ref, b2_ref,
                     w3_ref, b3_ref,
                     w4_ref, b4_ref,
                     o_ref):
    def dense(h_bf16, w_ref, b_ref):
        # bf16 operands on the MXU, f32 accumulation, f32 bias add on the VPU.
        return jnp.dot(h_bf16, w_ref[...],
                       preferred_element_type=jnp.float32) + b_ref[...]

    # Inter-layer activations kept bf16 (halves activation store/load width);
    # all accumulation and the nonlinearity epilogues run in f32.
    h = _leaky_relu(dense(x_ref[...], w1_ref, b1_ref)).astype(jnp.bfloat16)
    h = _leaky_relu(dense(h, w2_ref, b2_ref)).astype(jnp.bfloat16)
    h = _leaky_relu(dense(h, w3_ref, b3_ref)).astype(jnp.bfloat16)
    o_ref[...] = jnp.tanh(dense(h, w4_ref, b4_ref)).astype(o_ref.dtype)


def prepare_params(params):
    """One-time weight prep, hoisted out of the forward path.

    params: [(w, b)] * 4 with w:(in, out) f32, b:(1, out) f32 (PyTorch layout
    transposed).  Returns (ws_bf16, bs_f32) with w1 zero-padded along K so the
    first matmul's contraction dim is lane-aligned (100 -> 128).
    """
    (w1, b1), (w2, b2), (w3, b3), (w4, b4) = params
    d_in = w1.shape[0]
    d_in_p = _round_up(d_in, 128)
    w1_p = jnp.zeros((d_in_p, w1.shape[1]), w1.dtype).at[:d_in, :].set(w1)
    ws = tuple(w.astype(jnp.bfloat16) for w in (w1_p, w2, w3, w4))
    bs = tuple(b.astype(jnp.float32).reshape(1, -1) for b in (b1, b2, b3, b4))
    return ws, bs


def generator_forward(x, prepared, *, batch_tile=None):
    """x: (B, 100) float; prepared = prepare_params(params)."""
    ws, bs = prepared
    B, d_in = x.shape
    d_in_p = ws[0].shape[0]          # 128 (lane-aligned K of layer 1)
    d_out = ws[3].shape[1]           # g_output_dim (e.g. 784)

    # Batch tiling: >= 2 grid steps whenever the batch allows it (v7x megacore
    # sharding via "parallel"); tile capped at 256 rows (fills the 256-wide MXU
    # on v6e/v7x and stays well inside v7x's 64 MiB VMEM).
    if batch_tile is None:
        if B >= 16:
            batch_tile = min(256, _round_up(pl.cdiv(B, 2), 8))
        else:
            batch_tile = _round_up(max(B, 1), 8)
    B_pad = _round_up(B, batch_tile)

    # Single cheap wrapper op: pad (B,100) -> (B_pad,128) AND cast to bf16.
    x_p = jnp.zeros((B_pad, d_in_p), jnp.bfloat16).at[:B, :d_in].set(
        x.astype(jnp.bfloat16))

    # VMEM budget from the actual shapes: double-buffered weight/bias/IO tiles
    # + f32/bf16 activation temporaries + headroom; capped at 32 MiB so it is
    # safe on every generation (v7x: 64 MiB physical shared across 2 TCs).
    w_bytes = sum(int(w.size) * w.dtype.itemsize for w in ws)
    b_bytes = sum(int(b.size) * b.dtype.itemsize for b in bs)
    io_bytes = batch_tile * (d_in_p * 2 + d_out * 4)
    act_bytes = batch_tile * sum(int(w.shape[1]) for w in ws) * 6
    vmem_limit = int(min(2 * (w_bytes + b_bytes + io_bytes) + act_bytes
                         + (12 << 20), 32 << 20))

    grid = (B_pad // batch_tile,)

    in_specs = [pl.BlockSpec((batch_tile, d_in_p), lambda i: (i, 0))]
    for w, b in zip(ws, bs):
        # Constant weight/bias blocks: same block index every step, so the
        # pipeliner skips re-DMA automatically.
        in_specs.append(pl.BlockSpec(w.shape, lambda i: (0, 0)))
        in_specs.append(pl.BlockSpec(b.shape, lambda i: (0, 0)))

    out = pl.pallas_call(
        generator_kernel,
        out_shape=jax.ShapeDtypeStruct((B_pad, d_out), jnp.float32),
        grid_spec=pltpu.PrefetchScalarGridSpec(
            num_scalar_prefetch=0,
            grid=grid,
            in_specs=in_specs,
            # d_out (784) equals the FULL last dim of the output array, so a
            # non-multiple-of-128 block is legal; only the tail vreg takes a
            # masked vst -- far cheaper than a wrapper-side column slice.
            out_specs=pl.BlockSpec((batch_tile, d_out), lambda i: (i, 0)),
        ),
        compiler_params=pltpu.CompilerParams(
            dimension_semantics=("parallel",),
            vmem_limit_bytes=vmem_limit,
        ),
    )(x_p, ws[0], bs[0], ws[1], bs[1], ws[2], bs[2], ws[3], bs[3])

    return out if B_pad == B else out[:B]


def init_params(key, g_output_dim):
    # PyTorch-style uniform(-1/sqrt(fan_in), 1/sqrt(fan_in)) init, f32 master.
    dims = [(100, 256), (256, 512), (512, 1024), (1024, g_output_dim)]
    params = []
    for fan_in, fan_out in dims:
        key, kw, kb = jax.random.split(key, 3)
        bound = 1.0 / jnp.sqrt(fan_in)
        w = jax.random.uniform(kw, (fan_in, fan_out), jnp.float32, -bound, bound)
        b = jax.random.uniform(kb, (1, fan_out), jnp.float32, -bound, bound)
        params.append((w, b))
    return params


def generator_reference(x, params, *, emulate_bf16=True):
    # Pure-JAX reference of the PyTorch forward.  emulate_bf16=True mirrors the
    # kernel's numerics (bf16 MXU operands / bf16 inter-layer activations with
    # f32 accumulation) exactly.
    def dense(h, w, b):
        if emulate_bf16:
            h = h.astype(jnp.bfloat16)
            w = w.astype(jnp.bfloat16)
        return jnp.dot(h, w, preferred_element_type=jnp.float32) + b.reshape(1, -1)

    (w1, b1), (w2, b2), (w3, b3), (w4, b4) = params
    h = jax.nn.leaky_relu(dense(x, w1, b1), 0.2)
    h = jax.nn.leaky_relu(dense(h, w2, b2), 0.2)
    h = jax.nn.leaky_relu(dense(h, w3, b3), 0.2)
    return jnp.tanh(dense(h, w4, b4))


if __name__ == "__main__":
    key = jax.random.PRNGKey(0)
    g_output_dim = 784          # 28*28 image generator (not a multiple of 128)

    k_params, k_x1, k_x2 = jax.random.split(key, 3)
    params = init_params(k_params, g_output_dim)
    prepared = prepare_params(params)   # one-time pad + bf16 cast

    # Case 1: B=32 -> two 16-row grid steps (>= 2 steps for v7x megacore).
    x1 = jax.random.normal(k_x1, (32, 100), jnp.float32)
    out1 = jax.block_until_ready(generator_forward(x1, prepared))
    assert out1.shape == (32, g_output_dim)
    ref_bf16 = generator_reference(x1, params, emulate_bf16=True)
    ref_f32 = generator_reference(x1, params, emulate_bf16=False)
    assert jnp.allclose(out1, ref_bf16, atol=5e-3, rtol=5e-3), \
        "mismatch vs bf16-emulated reference"
    assert jnp.allclose(out1, ref_f32, atol=6e-2, rtol=6e-2), \
        "mismatch vs f32 reference"
    assert bool(jnp.all(jnp.abs(out1) <= 1.0))

    # Case 2: tiny non-multiple-of-8 batch -> single 8-row tile, row padding.
    x2 = jax.random.normal(k_x2, (4, 100), jnp.float32)
    out2 = jax.block_until_ready(generator_forward(x2, prepared))
    assert out2.shape == (4, g_output_dim)
    assert jnp.allclose(out2,
                        generator_reference(x2, params, emulate_bf16=True),
                        atol=5e-3, rtol=5e-3), "mismatch vs reference (small B)"

    print("KERNEL_OK")
</pallas_src>

<mosaic_0001>
module attributes {stable_mosaic.version = 11 : i64} {
  func.func @generator_kernel(%arg0: i32, %arg1: memref<16x128xbf16, #tpu.memory_space<vmem>>, %arg2: memref<128x256xbf16, #tpu.memory_space<vmem>>, %arg3: memref<1x256xf32, #tpu.memory_space<vmem>>, %arg4: memref<256x512xbf16, #tpu.memory_space<vmem>>, %arg5: memref<1x512xf32, #tpu.memory_space<vmem>>, %arg6: memref<512x1024xbf16, #tpu.memory_space<vmem>>, %arg7: memref<1x1024xf32, #tpu.memory_space<vmem>>, %arg8: memref<1024x784xbf16, #tpu.memory_space<vmem>>, %arg9: memref<1x784xf32, #tpu.memory_space<vmem>>, %arg10: memref<16x784xf32, #tpu.memory_space<vmem>>) attributes {dimension_semantics = [#tpu.dimension_semantics<parallel>], iteration_bounds = array<i64: 2>, scalar_prefetch = 0 : i64, scratch_operands = 0 : i64, tpu.core_type = #tpu.core_type<tc>, window_params = [{transform_indices = @transform_0, window_bounds = array<i64: 16, 128>}, {pipeline_mode = #tpu.pipeline_mode<synchronous>, transform_indices = @transform_1, window_bounds = array<i64: 128, 256>}, {pipeline_mode = #tpu.pipeline_mode<synchronous>, transform_indices = @transform_2, window_bounds = array<i64: 1, 256>}, {pipeline_mode = #tpu.pipeline_mode<synchronous>, transform_indices = @transform_3, window_bounds = array<i64: 256, 512>}, {pipeline_mode = #tpu.pipeline_mode<synchronous>, transform_indices = @transform_4, window_bounds = array<i64: 1, 512>}, {pipeline_mode = #tpu.pipeline_mode<synchronous>, transform_indices = @transform_5, window_bounds = array<i64: 512, 1024>}, {pipeline_mode = #tpu.pipeline_mode<synchronous>, transform_indices = @transform_6, window_bounds = array<i64: 1, 1024>}, {pipeline_mode = #tpu.pipeline_mode<synchronous>, transform_indices = @transform_7, window_bounds = array<i64: 1024, 784>}, {pipeline_mode = #tpu.pipeline_mode<synchronous>, transform_indices = @transform_8, window_bounds = array<i64: 1, 784>}, {transform_indices = @transform_9, window_bounds = array<i64: 16, 784>}]} {
    %c0 = arith.constant 0 : index
    %c0_0 = arith.constant 0 : index
    %0 = vector.load %arg1[%c0, %c0_0] : memref<16x128xbf16, #tpu.memory_space<vmem>>, vector<16x128xbf16>
    %c0_1 = arith.constant 0 : index
    %c0_2 = arith.constant 0 : index
    %1 = vector.load %arg2[%c0_1, %c0_2] : memref<128x256xbf16, #tpu.memory_space<vmem>>, vector<128x256xbf16>
    %cst = arith.constant dense<0.000000e+00> : vector<16x256xf32>
    %2 = tpu.matmul %0, %1, %cst {dimension_numbers = #tpu.dot_dimension_numbers<[1], [0], [0], [1], [0, 0, 1, 1], [], []>} : vector<16x128xbf16>, vector<128x256xbf16>, vector<16x256xf32> -> vector<16x256xf32>
    %c0_3 = arith.constant 0 : index
    %c0_4 = arith.constant 0 : index
    %3 = vector.load %arg3[%c0_3, %c0_4] : memref<1x256xf32, #tpu.memory_space<vmem>>, vector<1x256xf32>
    %4 = vector.broadcast %3 : vector<1x256xf32> to vector<16x256xf32>
    %5 = arith.addf %2, %4 : vector<16x256xf32>
    %cst_5 = arith.constant 0.000000e+00 : f32
    %6 = vector.broadcast %cst_5 : f32 to vector<16x256xf32>
    %7 = arith.cmpf ogt, %5, %6 : vector<16x256xf32>
    %cst_6 = arith.constant 2.000000e-01 : f32
    %8 = vector.broadcast %cst_6 : f32 to vector<16x256xf32>
    %9 = arith.mulf %8, %5 : vector<16x256xf32>
    %10 = arith.select %7, %5, %9 : vector<16x256xi1>, vector<16x256xf32>
    %11 = arith.truncf %10 : vector<16x256xf32> to vector<16x256xbf16>
    %c0_7 = arith.constant 0 : index
    %c0_8 = arith.constant 0 : index
    %12 = vector.load %arg4[%c0_7, %c0_8] : memref<256x512xbf16, #tpu.memory_space<vmem>>, vector<256x512xbf16>
    %cst_9 = arith.constant dense<0.000000e+00> : vector<16x512xf32>
    %13 = tpu.matmul %11, %12, %cst_9 {dimension_numbers = #tpu.dot_dimension_numbers<[1], [0], [0], [1], [0, 0, 1, 1], [], []>} : vector<16x256xbf16>, vector<256x512xbf16>, vector<16x512xf32> -> vector<16x512xf32>
    %c0_10 = arith.constant 0 : index
    %c0_11 = arith.constant 0 : index
    %14 = vector.load %arg5[%c0_10, %c0_11] : memref<1x512xf32, #tpu.memory_space<vmem>>, vector<1x512xf32>
    %15 = vector.broadcast %14 : vector<1x512xf32> to vector<16x512xf32>
    %16 = arith.addf %13, %15 : vector<16x512xf32>
    %cst_12 = arith.constant 0.000000e+00 : f32
    %17 = vector.broadcast %cst_12 : f32 to vector<16x512xf32>
    %18 = arith.cmpf ogt, %16, %17 : vector<16x512xf32>
    %cst_13 = arith.constant 2.000000e-01 : f32
    %19 = vector.broadcast %cst_13 : f32 to vector<16x512xf32>
    %20 = arith.mulf %19, %16 : vector<16x512xf32>
    %21 = arith.select %18, %16, %20 : vector<16x512xi1>, vector<16x512xf32>
    %22 = arith.truncf %21 : vector<16x512xf32> to vector<16x512xbf16>
    %c0_14 = arith.constant 0 : index
    %c0_15 = arith.constant 0 : index
    %23 = vector.load %arg6[%c0_14, %c0_15] : memref<512x1024xbf16, #tpu.memory_space<vmem>>, vector<512x1024xbf16>
    %cst_16 = arith.constant dense<0.000000e+00> : vector<16x1024xf32>
    %24 = tpu.matmul %22, %23, %cst_16 {dimension_numbers = #tpu.dot_dimension_numbers<[1], [0], [0], [1], [0, 0, 1, 1], [], []>} : vector<16x512xbf16>, vector<512x1024xbf16>, vector<16x1024xf32> -> vector<16x1024xf32>
    %c0_17 = arith.constant 0 : index
    %c0_18 = arith.constant 0 : index
    %25 = vector.load %arg7[%c0_17, %c0_18] : memref<1x1024xf32, #tpu.memory_space<vmem>>, vector<1x1024xf32>
    %26 = vector.broadcast %25 : vector<1x1024xf32> to vector<16x1024xf32>
    %27 = arith.addf %24, %26 : vector<16x1024xf32>
    %cst_19 = arith.constant 0.000000e+00 : f32
    %28 = vector.broadcast %cst_19 : f32 to vector<16x1024xf32>
    %29 = arith.cmpf ogt, %27, %28 : vector<16x1024xf32>
    %cst_20 = arith.constant 2.000000e-01 : f32
    %30 = vector.broadcast %cst_20 : f32 to vector<16x1024xf32>
    %31 = arith.mulf %30, %27 : vector<16x1024xf32>
    %32 = arith.select %29, %27, %31 : vector<16x1024xi1>, vector<16x1024xf32>
    %33 = arith.truncf %32 : vector<16x1024xf32> to vector<16x1024xbf16>
    %c0_21 = arith.constant 0 : index
    %c0_22 = arith.constant 0 : index
    %34 = vector.load %arg8[%c0_21, %c0_22] : memref<1024x784xbf16, #tpu.memory_space<vmem>>, vector<1024x784xbf16>
    %cst_23 = arith.constant dense<0.000000e+00> : vector<16x784xf32>
    %35 = tpu.matmul %33, %34, %cst_23 {dimension_numbers = #tpu.dot_dimension_numbers<[1], [0], [0], [1], [0, 0, 1, 1], [], []>} : vector<16x1024xbf16>, vector<1024x784xbf16>, vector<16x784xf32> -> vector<16x784xf32>
    %c0_24 = arith.constant 0 : index
    %c0_25 = arith.constant 0 : index
    %36 = vector.load %arg9[%c0_24, %c0_25] : memref<1x784xf32, #tpu.memory_space<vmem>>, vector<1x784xf32>
    %37 = vector.broadcast %36 : vector<1x784xf32> to vector<16x784xf32>
    %38 = arith.addf %35, %37 : vector<16x784xf32>
    %39 = math.tanh %38 : vector<16x784xf32>
    %c0_26 = arith.constant 0 : index
    %c0_27 = arith.constant 0 : index
    %40 = vector.load %arg10[%c0_26, %c0_27] : memref<16x784xf32, #tpu.memory_space<vmem>>, vector<16x784xf32>
    tpu.vector_store %arg10[%c0_26, %c0_27], %39 {strides = array<i32>} : memref<16x784xf32, #tpu.memory_space<vmem>>, vector<16x784xf32>,
    return
  }
  func.func @transform_0(%arg0: i32) -> (i32, i32) {
    %c0_i32 = arith.constant 0 : i32
    %c0_i32_0 = arith.constant 0 : i32
    return %arg0, %c0_i32 : i32, i32
  }
  func.func @transform_1(%arg0: i32) -> (i32, i32) {
    %c0_i32 = arith.constant 0 : i32
    %c0_i32_0 = arith.constant 0 : i32
    %c0_i32_1 = arith.constant 0 : i32
    return %c0_i32, %c0_i32_0 : i32, i32
  }
  func.func @transform_2(%arg0: i32) -> (i32, i32) {
    %c0_i32 = arith.constant 0 : i32
    %c0_i32_0 = arith.constant 0 : i32
    %c0_i32_1 = arith.constant 0 : i32
    return %c0_i32, %c0_i32_0 : i32, i32
  }
  func.func @transform_3(%arg0: i32) -> (i32, i32) {
    %c0_i32 = arith.constant 0 : i32
    %c0_i32_0 = arith.constant 0 : i32
    %c0_i32_1 = arith.constant 0 : i32
    return %c0_i32, %c0_i32_0 : i32, i32
  }
  func.func @transform_4(%arg0: i32) -> (i32, i32) {
    %c0_i32 = arith.constant 0 : i32
    %c0_i32_0 = arith.constant 0 : i32
    %c0_i32_1 = arith.constant 0 : i32
    return %c0_i32, %c0_i32_0 : i32, i32
  }
  func.func @transform_5(%arg0: i32) -> (i32, i32) {
    %c0_i32 = arith.constant 0 : i32
    %c0_i32_0 = arith.constant 0 : i32
    %c0_i32_1 = arith.constant 0 : i32
    return %c0_i32, %c0_i32_0 : i32, i32
  }
  func.func @transform_6(%arg0: i32) -> (i32, i32) {
    %c0_i32 = arith.constant 0 : i32
    %c0_i32_0 = arith.constant 0 : i32
    %c0_i32_1 = arith.constant 0 : i32
    return %c0_i32, %c0_i32_0 : i32, i32
  }
  func.func @transform_7(%arg0: i32) -> (i32, i32) {
    %c0_i32 = arith.constant 0 : i32
    %c0_i32_0 = arith.constant 0 : i32
    %c0_i32_1 = arith.constant 0 : i32
    return %c0_i32, %c0_i32_0 : i32, i32
  }
  func.func @transform_8(%arg0: i32) -> (i32, i32) {
    %c0_i32 = arith.constant 0 : i32
    %c0_i32_0 = arith.constant 0 : i32
    %c0_i32_1 = arith.constant 0 : i32
    return %c0_i32, %c0_i32_0 : i32, i32
  }
  func.func @transform_9(%arg0: i32) -> (i32, i32) {
    %c0_i32 = arith.constant 0 : i32
    %c0_i32_0 = arith.constant 0 : i32
    return %arg0, %c0_i32 : i32, i32
  }
}

</mosaic_0001>

<llo_original>
// kernel: tpu_custom_call.1
$region0: #{tpu_custom_call.1}
  #allocation0 [shape = 'u32[]', space=smem, size = 0x4, offset = 0x4, fixed_abs, tag = 'smem constant byte address 0x4 - core index']
  #allocation1 [shape = 'u32[144,128]{1,0:T(1,128)}', space=vmem, size = 0x12000, scoped, tag = 'internal scratch']
  %s0 = inlined_call_operand.vmem [shape: bf16[32,128], index: 0, kind: input, shape index: {}]
  %s1 = inlined_call_operand.vmem [shape: bf16[128,256], index: 1, kind: input, shape index: {}]
  %s2 = inlined_call_operand.vmem [shape: f32[1,256], index: 2, kind: input, shape index: {}]
  %s3 = inlined_call_operand.vmem [shape: bf16[256,512], index: 3, kind: input, shape index: {}]
  %s4 = inlined_call_operand.vmem [shape: f32[1,512], index: 4, kind: input, shape index: {}]
  %s5 = inlined_call_operand.vmem [shape: bf16[512,1024], index: 5, kind: input, shape index: {}]
  %s6 = inlined_call_operand.vmem [shape: f32[1,1024], index: 6, kind: input, shape index: {}]
  %s7 = inlined_call_operand.vmem [shape: bf16[1024,784], index: 7, kind: input, shape index: {}]
  %s8 = inlined_call_operand.vmem [shape: f32[1,784], index: 8, kind: input, shape index: {}]
  %s9 = inlined_call_operand.hbm [shape: f32[32,784], index: 9, kind: output, shape index: {}]
  %s10 = sld [smem:[#allocation0]]
  $region69: #{tpu_custom_call.1} parent=0
    _
  %s12 = ssub.s32 1, %s10
  %s13 = scalar_select 0, %s12, %s10
  $region1: #{tpu_custom_call.1} parent=0
    #allocation2 [shape = 'u8[114688]{0}', space=vmem, size = 0x1c000, scoped, tag = 'output window, operand 0']
    #allocation3 [shape = 's32[2]{0}', space=sflag, size = 0x8, scoped, tag = 'scoped memory for tpu_custom_call.1']
    %14 = vsyncpa [#allocation3], 0
    %s15 = scalar_lea.sflag [#allocation3], 1
    %16 = vsyncpa %s15, 0
    loop: start=0, step=1, limit=4
    $region2: #{tpu_custom_call.1} parent=1 // loop_pre_header
      _
    $region3: #{tpu_custom_call.1} parent=1 // loop_header
      %s18 = sphi 0, %s22
      %p19 = scmp.ge.s32.totalorder %s18, 4
      %s28 = sphi 0, %s30
      %s31 = sphi 0, %s28
      %s32 = sphi 0, %s31
      %s48 = sphi 0, %s32
      %s52 = sphi 0, %s52
      %s54 = sphi 0, %s52
      %s55 = sphi 0, %s54
      %s69 = sphi 0, %s55
      %s73 = sphi 0, %s73
      %s75 = sphi 0, %s73
      %s76 = sphi 0, %s75
      %s90 = sphi 0, %s76
      %s94 = sphi 0, %s94
      %s96 = sphi 0, %s94
      %s97 = sphi 0, %s96
      %s111 = sphi 0, %s97
      %s115 = sphi 0, %s115
      %s117 = sphi 0, %s115
      %s118 = sphi 0, %s117
      %s132 = sphi 0, %s118
      %s136 = sphi 0, %s136
      %s138 = sphi 0, %s136
      %s139 = sphi 0, %s138
      %s153 = sphi 0, %s139
      %s157 = sphi 0, %s157
      %s159 = sphi 0, %s157
      %s160 = sphi 0, %s159
      %s174 = sphi 0, %s160
      %s178 = sphi 0, %s178
      %s180 = sphi 0, %s178
      %s181 = sphi 0, %s180
      %s195 = sphi 0, %s181
      %s199 = sphi 0, %s199
      %s201 = sphi 0, %s199
      %s202 = sphi 0, %s201
      %s216 = sphi 0, %s202
      %s222 = sphi 0, %s224
      %s225 = sphi 0, %s222
      %s226 = sphi 0, %s225
      %s242 = sphi 0, %s226
    $region4: #{tpu_custom_call.1} parent=1 // loop_header_branch
      %21 = sbr.rel (%p19) target = $region8
    $region5: #{tpu_custom_call.1} parent=1 // loop_body
      %s23 = ssub.s32 %s18, 1
      %s24 = ssub.s32 %s18, 2
      %s25 = sadd.s32 %s18, 1
      %s26 = ssub.s32 %s18, %s25
      %p27 = scmp.eq.s32.totalorder %s26, 0
      %s29 = sadd.s32 %s28, 1
      %s30 = scalar_select %p27, %s28, %s29
      %p33 = pneg %p27
      %p34 = scmp.eq.s32.totalorder %s18, 1
      %p35 = por %p33, %p34
      %p36 = scmp.ne.s32.totalorder %s28, %s31
      %p37 = scmp.eq.s32.totalorder %s18, 0
      %p38 = por %p36, %p37
      %p39 = scmp.ne.s32.totalorder %s28, %s31
      %p40 = scmp.eq.s32.totalorder %s23, 1
      %p41 = por %p39, %p40
      %p42 = scmp.ne.s32.totalorder %s31, %s32
      %p43 = scmp.eq.s32.totalorder %s23, 0
      %p44 = por %p42, %p43
      %p45 = scmp.ne.s32.totalorder %s31, %s32
      %p46 = scmp.eq.s32.totalorder %s24, 1
      %p47 = por %p45, %p46
      %p49 = scmp.ne.s32.totalorder %s32, %s48
      %p50 = scmp.eq.s32.totalorder %s24, 0
      %p51 = por %p49, %p50
      %s53 = sadd.s32 %s52, 1
      %p56 = scmp.eq.s32.totalorder %s18, 1
      %p57 = scmp.ne.s32.totalorder %s52, %s54
      %p58 = scmp.eq.s32.totalorder %s18, 0
      %p59 = por %p57, %p58
      %p60 = scmp.ne.s32.totalorder %s52, %s54
      %p61 = scmp.eq.s32.totalorder %s23, 1
      %p62 = por %p60, %p61
      %p63 = scmp.ne.s32.totalorder %s54, %s55
      %p64 = scmp.eq.s32.totalorder %s23, 0
      %p65 = por %p63, %p64
      %p66 = scmp.ne.s32.totalorder %s54, %s55
      %p67 = scmp.eq.s32.totalorder %s24, 1
      %p68 = por %p66, %p67
      %p70 = scmp.ne.s32.totalorder %s55, %s69
      %p71 = scmp.eq.s32.totalorder %s24, 0
      %p72 = por %p70, %p71
      %s74 = sadd.s32 %s73, 1
      %p77 = scmp.eq.s32.totalorder %s18, 1
      %p78 = scmp.ne.s32.totalorder %s73, %s75
      %p79 = scmp.eq.s32.totalorder %s18, 0
      %p80 = por %p78, %p79
      %p81 = scmp.ne.s32.totalorder %s73, %s75
      %p82 = scmp.eq.s32.totalorder %s23, 1
      %p83 = por %p81, %p82
      %p84 = scmp.ne.s32.totalorder %s75, %s76
      %p85 = scmp.eq.s32.totalorder %s23, 0
      %p86 = por %p84, %p85
      %p87 = scmp.ne.s32.totalorder %s75, %s76
      %p88 = scmp.eq.s32.totalorder %s24, 1
      %p89 = por %p87, %p88
      %p91 = scmp.ne.s32.totalorder %s76, %s90
      %p92 = scmp.eq.s32.totalorder %s24, 0
      %p93 = por %p91, %p92
      %s95 = sadd.s32 %s94, 1
      %p98 = scmp.eq.s32.totalorder %s18, 1
      %p99 = scmp.ne.s32.totalorder %s94, %s96
      %p100 = scmp.eq.s32.totalorder %s18, 0
      %p101 = por %p99, %p100
      %p102 = scmp.ne.s32.totalorder %s94, %s96
      %p103 = scmp.eq.s32.totalorder %s23, 1
      %p104 = por %p102, %p103
      %p105 = scmp.ne.s32.totalorder %s96, %s97
      %p106 = scmp.eq.s32.totalorder %s23, 0
      %p107 = por %p105, %p106
      %p108 = scmp.ne.s32.totalorder %s96, %s97
      %p109 = scmp.eq.s32.totalorder %s24, 1
      %p110 = por %p108, %p109
      %p112 = scmp.ne.s32.totalorder %s97, %s111
      %p113 = scmp.eq.s32.totalorder %s24, 0
      %p114 = por %p112, %p113
      %s116 = sadd.s32 %s115, 1
      %p119 = scmp.eq.s32.totalorder %s18, 1
      %p120 = scmp.ne.s32.totalorder %s115, %s117
      %p121 = scmp.eq.s32.totalorder %s18, 0
      %p122 = por %p120, %p121
      %p123 = scmp.ne.s32.totalorder %s115, %s117
      %p124 = scmp.eq.s32.totalorder %s23, 1
      %p125 = por %p123, %p124
      %p126 = scmp.ne.s32.totalorder %s117, %s118
      %p127 = scmp.eq.s32.totalorder %s23, 0
      %p128 = por %p126, %p127
      %p129 = scmp.ne.s32.totalorder %s117, %s118
      %p130 = scmp.eq.s32.totalorder %s24, 1
      %p131 = por %p129, %p130
      %p133 = scmp.ne.s32.totalorder %s118, %s132
      %p134 = scmp.eq.s32.totalorder %s24, 0
      %p135 = por %p133, %p134
      %s137 = sadd.s32 %s136, 1
      %p140 = scmp.eq.s32.totalorder %s18, 1
      %p141 = scmp.ne.s32.totalorder %s136, %s138
      %p142 = scmp.eq.s32.totalorder %s18, 0
      %p143 = por %p141, %p142
      %p144 = scmp.ne.s32.totalorder %s136, %s138
      %p145 = scmp.eq.s32.totalorder %s23, 1
      %p146 = por %p144, %p145
      %p147 = scmp.ne.s32.totalorder %s138, %s139
      %p148 = scmp.eq.s32.totalorder %s23, 0
      %p149 = por %p147, %p148
      %p150 = scmp.ne.s32.totalorder %s138, %s139
      %p151 = scmp.eq.s32.totalorder %s24, 1
      %p152 = por %p150, %p151
      %p154 = scmp.ne.s32.totalorder %s139, %s153
      %p155 = scmp.eq.s32.totalorder %s24, 0
      %p156 = por %p154, %p155
      %s158 = sadd.s32 %s157, 1
      %p161 = scmp.eq.s32.totalorder %s18, 1
      %p162 = scmp.ne.s32.totalorder %s157, %s159
      %p163 = scmp.eq.s32.totalorder %s18, 0
      %p164 = por %p162, %p163
      %p165 = scmp.ne.s32.totalorder %s157, %s159
      %p166 = scmp.eq.s32.totalorder %s23, 1
      %p167 = por %p165, %p166
      %p168 = scmp.ne.s32.totalorder %s159, %s160
      %p169 = scmp.eq.s32.totalorder %s23, 0
      %p170 = por %p168, %p169
      %p171 = scmp.ne.s32.totalorder %s159, %s160
      %p172 = scmp.eq.s32.totalorder %s24, 1
      %p173 = por %p171, %p172
      %p175 = scmp.ne.s32.totalorder %s160, %s174
      %p176 = scmp.eq.s32.totalorder %s24, 0
      %p177 = por %p175, %p176
      %s179 = sadd.s32 %s178, 1
      %p182 = scmp.eq.s32.totalorder %s18, 1
      %p183 = scmp.ne.s32.totalorder %s178, %s180
      %p184 = scmp.eq.s32.totalorder %s18, 0
      %p185 = por %p183, %p184
      %p186 = scmp.ne.s32.totalorder %s178, %s180
      %p187 = scmp.eq.s32.totalorder %s23, 1
      %p188 = por %p186, %p187
      %p189 = scmp.ne.s32.totalorder %s180, %s181
      %p190 = scmp.eq.s32.totalorder %s23, 0
      %p191 = por %p189, %p190
      %p192 = scmp.ne.s32.totalorder %s180, %s181
      %p193 = scmp.eq.s32.totalorder %s24, 1
      %p194 = por %p192, %p193
      %p196 = scmp.ne.s32.totalorder %s181, %s195
      %p197 = scmp.eq.s32.totalorder %s24, 0
      %p198 = por %p196, %p197
      %s200 = sadd.s32 %s199, 1
      %p203 = scmp.eq.s32.totalorder %s18, 1
      %p204 = scmp.ne.s32.totalorder %s199, %s201
      %p205 = scmp.eq.s32.totalorder %s18, 0
      %p206 = por %p204, %p205
      %p207 = scmp.ne.s32.totalorder %s199, %s201
      %p208 = scmp.eq.s32.totalorder %s23, 1
      %p209 = por %p207, %p208
      %p210 = scmp.ne.s32.totalorder %s201, %s202
      %p211 = scmp.eq.s32.totalorder %s23, 0
      %p212 = por %p210, %p211
      %p213 = scmp.ne.s32.totalorder %s201, %s202
      %p214 = scmp.eq.s32.totalorder %s24, 1
      %p215 = por %p213, %p214
      %p217 = scmp.ne.s32.totalorder %s202, %s216
      %p218 = scmp.eq.s32.totalorder %s24, 0
      %p219 = por %p217, %p218
      %s220 = ssub.s32 %s18, %s25
      %p221 = scmp.eq.s32.totalorder %s220, 0
      %s223 = sadd.s32 %s222, 1
      %s224 = scalar_select %p221, %s222, %s223
      %p227 = pneg %p221
      %p228 = scmp.eq.s32.totalorder %s18, 1
      %p229 = por %p227, %p228
      %p230 = scmp.ne.s32.totalorder %s222, %s225
      %p231 = scmp.eq.s32.totalorder %s18, 0
      %p232 = por %p230, %p231
      %p233 = scmp.ne.s32.totalorder %s222, %s225
      %p234 = scmp.eq.s32.totalorder %s23, 1
      %p235 = por %p233, %p234
      %p236 = scmp.ne.s32.totalorder %s225, %s226
      %p237 = scmp.eq.s32.totalorder %s23, 0
      %p238 = por %p236, %p237
      %p239 = scmp.ne.s32.totalorder %s225, %s226
      %p240 = scmp.eq.s32.totalorder %s24, 1
      %p241 = por %p239, %p240
      %p243 = scmp.ne.s32.totalorder %s226, %s242
      %p244 = scmp.eq.s32.totalorder %s24, 0
      %p245 = por %p243, %p244
      %p246 = scmp.le.s32.totalorder 1, %s18
      %p247 = scmp.lt.s32.totalorder %s18, 3
      %p248 = pnand %p246, %p247
      %p249 = pneg %p248
      // Predicated region
      $region9: #{tpu_custom_call.1} parent=5 // pred_check
        _
      $region10: #{tpu_custom_call.1} parent=5 // pred_check_branch
        %251 = sbr.rel (%p248) target = $region12
      $region11: #{tpu_custom_call.1} parent=5 // pred_region
        %s252 = ssub.s32 %s18, 1
        // Predicated region
        $region13: #{tpu_custom_call.1} parent=11 // pred_check
          %p253 = pneg %p65
        $region14: #{tpu_custom_call.1} parent=11 // pred_check_branch
          %255 = sbr.rel (%p253) target = $region16
        $region15: #{tpu_custom_call.1} parent=11 // pred_region
          _
        $region16: #{tpu_custom_call.1} parent=11 // pred_fallthru
          _
        // Predicated region
        $region17: #{tpu_custom_call.1} parent=11 // pred_check
          %p256 = pneg %p86
        $region18: #{tpu_custom_call.1} parent=11 // pred_check_branch
          %258 = sbr.rel (%p256) target = $region20
        $region19: #{tpu_custom_call.1} parent=11 // pred_region
          _
        $region20: #{tpu_custom_call.1} parent=11 // pred_fallthru
          _
        // Predicated region
        $region21: #{tpu_custom_call.1} parent=11 // pred_check
          %p259 = pneg %p107
        $region22: #{tpu_custom_call.1} parent=11 // pred_check_branch
          %261 = sbr.rel (%p259) target = $region24
        $region23: #{tpu_custom_call.1} parent=11 // pred_region
          _
        $region24: #{tpu_custom_call.1} parent=11 // pred_fallthru
          _
        // Predicated region
        $region25: #{tpu_custom_call.1} parent=11 // pred_check
          %p262 = pneg %p128
        $region26: #{tpu_custom_call.1} parent=11 // pred_check_branch
          %264 = sbr.rel (%p262) target = $region28
        $region27: #{tpu_custom_call.1} parent=11 // pred_region
          _
        $region28: #{tpu_custom_call.1} parent=11 // pred_fallthru
          _
        // Predicated region
        $region29: #{tpu_custom_call.1} parent=11 // pred_check
          %p265 = pneg %p149
        $region30: #{tpu_custom_call.1} parent=11 // pred_check_branch
          %267 = sbr.rel (%p265) target = $region32
        $region31: #{tpu_custom_call.1} parent=11 // pred_region
          _
        $region32: #{tpu_custom_call.1} parent=11 // pred_fallthru
          _
        // Predicated region
        $region33: #{tpu_custom_call.1} parent=11 // pred_check
          %p268 = pneg %p170
        $region34: #{tpu_custom_call.1} parent=11 // pred_check_branch
          %270 = sbr.rel (%p268) target = $region36
        $region35: #{tpu_custom_call.1} parent=11 // pred_region
          _
        $region36: #{tpu_custom_call.1} parent=11 // pred_fallthru
          _
        // Predicated region
        $region37: #{tpu_custom_call.1} parent=11 // pred_check
          %p271 = pneg %p191
        $region38: #{tpu_custom_call.1} parent=11 // pred_check_branch
          %273 = sbr.rel (%p271) target = $region40
        $region39: #{tpu_custom_call.1} parent=11 // pred_region
          _
        $region40: #{tpu_custom_call.1} parent=11 // pred_fallthru
          _
        // Predicated region
        $region41: #{tpu_custom_call.1} parent=11 // pred_check
          %p274 = pneg %p212
        $region42: #{tpu_custom_call.1} parent=11 // pred_check_branch
          %276 = sbr.rel (%p274) target = $region44
        $region43: #{tpu_custom_call.1} parent=11 // pred_region
          _
        $region44: #{tpu_custom_call.1} parent=11 // pred_fallthru
          _
      $region12: #{tpu_custom_call.1} parent=5 // pred_fallthru
        _
      %p277 = scmp.lt.s32.totalorder %s18, 2
      // Predicated region
      $region45: #{tpu_custom_call.1} parent=5 // pred_check
        %p278 = pneg %p277
      $region46: #{tpu_custom_call.1} parent=5 // pred_check_branch
        %280 = sbr.rel (%p278) target = $region48
      $region47: #{tpu_custom_call.1} parent=5 // pred_region
        // Predicated region
        $region49: #{tpu_custom_call.1} parent=47 // pred_check
          %p281 = pneg %p38
        $region50: #{tpu_custom_call.1} parent=47 // pred_check_branch
          %283 = sbr.rel (%p281) target = $region52
        $region51: #{tpu_custom_call.1} parent=47 // pred_region
          %s284 = smul.u32 2, %s18
          %p285 = scmp.lt.s32.totalorder %s284, 3
          %s286 = scalar_select %p285, %s284, 3
          %s287 = smul.addr %s286, 4
          %s288 = scalar_lea.vmem %s0, %s287
          %s289 = smul.u32 2, %s18
        $region52: #{tpu_custom_call.1} parent=47 // pred_fallthru
          _
      $region48: #{tpu_custom_call.1} parent=5 // pred_fallthru
        _
      %p290 = scmp.le.s32.totalorder 1, %s18
      %p291 = scmp.lt.s32.totalorder %s18, 3
      %p292 = pnand %p290, %p291
      %p293 = pneg %p292
      // Predicated region
      $region53: #{tpu_custom_call.1} parent=5 // pred_check
        _
      $region54: #{tpu_custom_call.1} parent=5 // pred_check_branch
        %295 = sbr.rel (%p292) target = $region56
      $region55: #{tpu_custom_call.1} parent=5 // pred_region
        %s296 = ssub.s32 %s18, 1
        %s297 = smul.u32 2, %s23
        %p298 = scmp.lt.s32.totalorder %s297, 3
        %s299 = scalar_select %p298, %s297, 3
        %s300 = smul.addr %s299, 4
        %s301 = scalar_lea.vmem %s0, %s300
        %p302 = pneg %p44
        %p303 = pneg %p41
        %p304 = pneg %p65
        %p305 = pneg %p62
        %p306 = pneg %p86
        %p307 = pneg %p83
        %p308 = pneg %p107
        %p309 = pneg %p104
        %p310 = pneg %p128
        %p311 = pneg %p125
        %p312 = pneg %p149
        %p313 = pneg %p146
        %p314 = pneg %p170
        %p315 = pneg %p167
        %p316 = pneg %p191
        %p317 = pneg %p188
        %p318 = pneg %p212
        %p319 = pneg %p209
        %p320 = pneg %p238
        %p321 = pneg %p235
        %s322 = sand.u32 %s225, 1
        %s323 = scalar_lea.sflag [#allocation3], %s322
        %s324 = sand.u32 %s225, 1
        %s325 = smul.addr %s324, 112
        %s326 = scalar_lea.vmem [#allocation2], %s325
        %s327 = smul.u32 2, %s23
        %p328 = scmp.lt.s32.totalorder %s327, 3
        %s329 = scalar_select %p328, %s327, 3
        %s330 = smul.addr %s329, 4
        %s331 = scalar_lea.vmem %s0, %s330
        %s332 = smul.u32 2, %s23
        %s333 = smul.u32 2, %s23
        %v335 = vld [vmem:[%s331] sm:$0xf]
        %v336 = vld [vmem:[%s331 + $0x4] sm:$0xf]
        %v337 = vld [vmem:[%s1] sm:$0xff]
        %v338 = vld [vmem:[%s1 + $0x8] sm:$0xff]
        %v339 = vld [vmem:[%s1 + $0x10] sm:$0xff]
        %v340 = vld [vmem:[%s1 + $0x18] sm:$0xff]
        %v341 = vld [vmem:[%s1 + $0x20] sm:$0xff]
        %v342 = vld [vmem:[%s1 + $0x28] sm:$0xff]
        %v343 = vld [vmem:[%s1 + $0x30] sm:$0xff]
        %v344 = vld [vmem:[%s1 + $0x38] sm:$0xff]
        %v345 = vld [vmem:[%s1 + $0x40] sm:$0xff]
        %v346 = vld [vmem:[%s1 + $0x48] sm:$0xff]
        %v347 = vld [vmem:[%s1 + $0x50] sm:$0xff]
        %v348 = vld [vmem:[%s1 + $0x58] sm:$0xff]
        %v349 = vld [vmem:[%s1 + $0x60] sm:$0xff]
        %v350 = vld [vmem:[%s1 + $0x68] sm:$0xff]
        %v351 = vld [vmem:[%s1 + $0x70] sm:$0xff]
        %v352 = vld [vmem:[%s1 + $0x78] sm:$0xff]
        %v353 = vld [vmem:[%s2] sm:$0x3]
        %v355 = vlaneseq
        %v356 = vshrl.u32 %v355, 7
        %v357 = vsub.s32 0, %v356
        %v358 = vrot.slane %v353, %v357
        %v359 = vlaneseq
        %v360 = vshrl.u32 %v359, 7
        %v361 = vsub.s32 1, %v360
        %v362 = vrot.slane %v353, %v361
        %v367 = vunpack.c.l.b16 %v335
        %v368 = vunpack.c.l.b16 %v336
        %v369 = vpack.c.b16 %v368, %v367
        %v387 = vunpack.c.l.b16 %v337
        %v388 = vunpack.c.h.b16 %v337
        %v389 = vunpack.c.l.b16 %v338
        %v390 = vunpack.c.h.b16 %v338
        %v391 = vunpack.c.l.b16 %v339
        %v392 = vunpack.c.h.b16 %v339
        %v393 = vunpack.c.l.b16 %v340
        %v394 = vunpack.c.h.b16 %v340
        %v395 = vunpack.c.l.b16 %v341
        %v396 = vunpack.c.h.b16 %v341
        %v397 = vunpack.c.l.b16 %v342
        %v398 = vunpack.c.h.b16 %v342
        %v399 = vunpack.c.l.b16 %v343
        %v400 = vunpack.c.h.b16 %v343
        %v401 = vunpack.c.l.b16 %v344
        %v402 = vunpack.c.h.b16 %v344
        %v403 = vunpack.c.l.b16 %v345
        %v404 = vunpack.c.h.b16 %v345
        %v405 = vunpack.c.l.b16 %v346
        %v406 = vunpack.c.h.b16 %v346
        %v407 = vunpack.c.l.b16 %v347
        %v408 = vunpack.c.h.b16 %v347
        %v409 = vunpack.c.l.b16 %v348
        %v410 = vunpack.c.h.b16 %v348
        %v411 = vunpack.c.l.b16 %v349
        %v412 = vunpack.c.h.b16 %v349
        %v413 = vunpack.c.l.b16 %v350
        %v414 = vunpack.c.h.b16 %v350
        %v415 = vunpack.c.l.b16 %v351
        %v416 = vunpack.c.h.b16 %v351
        %v417 = vunpack.c.l.b16 %v352
        %v418 = vunpack.c.h.b16 %v352
        %v419 = vpack.c.b16 %v389, %v387
        %v420 = vpack.c.b16 %v390, %v388
        %v421 = vpack.c.b16 %v393, %v391
        %v422 = vpack.c.b16 %v394, %v392
        %v423 = vpack.c.b16 %v397, %v395
        %v424 = vpack.c.b16 %v398, %v396
        %v425 = vpack.c.b16 %v401, %v399
        %v426 = vpack.c.b16 %v402, %v400
        %v427 = vpack.c.b16 %v405, %v403
        %v428 = vpack.c.b16 %v406, %v404
        %v429 = vpack.c.b16 %v409, %v407
        %v430 = vpack.c.b16 %v410, %v408
        %v431 = vpack.c.b16 %v413, %v411
        %v432 = vpack.c.b16 %v414, %v412
        %v433 = vpack.c.b16 %v417, %v415
        %v434 = vpack.c.b16 %v418, %v416
        %451 = vmatprep.subr.bf16.mxu0 %v420
        %452 = vmatpush1.bf16.msra.mxu0 %v419
        %453 = vmatprep.subr.bf16.mxu0 %v422
        %454 = vmatpush1.bf16.msra.mxu0 %v421
        %455 = vmatprep.subr.bf16.mxu0 %v424
        %456 = vmatpush1.bf16.msra.mxu0 %v423
        %457 = vmatprep.subr.bf16.mxu0 %v426
        %458 = vmatpush1.bf16.msra.mxu0 %v425
        %459 = vmatprep.subr.bf16.mxu0 %v428
        %460 = vmatpush1.bf16.msra.mxu0 %v427
        %461 = vmatprep.subr.bf16.mxu0 %v430
        %462 = vmatpush1.bf16.msra.mxu0 %v429
        %463 = vmatprep.subr.bf16.mxu0 %v432
        %464 = vmatpush1.bf16.msra.mxu0 %v431
        %465 = vmatprep.subr.bf16.mxu0 %v434
        %466 = vmatpush1.bf16.msra.mxu0 %v433
        %467 = vmatprep.subr.bf16.mxu0 0
        %468 = vmatpush1.bf16.msra.mxu0 0
        %469 = vmatprep.subr.bf16.mxu0 0
        %470 = vmatpush1.bf16.msra.mxu0 0
        %471 = vmatprep.subr.bf16.mxu0 0
        %472 = vmatpush1.bf16.msra.mxu0 0
        %473 = vmatprep.subr.bf16.mxu0 0
        %474 = vmatpush1.bf16.msra.mxu0 0
        %475 = vmatprep.subr.bf16.mxu0 0
        %476 = vmatpush1.bf16.msra.mxu0 0
        %477 = vmatprep.subr.bf16.mxu0 0
        %478 = vmatpush1.bf16.msra.mxu0 0
        %479 = vmatprep.subr.bf16.mxu0 0
        %480 = vmatpush1.bf16.msra.mxu0 0
        %481 = vmatprep.subr.bf16.mxu0 0
        %482 = vmatpush1.bf16.msra.mxu0 0
        %483 = vmatprep.mubr.bf16.mxu0 0
        %484 = vmatmul.mubr.bf16.gmra.mrb[0].mxu0 %v369
        %v485 = vpop.f32.mrb[0].mxu0
        %v486 = vadd.f32 %v358, %v485
        %v487 = vpop.f32.mrb[0].mxu0
        %v488 = vadd.f32 %v362, %v487
        %v489 = vpop.f32.mrb[0].mxu0
        %v490 = vadd.f32 %v358, %v489
        %v491 = vpop.f32.mrb[0].mxu0
        %v492 = vadd.f32 %v362, %v491
        %493 = vdwg.mxu0
        %vm494 = vcmp.gt.f32.partialorder %v486, 0.0
        %vm495 = vcmp.gt.f32.partialorder %v488, 0.0
        %vm496 = vcmp.gt.f32.partialorder %v490, 0.0
        %vm497 = vcmp.gt.f32.partialorder %v492, 0.0
        %v498 = vmul.f32 %v486, 0.2
        %v499 = vmul.f32 %v488, 0.2
        %v500 = vmul.f32 %v490, 0.2
        %v501 = vmul.f32 %v492, 0.2
        %v502 = vsel %vm494, %v486, %v498
        %v503 = vsel %vm495, %v488, %v499
        %v504 = vsel %vm496, %v490, %v500
        %v505 = vsel %vm497, %v492, %v501
        %v506 = vpack.c.bf16 %v504, %v502
        %v507 = vpack.c.bf16 %v505, %v503
        %v508 = vld [vmem:[%s3] sm:$0xff]
        %v509 = vld [vmem:[%s3 + $0x8] sm:$0xff]
        %v510 = vld [vmem:[%s3 + $0x10] sm:$0xff]
        %v511 = vld [vmem:[%s3 + $0x18] sm:$0xff]
        %v512 = vld [vmem:[%s3 + $0x20] sm:$0xff]
        %v513 = vld [vmem:[%s3 + $0x28] sm:$0xff]
        %v514 = vld [vmem:[%s3 + $0x30] sm:$0xff]
        %v515 = vld [vmem:[%s3 + $0x38] sm:$0xff]
        %v516 = vld [vmem:[%s3 + $0x40] sm:$0xff]
        %v517 = vld [vmem:[%s3 + $0x48] sm:$0xff]
        %v518 = vld [vmem:[%s3 + $0x50] sm:$0xff]
        %v519 = vld [vmem:[%s3 + $0x58] sm:$0xff]
        %v520 = vld [vmem:[%s3 + $0x60] sm:$0xff]
        %v521 = vld [vmem:[%s3 + $0x68] sm:$0xff]
        %v522 = vld [vmem:[%s3 + $0x70] sm:$0xff]
        %v523 = vld [vmem:[%s3 + $0x78] sm:$0xff]
        %v524 = vld [vmem:[%s3 + $0x80] sm:$0xff]
        %v525 = vld [vmem:[%s3 + $0x88] sm:$0xff]
        %v526 = vld [vmem:[%s3 + $0x90] sm:$0xff]
        %v527 = vld [vmem:[%s3 + $0x98] sm:$0xff]
        %v528 = vld [vmem:[%s3 + $0xa0] sm:$0xff]
        %v529 = vld [vmem:[%s3 + $0xa8] sm:$0xff]
        %v530 = vld [vmem:[%s3 + $0xb0] sm:$0xff]
        %v531 = vld [vmem:[%s3 + $0xb8] sm:$0xff]
        %v532 = vld [vmem:[%s3 + $0xc0] sm:$0xff]
        %v533 = vld [vmem:[%s3 + $0xc8] sm:$0xff]
        %v534 = vld [vmem:[%s3 + $0xd0] sm:$0xff]
        %v535 = vld [vmem:[%s3 + $0xd8] sm:$0xff]
        %v536 = vld [vmem:[%s3 + $0xe0] sm:$0xff]
        %v537 = vld [vmem:[%s3 + $0xe8] sm:$0xff]
        %v538 = vld [vmem:[%s3 + $0xf0] sm:$0xff]
        %v539 = vld [vmem:[%s3 + $0xf8] sm:$0xff]
        %v540 = vld [vmem:[%s3 + $0x100] sm:$0xff]
        %v541 = vld [vmem:[%s3 + $0x108] sm:$0xff]
        %v542 = vld [vmem:[%s3 + $0x110] sm:$0xff]
        %v543 = vld [vmem:[%s3 + $0x118] sm:$0xff]
        %v544 = vld [vmem:[%s3 + $0x120] sm:$0xff]
        %v545 = vld [vmem:[%s3 + $0x128] sm:$0xff]
        %v546 = vld [vmem:[%s3 + $0x130] sm:$0xff]
        %v547 = vld [vmem:[%s3 + $0x138] sm:$0xff]
        %v548 = vld [vmem:[%s3 + $0x140] sm:$0xff]
        %v549 = vld [vmem:[%s3 + $0x148] sm:$0xff]
        %v550 = vld [vmem:[%s3 + $0x150] sm:$0xff]
        %v551 = vld [vmem:[%s3 + $0x158] sm:$0xff]
        %v552 = vld [vmem:[%s3 + $0x160] sm:$0xff]
        %v553 = vld [vmem:[%s3 + $0x168] sm:$0xff]
        %v554 = vld [vmem:[%s3 + $0x170] sm:$0xff]
        %v555 = vld [vmem:[%s3 + $0x178] sm:$0xff]
        %v556 = vld [vmem:[%s3 + $0x180] sm:$0xff]
        %v557 = vld [vmem:[%s3 + $0x188] sm:$0xff]
        %v558 = vld [vmem:[%s3 + $0x190] sm:$0xff]
        %v559 = vld [vmem:[%s3 + $0x198] sm:$0xff]
        %v560 = vld [vmem:[%s3 + $0x1a0] sm:$0xff]
        %v561 = vld [vmem:[%s3 + $0x1a8] sm:$0xff]
        %v562 = vld [vmem:[%s3 + $0x1b0] sm:$0xff]
        %v563 = vld [vmem:[%s3 + $0x1b8] sm:$0xff]
        %v564 = vld [vmem:[%s3 + $0x1c0] sm:$0xff]
        %v565 = vld [vmem:[%s3 + $0x1c8] sm:$0xff]
        %v566 = vld [vmem:[%s3 + $0x1d0] sm:$0xff]
        %v567 = vld [vmem:[%s3 + $0x1d8] sm:$0xff]
        %v568 = vld [vmem:[%s3 + $0x1e0] sm:$0xff]
        %v569 = vld [vmem:[%s3 + $0x1e8] sm:$0xff]
        %v570 = vld [vmem:[%s3 + $0x1f0] sm:$0xff]
        %v571 = vld [vmem:[%s3 + $0x1f8] sm:$0xff]
        %v572 = vld [vmem:[%s4] sm:$0xf]
        %v574 = vlaneseq
        %v575 = vshrl.u32 %v574, 7
        %v576 = vsub.s32 0, %v575
        %v577 = vrot.slane %v572, %v576
        %v578 = vlaneseq
        %v579 = vshrl.u32 %v578, 7
        %v580 = vsub.s32 1, %v579
        %v581 = vrot.slane %v572, %v580
        %v582 = vlaneseq
        %v583 = vshrl.u32 %v582, 7
        %v584 = vsub.s32 2, %v583
        %v585 = vrot.slane %v572, %v584
        %v586 = vlaneseq
        %v587 = vshrl.u32 %v586, 7
        %v588 = vsub.s32 3, %v587
        %v589 = vrot.slane %v572, %v588
        %v658 = vunpack.c.l.b16 %v508
        %v659 = vunpack.c.h.b16 %v508
        %v660 = vunpack.c.l.b16 %v509
        %v661 = vunpack.c.h.b16 %v509
        %v662 = vunpack.c.l.b16 %v510
        %v663 = vunpack.c.h.b16 %v510
        %v664 = vunpack.c.l.b16 %v511
        %v665 = vunpack.c.h.b16 %v511
        %v666 = vunpack.c.l.b16 %v512
        %v667 = vunpack.c.h.b16 %v512
        %v668 = vunpack.c.l.b16 %v513
        %v669 = vunpack.c.h.b16 %v513
        %v670 = vunpack.c.l.b16 %v514
        %v671 = vunpack.c.h.b16 %v514
        %v672 = vunpack.c.l.b16 %v515
        %v673 = vunpack.c.h.b16 %v515
        %v674 = vunpack.c.l.b16 %v516
        %v675 = vunpack.c.h.b16 %v516
        %v676 = vunpack.c.l.b16 %v517
        %v677 = vunpack.c.h.b16 %v517
        %v678 = vunpack.c.l.b16 %v518
        %v679 = vunpack.c.h.b16 %v518
        %v680 = vunpack.c.l.b16 %v519
        %v681 = vunpack.c.h.b16 %v519
        %v682 = vunpack.c.l.b16 %v520
        %v683 = vunpack.c.h.b16 %v520
        %v684 = vunpack.c.l.b16 %v521
        %v685 = vunpack.c.h.b16 %v521
        %v686 = vunpack.c.l.b16 %v522
        %v687 = vunpack.c.h.b16 %v522
        %v688 = vunpack.c.l.b16 %v523
        %v689 = vunpack.c.h.b16 %v523
        %v690 = vunpack.c.l.b16 %v524
        %v691 = vunpack.c.h.b16 %v524
        %v692 = vunpack.c.l.b16 %v525
        %v693 = vunpack.c.h.b16 %v525
        %v694 = vunpack.c.l.b16 %v526
        %v695 = vunpack.c.h.b16 %v526
        %v696 = vunpack.c.l.b16 %v527
        %v697 = vunpack.c.h.b16 %v527
        %v698 = vunpack.c.l.b16 %v528
        %v699 = vunpack.c.h.b16 %v528
        %v700 = vunpack.c.l.b16 %v529
        %v701 = vunpack.c.h.b16 %v529
        %v702 = vunpack.c.l.b16 %v530
        %v703 = vunpack.c.h.b16 %v530
        %v704 = vunpack.c.l.b16 %v531
        %v705 = vunpack.c.h.b16 %v531
        %v706 = vunpack.c.l.b16 %v532
        %v707 = vunpack.c.h.b16 %v532
        %v708 = vunpack.c.l.b16 %v533
        %v709 = vunpack.c.h.b16 %v533
        %v710 = vunpack.c.l.b16 %v534
        %v711 = vunpack.c.h.b16 %v534
        %v712 = vunpack.c.l.b16 %v535
        %v713 = vunpack.c.h.b16 %v535
        %v714 = vunpack.c.l.b16 %v536
        %v715 = vunpack.c.h.b16 %v536
        %v716 = vunpack.c.l.b16 %v537
        %v717 = vunpack.c.h.b16 %v537
        %v718 = vunpack.c.l.b16 %v538
        %v719 = vunpack.c.h.b16 %v538
        %v720 = vunpack.c.l.b16 %v539
        %v721 = vunpack.c.h.b16 %v539
        %v722 = vunpack.c.l.b16 %v540
        %v723 = vunpack.c.h.b16 %v540
        %v724 = vunpack.c.l.b16 %v541
        %v725 = vunpack.c.h.b16 %v541
        %v726 = vunpack.c.l.b16 %v542
        %v727 = vunpack.c.h.b16 %v542
        %v728 = vunpack.c.l.b16 %v543
        %v729 = vunpack.c.h.b16 %v543
        %v730 = vunpack.c.l.b16 %v544
        %v731 = vunpack.c.h.b16 %v544
        %v732 = vunpack.c.l.b16 %v545
        %v733 = vunpack.c.h.b16 %v545
        %v734 = vunpack.c.l.b16 %v546
        %v735 = vunpack.c.h.b16 %v546
        %v736 = vunpack.c.l.b16 %v547
        %v737 = vunpack.c.h.b16 %v547
        %v738 = vunpack.c.l.b16 %v548
        %v739 = vunpack.c.h.b16 %v548
        %v740 = vunpack.c.l.b16 %v549
        %v741 = vunpack.c.h.b16 %v549
        %v742 = vunpack.c.l.b16 %v550
        %v743 = vunpack.c.h.b16 %v550
        %v744 = vunpack.c.l.b16 %v551
        %v745 = vunpack.c.h.b16 %v551
        %v746 = vunpack.c.l.b16 %v552
        %v747 = vunpack.c.h.b16 %v552
        %v748 = vunpack.c.l.b16 %v553
        %v749 = vunpack.c.h.b16 %v553
        %v750 = vunpack.c.l.b16 %v554
        %v751 = vunpack.c.h.b16 %v554
        %v752 = vunpack.c.l.b16 %v555
        %v753 = vunpack.c.h.b16 %v555
        %v754 = vunpack.c.l.b16 %v556
        %v755 = vunpack.c.h.b16 %v556
        %v756 = vunpack.c.l.b16 %v557
        %v757 = vunpack.c.h.b16 %v557
        %v758 = vunpack.c.l.b16 %v558
        %v759 = vunpack.c.h.b16 %v558
        %v760 = vunpack.c.l.b16 %v559
        %v761 = vunpack.c.h.b16 %v559
        %v762 = vunpack.c.l.b16 %v560
        %v763 = vunpack.c.h.b16 %v560
        %v764 = vunpack.c.l.b16 %v561
        %v765 = vunpack.c.h.b16 %v561
        %v766 = vunpack.c.l.b16 %v562
        %v767 = vunpack.c.h.b16 %v562
        %v768 = vunpack.c.l.b16 %v563
        %v769 = vunpack.c.h.b16 %v563
        %v770 = vunpack.c.l.b16 %v564
        %v771 = vunpack.c.h.b16 %v564
        %v772 = vunpack.c.l.b16 %v565
        %v773 = vunpack.c.h.b16 %v565
        %v774 = vunpack.c.l.b16 %v566
        %v775 = vunpack.c.h.b16 %v566
        %v776 = vunpack.c.l.b16 %v567
        %v777 = vunpack.c.h.b16 %v567
        %v778 = vunpack.c.l.b16 %v568
        %v779 = vunpack.c.h.b16 %v568
        %v780 = vunpack.c.l.b16 %v569
        %v781 = vunpack.c.h.b16 %v569
        %v782 = vunpack.c.l.b16 %v570
        %v783 = vunpack.c.h.b16 %v570
        %v784 = vunpack.c.l.b16 %v571
        %v785 = vunpack.c.h.b16 %v571
        %v786 = vpack.c.b16 %v662, %v658
        %v787 = vpack.c.b16 %v663, %v659
        %v788 = vpack.c.b16 %v664, %v660
        %v789 = vpack.c.b16 %v665, %v661
        %v790 = vpack.c.b16 %v670, %v666
        %v791 = vpack.c.b16 %v671, %v667
        %v792 = vpack.c.b16 %v672, %v668
        %v793 = vpack.c.b16 %v673, %v669
        %v794 = vpack.c.b16 %v678, %v674
        %v795 = vpack.c.b16 %v679, %v675
        %v796 = vpack.c.b16 %v680, %v676
        %v797 = vpack.c.b16 %v681, %v677
        %v798 = vpack.c.b16 %v686, %v682
        %v799 = vpack.c.b16 %v687, %v683
        %v800 = vpack.c.b16 %v688, %v684
        %v801 = vpack.c.b16 %v689, %v685
        %v802 = vpack.c.b16 %v694, %v690
        %v803 = vpack.c.b16 %v695, %v691
        %v804 = vpack.c.b16 %v696, %v692
        %v805 = vpack.c.b16 %v697, %v693
        %v806 = vpack.c.b16 %v702, %v698
        %v807 = vpack.c.b16 %v703, %v699
        %v808 = vpack.c.b16 %v704, %v700
        %v809 = vpack.c.b16 %v705, %v701
        %v810 = vpack.c.b16 %v710, %v706
        %v811 = vpack.c.b16 %v711, %v707
        %v812 = vpack.c.b16 %v712, %v708
        %v813 = vpack.c.b16 %v713, %v709
        %v814 = vpack.c.b16 %v718, %v714
        %v815 = vpack.c.b16 %v719, %v715
        %v816 = vpack.c.b16 %v720, %v716
        %v817 = vpack.c.b16 %v721, %v717
        %v818 = vpack.c.b16 %v726, %v722
        %v819 = vpack.c.b16 %v727, %v723
        %v820 = vpack.c.b16 %v728, %v724
        %v821 = vpack.c.b16 %v729, %v725
        %v822 = vpack.c.b16 %v734, %v730
        %v823 = vpack.c.b16 %v735, %v731
        %v824 = vpack.c.b16 %v736, %v732
        %v825 = vpack.c.b16 %v737, %v733
        %v826 = vpack.c.b16 %v742, %v738
        %v827 = vpack.c.b16 %v743, %v739
        %v828 = vpack.c.b16 %v744, %v740
        %v829 = vpack.c.b16 %v745, %v741
        %v830 = vpack.c.b16 %v750, %v746
        %v831 = vpack.c.b16 %v751, %v747
        %v832 = vpack.c.b16 %v752, %v748
        %v833 = vpack.c.b16 %v753, %v749
        %v834 = vpack.c.b16 %v758, %v754
        %v835 = vpack.c.b16 %v759, %v755
        %v836 = vpack.c.b16 %v760, %v756
        %v837 = vpack.c.b16 %v761, %v757
        %v838 = vpack.c.b16 %v766, %v762
        %v839 = vpack.c.b16 %v767, %v763
        %v840 = vpack.c.b16 %v768, %v764
        %v841 = vpack.c.b16 %v769, %v765
        %v842 = vpack.c.b16 %v774, %v770
        %v843 = vpack.c.b16 %v775, %v771
        %v844 = vpack.c.b16 %v776, %v772
        %v845 = vpack.c.b16 %v777, %v773
        %v846 = vpack.c.b16 %v782, %v778
        %v847 = vpack.c.b16 %v783, %v779
        %v848 = vpack.c.b16 %v784, %v780
        %v849 = vpack.c.b16 %v785, %v781
        %914 = vmatprep.subr.bf16.mxu0 %v787
        %915 = vmatpush1.bf16.msra.mxu0 %v786
        %916 = vmatprep.subr.bf16.mxu0 %v791
        %917 = vmatpush1.bf16.msra.mxu0 %v790
        %918 = vmatprep.subr.bf16.mxu0 %v795
        %919 = vmatpush1.bf16.msra.mxu0 %v794
        %920 = vmatprep.subr.bf16.mxu0 %v799
        %921 = vmatpush1.bf16.msra.mxu0 %v798
        %922 = vmatprep.subr.bf16.mxu0 %v803
        %923 = vmatpush1.bf16.msra.mxu0 %v802
        %924 = vmatprep.subr.bf16.mxu0 %v807
        %925 = vmatpush1.bf16.msra.mxu0 %v806
        %926 = vmatprep.subr.bf16.mxu0 %v811
        %927 = vmatpush1.bf16.msra.mxu0 %v810
        %928 = vmatprep.subr.bf16.mxu0 %v815
        %929 = vmatpush1.bf16.msra.mxu0 %v814
        %930 = vmatprep.subr.bf16.mxu0 %v819
        %931 = vmatpush1.bf16.msra.mxu0 %v818
        %932 = vmatprep.subr.bf16.mxu0 %v823
        %933 = vmatpush1.bf16.msra.mxu0 %v822
        %934 = vmatprep.subr.bf16.mxu0 %v827
        %935 = vmatpush1.bf16.msra.mxu0 %v826
        %936 = vmatprep.subr.bf16.mxu0 %v831
        %937 = vmatpush1.bf16.msra.mxu0 %v830
        %938 = vmatprep.subr.bf16.mxu0 %v835
        %939 = vmatpush1.bf16.msra.mxu0 %v834
        %940 = vmatprep.subr.bf16.mxu0 %v839
        %941 = vmatpush1.bf16.msra.mxu0 %v838
        %942 = vmatprep.subr.bf16.mxu0 %v843
        %943 = vmatpush1.bf16.msra.mxu0 %v842
        %944 = vmatprep.subr.bf16.mxu0 %v847
        %945 = vmatpush1.bf16.msra.mxu0 %v846
        %946 = vmatprep.mubr.bf16.mxu0 %v507
        %947 = vmatmul.mubr.bf16.gmra.mrb[0].mxu0 %v506
        %v948 = vpop.f32.mrb[0].mxu0
        %v949 = vadd.f32 %v577, %v948
        %v950 = vpop.f32.mrb[0].mxu0
        %v951 = vadd.f32 %v581, %v950
        %v952 = vpop.f32.mrb[0].mxu0
        %v953 = vadd.f32 %v577, %v952
        %v954 = vpop.f32.mrb[0].mxu0
        %v955 = vadd.f32 %v581, %v954
        %956 = vdwg.mxu0
        %957 = vmatprep.subr.bf16.mxu0 %v789
        %958 = vmatpush1.bf16.msra.mxu0 %v788
        %959 = vmatprep.subr.bf16.mxu0 %v793
        %960 = vmatpush1.bf16.msra.mxu0 %v792
        %961 = vmatprep.subr.bf16.mxu0 %v797
        %962 = vmatpush1.bf16.msra.mxu0 %v796
        %963 = vmatprep.subr.bf16.mxu0 %v801
        %964 = vmatpush1.bf16.msra.mxu0 %v800
        %965 = vmatprep.subr.bf16.mxu0 %v805
        %966 = vmatpush1.bf16.msra.mxu0 %v804
        %967 = vmatprep.subr.bf16.mxu0 %v809
        %968 = vmatpush1.bf16.msra.mxu0 %v808
        %969 = vmatprep.subr.bf16.mxu0 %v813
        %970 = vmatpush1.bf16.msra.mxu0 %v812
        %971 = vmatprep.subr.bf16.mxu0 %v817
        %972 = vmatpush1.bf16.msra.mxu0 %v816
        %973 = vmatprep.subr.bf16.mxu0 %v821
        %974 = vmatpush1.bf16.msra.mxu0 %v820
        %975 = vmatprep.subr.bf16.mxu0 %v825
        %976 = vmatpush1.bf16.msra.mxu0 %v824
        %977 = vmatprep.subr.bf16.mxu0 %v829
        %978 = vmatpush1.bf16.msra.mxu0 %v828
        %979 = vmatprep.subr.bf16.mxu0 %v833
        %980 = vmatpush1.bf16.msra.mxu0 %v832
        %981 = vmatprep.subr.bf16.mxu0 %v837
        %982 = vmatpush1.bf16.msra.mxu0 %v836
        %983 = vmatprep.subr.bf16.mxu0 %v841
        %984 = vmatpush1.bf16.msra.mxu0 %v840
        %985 = vmatprep.subr.bf16.mxu0 %v845
        %986 = vmatpush1.bf16.msra.mxu0 %v844
        %987 = vmatprep.subr.bf16.mxu0 %v849
        %988 = vmatpush1.bf16.msra.mxu0 %v848
        %989 = vmatprep.mubr.bf16.mxu0 %v507
        %990 = vmatmul.mubr.bf16.gmra.mrb[0].mxu0 %v506
        %v991 = vpop.f32.mrb[0].mxu0
        %v992 = vadd.f32 %v585, %v991
        %v993 = vpop.f32.mrb[0].mxu0
        %v994 = vadd.f32 %v589, %v993
        %v995 = vpop.f32.mrb[0].mxu0
        %v996 = vadd.f32 %v585, %v995
        %v997 = vpop.f32.mrb[0].mxu0
        %v998 = vadd.f32 %v589, %v997
        %999 = vdwg.mxu0
        %vm1000 = vcmp.gt.f32.partialorder %v949, 0.0
        %vm1001 = vcmp.gt.f32.partialorder %v951, 0.0
        %vm1002 = vcmp.gt.f32.partialorder %v992, 0.0
        %vm1003 = vcmp.gt.f32.partialorder %v994, 0.0
        %vm1004 = vcmp.gt.f32.partialorder %v953, 0.0
        %vm1005 = vcmp.gt.f32.partialorder %v955, 0.0
        %vm1006 = vcmp.gt.f32.partialorder %v996, 0.0
        %vm1007 = vcmp.gt.f32.partialorder %v998, 0.0
        %v1008 = vmul.f32 %v949, 0.2
        %v1009 = vmul.f32 %v951, 0.2
        %v1010 = vmul.f32 %v992, 0.2
        %v1011 = vmul.f32 %v994, 0.2
        %v1012 = vmul.f32 %v953, 0.2
        %v1013 = vmul.f32 %v955, 0.2
        %v1014 = vmul.f32 %v996, 0.2
        %v1015 = vmul.f32 %v998, 0.2
        %v1016 = vsel %vm1000, %v949, %v1008
        %v1017 = vsel %vm1001, %v951, %v1009
        %v1018 = vsel %vm1002, %v992, %v1010
        %v1019 = vsel %vm1003, %v994, %v1011
        %v1020 = vsel %vm1004, %v953, %v1012
        %v1021 = vsel %vm1005, %v955, %v1013
        %v1022 = vsel %vm1006, %v996, %v1014
        %v1023 = vsel %vm1007, %v998, %v1015
        %v1024 = vpack.c.bf16 %v1020, %v1016
        %v1025 = vpack.c.bf16 %v1021, %v1017
        %v1026 = vpack.c.bf16 %v1022, %v1018
        %v1027 = vpack.c.bf16 %v1023, %v1019
        %v1028 = vld [vmem:[%s5] sm:$0xff]
        %v1029 = vld [vmem:[%s5 + $0x8] sm:$0xff]
        %v1030 = vld [vmem:[%s5 + $0x10] sm:$0xff]
        %v1031 = vld [vmem:[%s5 + $0x18] sm:$0xff]
        %v1032 = vld [vmem:[%s5 + $0x20] sm:$0xff]
        %v1033 = vld [vmem:[%s5 + $0x28] sm:$0xff]
        %v1034 = vld [vmem:[%s5 + $0x30] sm:$0xff]
        %v1035 = vld [vmem:[%s5 + $0x38] sm:$0xff]
        %v1036 = vld [vmem:[%s5 + $0x40] sm:$0xff]
        %v1037 = vld [vmem:[%s5 + $0x48] sm:$0xff]
        %v1038 = vld [vmem:[%s5 + $0x50] sm:$0xff]
        %v1039 = vld [vmem:[%s5 + $0x58] sm:$0xff]
        %v1040 = vld [vmem:[%s5 + $0x60] sm:$0xff]
        %v1041 = vld [vmem:[%s5 + $0x68] sm:$0xff]
        %v1042 = vld [vmem:[%s5 + $0x70] sm:$0xff]
        %v1043 = vld [vmem:[%s5 + $0x78] sm:$0xff]
        %v1044 = vld [vmem:[%s5 + $0x80] sm:$0xff]
        %v1045 = vld [vmem:[%s5 + $0x88] sm:$0xff]
        %v1046 = vld [vmem:[%s5 + $0x90] sm:$0xff]
        %v1047 = vld [vmem:[%s5 + $0x98] sm:$0xff]
        %v1048 = vld [vmem:[%s5 + $0xa0] sm:$0xff]
        %v1049 = vld [vmem:[%s5 + $0xa8] sm:$0xff]
        %v1050 = vld [vmem:[%s5 + $0xb0] sm:$0xff]
        %v1051 = vld [vmem:[%s5 + $0xb8] sm:$0xff]
        %v1052 = vld [vmem:[%s5 + $0xc0] sm:$0xff]
        %v1053 = vld [vmem:[%s5 + $0xc8] sm:$0xff]
        %v1054 = vld [vmem:[%s5 + $0xd0] sm:$0xff]
        %v1055 = vld [vmem:[%s5 + $0xd8] sm:$0xff]
        %v1056 = vld [vmem:[%s5 + $0xe0] sm:$0xff]
        %v1057 = vld [vmem:[%s5 + $0xe8] sm:$0xff]
        %v1058 = vld [vmem:[%s5 + $0xf0] sm:$0xff]
        %v1059 = vld [vmem:[%s5 + $0xf8] sm:$0xff]
        %v1060 = vld [vmem:[%s5 + $0x100] sm:$0xff]
        %v1061 = vld [vmem:[%s5 + $0x108] sm:$0xff]
        %v1062 = vld [vmem:[%s5 + $0x110] sm:$0xff]
        %v1063 = vld [vmem:[%s5 + $0x118] sm:$0xff]
        %v1064 = vld [vmem:[%s5 + $0x120] sm:$0xff]
        %v1065 = vld [vmem:[%s5 + $0x128] sm:$0xff]
        %v1066 = vld [vmem:[%s5 + $0x130] sm:$0xff]
        %v1067 = vld [vmem:[%s5 + $0x138] sm:$0xff]
        %v1068 = vld [vmem:[%s5 + $0x140] sm:$0xff]
        %v1069 = vld [vmem:[%s5 + $0x148] sm:$0xff]
        %v1070 = vld [vmem:[%s5 + $0x150] sm:$0xff]
        %v1071 = vld [vmem:[%s5 + $0x158] sm:$0xff]
        %v1072 = vld [vmem:[%s5 + $0x160] sm:$0xff]
        %v1073 = vld [vmem:[%s5 + $0x168] sm:$0xff]
        %v1074 = vld [vmem:[%s5 + $0x170] sm:$0xff]
        %v1075 = vld [vmem:[%s5 + $0x178] sm:$0xff]
        %v1076 = vld [vmem:[%s5 + $0x180] sm:$0xff]
        %v1077 = vld [vmem:[%s5 + $0x188] sm:$0xff]
        %v1078 = vld [vmem:[%s5 + $0x190] sm:$0xff]
        %v1079 = vld [vmem:[%s5 + $0x198] sm:$0xff]
        %v1080 = vld [vmem:[%s5 + $0x1a0] sm:$0xff]
        %v1081 = vld [vmem:[%s5 + $0x1a8] sm:$0xff]
        %v1082 = vld [vmem:[%s5 + $0x1b0] sm:$0xff]
        %v1083 = vld [vmem:[%s5 + $0x1b8] sm:$0xff]
        %v1084 = vld [vmem:[%s5 + $0x1c0] sm:$0xff]
        %v1085 = vld [vmem:[%s5 + $0x1c8] sm:$0xff]
        %v1086 = vld [vmem:[%s5 + $0x1d0] sm:$0xff]
        %v1087 = vld [vmem:[%s5 + $0x1d8] sm:$0xff]
        %v1088 = vld [vmem:[%s5 + $0x1e0] sm:$0xff]
        %v1089 = vld [vmem:[%s5 + $0x1e8] sm:$0xff]
        %v1090 = vld [vmem:[%s5 + $0x1f0] sm:$0xff]
        %v1091 = vld [vmem:[%s5 + $0x1f8] sm:$0xff]
        %v1092 = vld [vmem:[%s5 + $0x200] sm:$0xff]
        %v1093 = vld [vmem:[%s5 + $0x208] sm:$0xff]
        %v1094 = vld [vmem:[%s5 + $0x210] sm:$0xff]
        %v1095 = vld [vmem:[%s5 + $0x218] sm:$0xff]
        %v1096 = vld [vmem:[%s5 + $0x220] sm:$0xff]
        %v1097 = vld [vmem:[%s5 + $0x228] sm:$0xff]
        %v1098 = vld [vmem:[%s5 + $0x230] sm:$0xff]
        %v1099 = vld [vmem:[%s5 + $0x238] sm:$0xff]
        %v1100 = vld [vmem:[%s5 + $0x240] sm:$0xff]
        %v1101 = vld [vmem:[%s5 + $0x248] sm:$0xff]
        %v1102 = vld [vmem:[%s5 + $0x250] sm:$0xff]
        %v1103 = vld [vmem:[%s5 + $0x258] sm:$0xff]
        %v1104 = vld [vmem:[%s5 + $0x260] sm:$0xff]
        %v1105 = vld [vmem:[%s5 + $0x268] sm:$0xff]
        %v1106 = vld [vmem:[%s5 + $0x270] sm:$0xff]
        %v1107 = vld [vmem:[%s5 + $0x278] sm:$0xff]
        %v1108 = vld [vmem:[%s5 + $0x280] sm:$0xff]
        %v1109 = vld [vmem:[%s5 + $0x288] sm:$0xff]
        %v1110 = vld [vmem:[%s5 + $0x290] sm:$0xff]
        %v1111 = vld [vmem:[%s5 + $0x298] sm:$0xff]
        %v1112 = vld [vmem:[%s5 + $0x2a0] sm:$0xff]
        %v1113 = vld [vmem:[%s5 + $0x2a8] sm:$0xff]
        %v1114 = vld [vmem:[%s5 + $0x2b0] sm:$0xff]
        %v1115 = vld [vmem:[%s5 + $0x2b8] sm:$0xff]
        %v1116 = vld [vmem:[%s5 + $0x2c0] sm:$0xff]
        %v1117 = vld [vmem:[%s5 + $0x2c8] sm:$0xff]
        %v1118 = vld [vmem:[%s5 + $0x2d0] sm:$0xff]
        %v1119 = vld [vmem:[%s5 + $0x2d8] sm:$0xff]
        %v1120 = vld [vmem:[%s5 + $0x2e0] sm:$0xff]
        %v1121 = vld [vmem:[%s5 + $0x2e8] sm:$0xff]
        %v1122 = vld [vmem:[%s5 + $0x2f0] sm:$0xff]
        %v1123 = vld [vmem:[%s5 + $0x2f8] sm:$0xff]
        %v1124 = vld [vmem:[%s5 + $0x300] sm:$0xff]
        %v1125 = vld [vmem:[%s5 + $0x308] sm:$0xff]
        %v1126 = vld [vmem:[%s5 + $0x310] sm:$0xff]
        %v1127 = vld [vmem:[%s5 + $0x318] sm:$0xff]
        %v1128 = vld [vmem:[%s5 + $0x320] sm:$0xff]
        %v1129 = vld [vmem:[%s5 + $0x328] sm:$0xff]
        %v1130 = vld [vmem:[%s5 + $0x330] sm:$0xff]
        %v1131 = vld [vmem:[%s5 + $0x338] sm:$0xff]
        %v1132 = vld [vmem:[%s5 + $0x340] sm:$0xff]
        %v1133 = vld [vmem:[%s5 + $0x348] sm:$0xff]
        %v1134 = vld [vmem:[%s5 + $0x350] sm:$0xff]
        %v1135 = vld [vmem:[%s5 + $0x358] sm:$0xff]
        %v1136 = vld [vmem:[%s5 + $0x360] sm:$0xff]
        %v1137 = vld [vmem:[%s5 + $0x368] sm:$0xff]
        %v1138 = vld [vmem:[%s5 + $0x370] sm:$0xff]
        %v1139 = vld [vmem:[%s5 + $0x378] sm:$0xff]
        %v1140 = vld [vmem:[%s5 + $0x380] sm:$0xff]
        %v1141 = vld [vmem:[%s5 + $0x388] sm:$0xff]
        %v1142 = vld [vmem:[%s5 + $0x390] sm:$0xff]
        %v1143 = vld [vmem:[%s5 + $0x398] sm:$0xff]
        %v1144 = vld [vmem:[%s5 + $0x3a0] sm:$0xff]
        %v1145 = vld [vmem:[%s5 + $0x3a8] sm:$0xff]
        %v1146 = vld [vmem:[%s5 + $0x3b0] sm:$0xff]
        %v1147 = vld [vmem:[%s5 + $0x3b8] sm:$0xff]
        %v1148 = vld [vmem:[%s5 + $0x3c0] sm:$0xff]
        %v1149 = vld [vmem:[%s5 + $0x3c8] sm:$0xff]
        %v1150 = vld [vmem:[%s5 + $0x3d0] sm:$0xff]
        %v1151 = vld [vmem:[%s5 + $0x3d8] sm:$0xff]
        %v1152 = vld [vmem:[%s5 + $0x3e0] sm:$0xff]
        %v1153 = vld [vmem:[%s5 + $0x3e8] sm:$0xff]
        %v1154 = vld [vmem:[%s5 + $0x3f0] sm:$0xff]
        %v1155 = vld [vmem:[%s5 + $0x3f8] sm:$0xff]
        %v1156 = vld [vmem:[%s5 + $0x400] sm:$0xff]
        %v1157 = vld [vmem:[%s5 + $0x408] sm:$0xff]
        %v1158 = vld [vmem:[%s5 + $0x410] sm:$0xff]
        %v1159 = vld [vmem:[%s5 + $0x418] sm:$0xff]
        %v1160 = vld [vmem:[%s5 + $0x420] sm:$0xff]
        %v1161 = vld [vmem:[%s5 + $0x428] sm:$0xff]
        %v1162 = vld [vmem:[%s5 + $0x430] sm:$0xff]
        %v1163 = vld [vmem:[%s5 + $0x438] sm:$0xff]
        %v1164 = vld [vmem:[%s5 + $0x440] sm:$0xff]
        %v1165 = vld [vmem:[%s5 + $0x448] sm:$0xff]
        %v1166 = vld [vmem:[%s5 + $0x450] sm:$0xff]
        %v1167 = vld [vmem:[%s5 + $0x458] sm:$0xff]
        %v1168 = vld [vmem:[%s5 + $0x460] sm:$0xff]
        %v1169 = vld [vmem:[%s5 + $0x468] sm:$0xff]
        %v1170 = vld [vmem:[%s5 + $0x470] sm:$0xff]
        %v1171 = vld [vmem:[%s5 + $0x478] sm:$0xff]
        %v1172 = vld [vmem:[%s5 + $0x480] sm:$0xff]
        %v1173 = vld [vmem:[%s5 + $0x488] sm:$0xff]
        %v1174 = vld [vmem:[%s5 + $0x490] sm:$0xff]
        %v1175 = vld [vmem:[%s5 + $0x498] sm:$0xff]
        %v1176 = vld [vmem:[%s5 + $0x4a0] sm:$0xff]
        %v1177 = vld [vmem:[%s5 + $0x4a8] sm:$0xff]
        %v1178 = vld [vmem:[%s5 + $0x4b0] sm:$0xff]
        %v1179 = vld [vmem:[%s5 + $0x4b8] sm:$0xff]
        %v1180 = vld [vmem:[%s5 + $0x4c0] sm:$0xff]
        %v1181 = vld [vmem:[%s5 + $0x4c8] sm:$0xff]
        %v1182 = vld [vmem:[%s5 + $0x4d0] sm:$0xff]
        %v1183 = vld [vmem:[%s5 + $0x4d8] sm:$0xff]
        %v1184 = vld [vmem:[%s5 + $0x4e0] sm:$0xff]
        %v1185 = vld [vmem:[%s5 + $0x4e8] sm:$0xff]
        %v1186 = vld [vmem:[%s5 + $0x4f0] sm:$0xff]
        %v1187 = vld [vmem:[%s5 + $0x4f8] sm:$0xff]
        %v1188 = vld [vmem:[%s5 + $0x500] sm:$0xff]
        %v1189 = vld [vmem:[%s5 + $0x508] sm:$0xff]
        %v1190 = vld [vmem:[%s5 + $0x510] sm:$0xff]
        %v1191 = vld [vmem:[%s5 + $0x518] sm:$0xff]
        %v1192 = vld [vmem:[%s5 + $0x520] sm:$0xff]
        %v1193 = vld [vmem:[%s5 + $0x528] sm:$0xff]
        %v1194 = vld [vmem:[%s5 + $0x530] sm:$0xff]
        %v1195 = vld [vmem:[%s5 + $0x538] sm:$0xff]
        %v1196 = vld [vmem:[%s5 + $0x540] sm:$0xff]
        %v1197 = vld [vmem:[%s5 + $0x548] sm:$0xff]
        %v1198 = vld [vmem:[%s5 + $0x550] sm:$0xff]
        %v1199 = vld [vmem:[%s5 + $0x558] sm:$0xff]
        %v1200 = vld [vmem:[%s5 + $0x560] sm:$0xff]
        %v1201 = vld [vmem:[%s5 + $0x568] sm:$0xff]
        %v1202 = vld [vmem:[%s5 + $0x570] sm:$0xff]
        %v1203 = vld [vmem:[%s5 + $0x578] sm:$0xff]
        %v1204 = vld [vmem:[%s5 + $0x580] sm:$0xff]
        %v1205 = vld [vmem:[%s5 + $0x588] sm:$0xff]
        %v1206 = vld [vmem:[%s5 + $0x590] sm:$0xff]
        %v1207 = vld [vmem:[%s5 + $0x598] sm:$0xff]
        %v1208 = vld [vmem:[%s5 + $0x5a0] sm:$0xff]
        %v1209 = vld [vmem:[%s5 + $0x5a8] sm:$0xff]
        %v1210 = vld [vmem:[%s5 + $0x5b0] sm:$0xff]
        %v1211 = vld [vmem:[%s5 + $0x5b8] sm:$0xff]
        %v1212 = vld [vmem:[%s5 + $0x5c0] sm:$0xff]
        %v1213 = vld [vmem:[%s5 + $0x5c8] sm:$0xff]
        %v1214 = vld [vmem:[%s5 + $0x5d0] sm:$0xff]
        %v1215 = vld [vmem:[%s5 + $0x5d8] sm:$0xff]
        %v1216 = vld [vmem:[%s5 + $0x5e0] sm:$0xff]
        %v1217 = vld [vmem:[%s5 + $0x5e8] sm:$0xff]
        %v1218 = vld [vmem:[%s5 + $0x5f0] sm:$0xff]
        %v1219 = vld [vmem:[%s5 + $0x5f8] sm:$0xff]
        %v1220 = vld [vmem:[%s5 + $0x600] sm:$0xff]
        %v1221 = vld [vmem:[%s5 + $0x608] sm:$0xff]
        %v1222 = vld [vmem:[%s5 + $0x610] sm:$0xff]
        %v1223 = vld [vmem:[%s5 + $0x618] sm:$0xff]
        %v1224 = vld [vmem:[%s5 + $0x620] sm:$0xff]
        %v1225 = vld [vmem:[%s5 + $0x628] sm:$0xff]
        %v1226 = vld [vmem:[%s5 + $0x630] sm:$0xff]
        %v1227 = vld [vmem:[%s5 + $0x638] sm:$0xff]
        %v1228 = vld [vmem:[%s5 + $0x640] sm:$0xff]
        %v1229 = vld [vmem:[%s5 + $0x648] sm:$0xff]
        %v1230 = vld [vmem:[%s5 + $0x650] sm:$0xff]
        %v1231 = vld [vmem:[%s5 + $0x658] sm:$0xff]
        %v1232 = vld [vmem:[%s5 + $0x660] sm:$0xff]
        %v1233 = vld [vmem:[%s5 + $0x668] sm:$0xff]
        %v1234 = vld [vmem:[%s5 + $0x670] sm:$0xff]
        %v1235 = vld [vmem:[%s5 + $0x678] sm:$0xff]
        %v1236 = vld [vmem:[%s5 + $0x680] sm:$0xff]
        %v1237 = vld [vmem:[%s5 + $0x688] sm:$0xff]
        %v1238 = vld [vmem:[%s5 + $0x690] sm:$0xff]
        %v1239 = vld [vmem:[%s5 + $0x698] sm:$0xff]
        %v1240 = vld [vmem:[%s5 + $0x6a0] sm:$0xff]
        %v1241 = vld [vmem:[%s5 + $0x6a8] sm:$0xff]
        %v1242 = vld [vmem:[%s5 + $0x6b0] sm:$0xff]
        %v1243 = vld [vmem:[%s5 + $0x6b8] sm:$0xff]
        %v1244 = vld [vmem:[%s5 + $0x6c0] sm:$0xff]
        %v1245 = vld [vmem:[%s5 + $0x6c8] sm:$0xff]
        %v1246 = vld [vmem:[%s5 + $0x6d0] sm:$0xff]
        %v1247 = vld [vmem:[%s5 + $0x6d8] sm:$0xff]
        %v1248 = vld [vmem:[%s5 + $0x6e0] sm:$0xff]
        %v1249 = vld [vmem:[%s5 + $0x6e8] sm:$0xff]
        %v1250 = vld [vmem:[%s5 + $0x6f0] sm:$0xff]
        %v1251 = vld [vmem:[%s5 + $0x6f8] sm:$0xff]
        %v1252 = vld [vmem:[%s5 + $0x700] sm:$0xff]
        %v1253 = vld [vmem:[%s5 + $0x708] sm:$0xff]
        %v1254 = vld [vmem:[%s5 + $0x710] sm:$0xff]
        %v1255 = vld [vmem:[%s5 + $0x718] sm:$0xff]
        %v1256 = vld [vmem:[%s5 + $0x720] sm:$0xff]
        %v1257 = vld [vmem:[%s5 + $0x728] sm:$0xff]
        %v1258 = vld [vmem:[%s5 + $0x730] sm:$0xff]
        %v1259 = vld [vmem:[%s5 + $0x738] sm:$0xff]
        %v1260 = vld [vmem:[%s5 + $0x740] sm:$0xff]
        %v1261 = vld [vmem:[%s5 + $0x748] sm:$0xff]
        %v1262 = vld [vmem:[%s5 + $0x750] sm:$0xff]
        %v1263 = vld [vmem:[%s5 + $0x758] sm:$0xff]
        %v1264 = vld [vmem:[%s5 + $0x760] sm:$0xff]
        %v1265 = vld [vmem:[%s5 + $0x768] sm:$0xff]
        %v1266 = vld [vmem:[%s5 + $0x770] sm:$0xff]
        %v1267 = vld [vmem:[%s5 + $0x778] sm:$0xff]
        %v1268 = vld [vmem:[%s5 + $0x780] sm:$0xff]
        %v1269 = vld [vmem:[%s5 + $0x788] sm:$0xff]
        %v1270 = vld [vmem:[%s5 + $0x790] sm:$0xff]
        %v1271 = vld [vmem:[%s5 + $0x798] sm:$0xff]
        %v1272 = vld [vmem:[%s5 + $0x7a0] sm:$0xff]
        %v1273 = vld [vmem:[%s5 + $0x7a8] sm:$0xff]
        %v1274 = vld [vmem:[%s5 + $0x7b0] sm:$0xff]
        %v1275 = vld [vmem:[%s5 + $0x7b8] sm:$0xff]
        %v1276 = vld [vmem:[%s5 + $0x7c0] sm:$0xff]
        %v1277 = vld [vmem:[%s5 + $0x7c8] sm:$0xff]
        %v1278 = vld [vmem:[%s5 + $0x7d0] sm:$0xff]
        %v1279 = vld [vmem:[%s5 + $0x7d8] sm:$0xff]
        %v1280 = vld [vmem:[%s5 + $0x7e0] sm:$0xff]
        %v1281 = vld [vmem:[%s5 + $0x7e8] sm:$0xff]
        %v1282 = vld [vmem:[%s5 + $0x7f0] sm:$0xff]
        %v1283 = vld [vmem:[%s5 + $0x7f8] sm:$0xff]
        %v1284 = vld [vmem:[%s6] sm:$0xff]
        %v1286 = vlaneseq
        %v1287 = vshrl.u32 %v1286, 7
        %v1288 = vsub.s32 0, %v1287
        %v1289 = vrot.slane %v1284, %v1288
        %v1290 = vlaneseq
        %v1291 = vshrl.u32 %v1290, 7
        %v1292 = vsub.s32 1, %v1291
        %v1293 = vrot.slane %v1284, %v1292
        %v1294 = vlaneseq
        %v1295 = vshrl.u32 %v1294, 7
        %v1296 = vsub.s32 2, %v1295
        %v1297 = vrot.slane %v1284, %v1296
        %v1298 = vlaneseq
        %v1299 = vshrl.u32 %v1298, 7
        %v1300 = vsub.s32 3, %v1299
        %v1301 = vrot.slane %v1284, %v1300
        %v1302 = vlaneseq
        %v1303 = vshrl.u32 %v1302, 7
        %v1304 = vsub.s32 4, %v1303
        %v1305 = vrot.slane %v1284, %v1304
        %v1306 = vlaneseq
        %v1307 = vshrl.u32 %v1306, 7
        %v1308 = vsub.s32 5, %v1307
        %v1309 = vrot.slane %v1284, %v1308
        %v1310 = vlaneseq
        %v1311 = vshrl.u32 %v1310, 7
        %v1312 = vsub.s32 6, %v1311
        %v1313 = vrot.slane %v1284, %v1312
        %v1314 = vlaneseq
        %v1315 = vshrl.u32 %v1314, 7
        %v1316 = vsub.s32 7, %v1315
        %v1317 = vrot.slane %v1284, %v1316
        %v1582 = vunpack.c.l.b16 %v1028
        %v1583 = vunpack.c.h.b16 %v1028
        %v1584 = vunpack.c.l.b16 %v1029
        %v1585 = vunpack.c.h.b16 %v1029
        %v1586 = vunpack.c.l.b16 %v1030
        %v1587 = vunpack.c.h.b16 %v1030
        %v1588 = vunpack.c.l.b16 %v1031
        %v1589 = vunpack.c.h.b16 %v1031
        %v1590 = vunpack.c.l.b16 %v1032
        %v1591 = vunpack.c.h.b16 %v1032
        %v1592 = vunpack.c.l.b16 %v1033
        %v1593 = vunpack.c.h.b16 %v1033
        %v1594 = vunpack.c.l.b16 %v1034
        %v1595 = vunpack.c.h.b16 %v1034
        %v1596 = vunpack.c.l.b16 %v1035
        %v1597 = vunpack.c.h.b16 %v1035
        %v1598 = vunpack.c.l.b16 %v1036
        %v1599 = vunpack.c.h.b16 %v1036
        %v1600 = vunpack.c.l.b16 %v1037
        %v1601 = vunpack.c.h.b16 %v1037
        %v1602 = vunpack.c.l.b16 %v1038
        %v1603 = vunpack.c.h.b16 %v1038
        %v1604 = vunpack.c.l.b16 %v1039
        %v1605 = vunpack.c.h.b16 %v1039
        %v1606 = vunpack.c.l.b16 %v1040
        %v1607 = vunpack.c.h.b16 %v1040
        %v1608 = vunpack.c.l.b16 %v1041
        %v1609 = vunpack.c.h.b16 %v1041
        %v1610 = vunpack.c.l.b16 %v1042
        %v1611 = vunpack.c.h.b16 %v1042
        %v1612 = vunpack.c.l.b16 %v1043
        %v1613 = vunpack.c.h.b16 %v1043
        %v1614 = vunpack.c.l.b16 %v1044
        %v1615 = vunpack.c.h.b16 %v1044
        %v1616 = vunpack.c.l.b16 %v1045
        %v1617 = vunpack.c.h.b16 %v1045
        %v1618 = vunpack.c.l.b16 %v1046
        %v1619 = vunpack.c.h.b16 %v1046
        %v1620 = vunpack.c.l.b16 %v1047
        %v1621 = vunpack.c.h.b16 %v1047
        %v1622 = vunpack.c.l.b16 %v1048
        %v1623 = vunpack.c.h.b16 %v1048
        %v1624 = vunpack.c.l.b16 %v1049
        %v1625 = vunpack.c.h.b16 %v1049
        %v1626 = vunpack.c.l.b16 %v1050
        %v1627 = vunpack.c.h.b16 %v1050
        %v1628 = vunpack.c.l.b16 %v1051
        %v1629 = vunpack.c.h.b16 %v1051
        %v1630 = vunpack.c.l.b16 %v1052
        %v1631 = vunpack.c.h.b16 %v1052
        %v1632 = vunpack.c.l.b16 %v1053
        %v1633 = vunpack.c.h.b16 %v1053
        %v1634 = vunpack.c.l.b16 %v1054
        %v1635 = vunpack.c.h.b16 %v1054
        %v1636 = vunpack.c.l.b16 %v1055
        %v1637 = vunpack.c.h.b16 %v1055
        %v1638 = vunpack.c.l.b16 %v1056
        %v1639 = vunpack.c.h.b16 %v1056
        %v1640 = vunpack.c.l.b16 %v1057
        %v1641 = vunpack.c.h.b16 %v1057
        %v1642 = vunpack.c.l.b16 %v1058
        %v1643 = vunpack.c.h.b16 %v1058
        %v1644 = vunpack.c.l.b16 %v1059
        %v1645 = vunpack.c.h.b16 %v1059
        %v1646 = vunpack.c.l.b16 %v1060
        %v1647 = vunpack.c.h.b16 %v1060
        %v1648 = vunpack.c.l.b16 %v1061
        %v1649 = vunpack.c.h.b16 %v1061
        %v1650 = vunpack.c.l.b16 %v1062
        %v1651 = vunpack.c.h.b16 %v1062
        %v1652 = vunpack.c.l.b16 %v1063
        %v1653 = vunpack.c.h.b16 %v1063
        %v1654 = vunpack.c.l.b16 %v1064
        %v1655 = vunpack.c.h.b16 %v1064
        %v1656 = vunpack.c.l.b16 %v1065
        %v1657 = vunpack.c.h.b16 %v1065
        %v1658 = vunpack.c.l.b16 %v1066
        %v1659 = vunpack.c.h.b16 %v1066
        %v1660 = vunpack.c.l.b16 %v1067
        %v1661 = vunpack.c.h.b16 %v1067
        %v1662 = vunpack.c.l.b16 %v1068
        %v1663 = vunpack.c.h.b16 %v1068
        %v1664 = vunpack.c.l.b16 %v1069
        %v1665 = vunpack.c.h.b16 %v1069
        %v1666 = vunpack.c.l.b16 %v1070
        %v1667 = vunpack.c.h.b16 %v1070
        %v1668 = vunpack.c.l.b16 %v1071
        %v1669 = vunpack.c.h.b16 %v1071
        %v1670 = vunpack.c.l.b16 %v1072
        %v1671 = vunpack.c.h.b16 %v1072
        %v1672 = vunpack.c.l.b16 %v1073
        %v1673 = vunpack.c.h.b16 %v1073
        %v1674 = vunpack.c.l.b16 %v1074
        %v1675 = vunpack.c.h.b16 %v1074
        %v1676 = vunpack.c.l.b16 %v1075
        %v1677 = vunpack.c.h.b16 %v1075
        %v1678 = vunpack.c.l.b16 %v1076
        %v1679 = vunpack.c.h.b16 %v1076
        %v1680 = vunpack.c.l.b16 %v1077
        %v1681 = vunpack.c.h.b16 %v1077
        %v1682 = vunpack.c.l.b16 %v1078
        %v1683 = vunpack.c.h.b16 %v1078
        %v1684 = vunpack.c.l.b16 %v1079
        %v1685 = vunpack.c.h.b16 %v1079
        %v1686 = vunpack.c.l.b16 %v1080
        %v1687 = vunpack.c.h.b16 %v1080
        %v1688 = vunpack.c.l.b16 %v1081
        %v1689 = vunpack.c.h.b16 %v1081
        %v1690 = vunpack.c.l.b16 %v1082
        %v1691 = vunpack.c.h.b16 %v1082
        %v1692 = vunpack.c.l.b16 %v1083
        %v1693 = vunpack.c.h.b16 %v1083
        %v1694 = vunpack.c.l.b16 %v1084
        %v1695 = vunpack.c.h.b16 %v1084
        %v1696 = vunpack.c.l.b16 %v1085
        %v1697 = vunpack.c.h.b16 %v1085
        %v1698 = vunpack.c.l.b16 %v1086
        %v1699 = vunpack.c.h.b16 %v1086
        %v1700 = vunpack.c.l.b16 %v1087
        %v1701 = vunpack.c.h.b16 %v1087
        %v1702 = vunpack.c.l.b16 %v1088
        %v1703 = vunpack.c.h.b16 %v1088
        %v1704 = vunpack.c.l.b16 %v1089
        %v1705 = vunpack.c.h.b16 %v1089
        %v1706 = vunpack.c.l.b16 %v1090
        %v1707 = vunpack.c.h.b16 %v1090
        %v1708 = vunpack.c.l.b16 %v1091
        %v1709 = vunpack.c.h.b16 %v1091
        %v1710 = vunpack.c.l.b16 %v1092
        %v1711 = vunpack.c.h.b16 %v1092
        %v1712 = vunpack.c.l.b16 %v1093
        %v1713 = vunpack.c.h.b16 %v1093
        %v1714 = vunpack.c.l.b16 %v1094
        %v1715 = vunpack.c.h.b16 %v1094
        %v1716 = vunpack.c.l.b16 %v1095
        %v1717 = vunpack.c.h.b16 %v1095
        %v1718 = vunpack.c.l.b16 %v1096
        %v1719 = vunpack.c.h.b16 %v1096
        %v1720 = vunpack.c.l.b16 %v1097
        %v1721 = vunpack.c.h.b16 %v1097
        %v1722 = vunpack.c.l.b16 %v1098
        %v1723 = vunpack.c.h.b16 %v1098
        %v1724 = vunpack.c.l.b16 %v1099
        %v1725 = vunpack.c.h.b16 %v1099
        %v1726 = vunpack.c.l.b16 %v1100
        %v1727 = vunpack.c.h.b16 %v1100
        %v1728 = vunpack.c.l.b16 %v1101
        %v1729 = vunpack.c.h.b16 %v1101
        %v1730 = vunpack.c.l.b16 %v1102
        %v1731 = vunpack.c.h.b16 %v1102
        %v1732 = vunpack.c.l.b16 %v1103
        %v1733 = vunpack.c.h.b16 %v1103
        %v1734 = vunpack.c.l.b16 %v1104
        %v1735 = vunpack.c.h.b16 %v1104
        %v1736 = vunpack.c.l.b16 %v1105
        %v1737 = vunpack.c.h.b16 %v1105
        %v1738 = vunpack.c.l.b16 %v1106
        %v1739 = vunpack.c.h.b16 %v1106
        %v1740 = vunpack.c.l.b16 %v1107
        %v1741 = vunpack.c.h.b16 %v1107
        %v1742 = vunpack.c.l.b16 %v1108
        %v1743 = vunpack.c.h.b16 %v1108
        %v1744 = vunpack.c.l.b16 %v1109
        %v1745 = vunpack.c.h.b16 %v1109
        %v1746 = vunpack.c.l.b16 %v1110
        %v1747 = vunpack.c.h.b16 %v1110
        %v1748 = vunpack.c.l.b16 %v1111
        %v1749 = vunpack.c.h.b16 %v1111
        %v1750 = vunpack.c.l.b16 %v1112
        %v1751 = vunpack.c.h.b16 %v1112
        %v1752 = vunpack.c.l.b16 %v1113
        %v1753 = vunpack.c.h.b16 %v1113
        %v1754 = vunpack.c.l.b16 %v1114
        %v1755 = vunpack.c.h.b16 %v1114
        %v1756 = vunpack.c.l.b16 %v1115
        %v1757 = vunpack.c.h.b16 %v1115
        %v1758 = vunpack.c.l.b16 %v1116
        %v1759 = vunpack.c.h.b16 %v1116
        %v1760 = vunpack.c.l.b16 %v1117
        %v1761 = vunpack.c.h.b16 %v1117
        %v1762 = vunpack.c.l.b16 %v1118
        %v1763 = vunpack.c.h.b16 %v1118
        %v1764 = vunpack.c.l.b16 %v1119
        %v1765 = vunpack.c.h.b16 %v1119
        %v1766 = vunpack.c.l.b16 %v1120
        %v1767 = vunpack.c.h.b16 %v1120
        %v1768 = vunpack.c.l.b16 %v1121
        %v1769 = vunpack.c.h.b16 %v1121
        %v1770 = vunpack.c.l.b16 %v1122
        %v1771 = vunpack.c.h.b16 %v1122
        %v1772 = vunpack.c.l.b16 %v1123
        %v1773 = vunpack.c.h.b16 %v1123
        %v1774 = vunpack.c.l.b16 %v1124
        %v1775 = vunpack.c.h.b16 %v1124
        %v1776 = vunpack.c.l.b16 %v1125
        %v1777 = vunpack.c.h.b16 %v1125
        %v1778 = vunpack.c.l.b16 %v1126
        %v1779 = vunpack.c.h.b16 %v1126
        %v1780 = vunpack.c.l.b16 %v1127
        %v1781 = vunpack.c.h.b16 %v1127
        %v1782 = vunpack.c.l.b16 %v1128
        %v1783 = vunpack.c.h.b16 %v1128
        %v1784 = vunpack.c.l.b16 %v1129
        %v1785 = vunpack.c.h.b16 %v1129
        %v1786 = vunpack.c.l.b16 %v1130
        %v1787 = vunpack.c.h.b16 %v1130
        %v1788 = vunpack.c.l.b16 %v1131
        %v1789 = vunpack.c.h.b16 %v1131
        %v1790 = vunpack.c.l.b16 %v1132
        %v1791 = vunpack.c.h.b16 %v1132
        %v1792 = vunpack.c.l.b16 %v1133
        %v1793 = vunpack.c.h.b16 %v1133
        %v1794 = vunpack.c.l.b16 %v1134
        %v1795 = vunpack.c.h.b16 %v1134
        %v1796 = vunpack.c.l.b16 %v1135
        %v1797 = vunpack.c.h.b16 %v1135
        %v1798 = vunpack.c.l.b16 %v1136
        %v1799 = vunpack.c.h.b16 %v1136
        %v1800 = vunpack.c.l.b16 %v1137
        %v1801 = vunpack.c.h.b16 %v1137
        %v1802 = vunpack.c.l.b16 %v1138
        %v1803 = vunpack.c.h.b16 %v1138
        %v1804 = vunpack.c.l.b16 %v1139
        %v1805 = vunpack.c.h.b16 %v1139
        %v1806 = vunpack.c.l.b16 %v1140
        %v1807 = vunpack.c.h.b16 %v1140
        %v1808 = vunpack.c.l.b16 %v1141
        %v1809 = vunpack.c.h.b16 %v1141
        %v1810 = vunpack.c.l.b16 %v1142
        %v1811 = vunpack.c.h.b16 %v1142
        %v1812 = vunpack.c.l.b16 %v1143
        %v1813 = vunpack.c.h.b16 %v1143
        %v1814 = vunpack.c.l.b16 %v1144
        %v1815 = vunpack.c.h.b16 %v1144
        %v1816 = vunpack.c.l.b16 %v1145
        %v1817 = vunpack.c.h.b16 %v1145
        %v1818 = vunpack.c.l.b16 %v1146
        %v1819 = vunpack.c.h.b16 %v1146
        %v1820 = vunpack.c.l.b16 %v1147
        %v1821 = vunpack.c.h.b16 %v1147
        %v1822 = vunpack.c.l.b16 %v1148
        %v1823 = vunpack.c.h.b16 %v1148
        %v1824 = vunpack.c.l.b16 %v1149
        %v1825 = vunpack.c.h.b16 %v1149
        %v1826 = vunpack.c.l.b16 %v1150
        %v1827 = vunpack.c.h.b16 %v1150
        %v1828 = vunpack.c.l.b16 %v1151
        %v1829 = vunpack.c.h.b16 %v1151
        %v1830 = vunpack.c.l.b16 %v1152
        %v1831 = vunpack.c.h.b16 %v1152
        %v1832 = vunpack.c.l.b16 %v1153
        %v1833 = vunpack.c.h.b16 %v1153
        %v1834 = vunpack.c.l.b16 %v1154
        %v1835 = vunpack.c.h.b16 %v1154
        %v1836 = vunpack.c.l.b16 %v1155
        %v1837 = vunpack.c.h.b16 %v1155
        %v1838 = vunpack.c.l.b16 %v1156
        %v1839 = vunpack.c.h.b16 %v1156
        %v1840 = vunpack.c.l.b16 %v1157
        %v1841 = vunpack.c.h.b16 %v1157
        %v1842 = vunpack.c.l.b16 %v1158
        %v1843 = vunpack.c.h.b16 %v1158
        %v1844 = vunpack.c.l.b16 %v1159
        %v1845 = vunpack.c.h.b16 %v1159
        %v1846 = vunpack.c.l.b16 %v1160
        %v1847 = vunpack.c.h.b16 %v1160
        %v1848 = vunpack.c.l.b16 %v1161
        %v1849 = vunpack.c.h.b16 %v1161
        %v1850 = vunpack.c.l.b16 %v1162
        %v1851 = vunpack.c.h.b16 %v1162
        %v1852 = vunpack.c.l.b16 %v1163
        %v1853 = vunpack.c.h.b16 %v1163
        %v1854 = vunpack.c.l.b16 %v1164
        %v1855 = vunpack.c.h.b16 %v1164
        %v1856 = vunpack.c.l.b16 %v1165
        %v1857 = vunpack.c.h.b16 %v1165
        %v1858 = vunpack.c.l.b16 %v1166
        %v1859 = vunpack.c.h.b16 %v1166
        %v1860 = vunpack.c.l.b16 %v1167
        %v1861 = vunpack.c.h.b16 %v1167
        %v1862 = vunpack.c.l.b16 %v1168
        %v1863 = vunpack.c.h.b16 %v1168
        %v1864 = vunpack.c.l.b16 %v1169
        %v1865 = vunpack.c.h.b16 %v1169
        %v1866 = vunpack.c.l.b16 %v1170
        %v1867 = vunpack.c.h.b16 %v1170
        %v1868 = vunpack.c.l.b16 %v1171
        %v1869 = vunpack.c.h.b16 %v1171
        %v1870 = vunpack.c.l.b16 %v1172
        %v1871 = vunpack.c.h.b16 %v1172
        %v1872 = vunpack.c.l.b16 %v1173
        %v1873 = vunpack.c.h.b16 %v1173
        %v1874 = vunpack.c.l.b16 %v1174
        %v1875 = vunpack.c.h.b16 %v1174
        %v1876 = vunpack.c.l.b16 %v1175
        %v1877 = vunpack.c.h.b16 %v1175
        %v1878 = vunpack.c.l.b16 %v1176
        %v1879 = vunpack.c.h.b16 %v1176
        %v1880 = vunpack.c.l.b16 %v1177
        %v1881 = vunpack.c.h.b16 %v1177
        %v1882 = vunpack.c.l.b16 %v1178
        %v1883 = vunpack.c.h.b16 %v1178
        %v1884 = vunpack.c.l.b16 %v1179
        %v1885 = vunpack.c.h.b16 %v1179
        %v1886 = vunpack.c.l.b16 %v1180
        %v1887 = vunpack.c.h.b16 %v1180
        %v1888 = vunpack.c.l.b16 %v1181
        %v1889 = vunpack.c.h.b16 %v1181
        %v1890 = vunpack.c.l.b16 %v1182
        %v1891 = vunpack.c.h.b16 %v1182
        %v1892 = vunpack.c.l.b16 %v1183
        %v1893 = vunpack.c.h.b16 %v1183
        %v1894 = vunpack.c.l.b16 %v1184
        %v1895 = vunpack.c.h.b16 %v1184
        %v1896 = vunpack.c.l.b16 %v1185
        %v1897 = vunpack.c.h.b16 %v1185
        %v1898 = vunpack.c.l.b16 %v1186
        %v1899 = vunpack.c.h.b16 %v1186
        %v1900 = vunpack.c.l.b16 %v1187
        %v1901 = vunpack.c.h.b16 %v1187
        %v1902 = vunpack.c.l.b16 %v1188
        %v1903 = vunpack.c.h.b16 %v1188
        %v1904 = vunpack.c.l.b16 %v1189
        %v1905 = vunpack.c.h.b16 %v1189
        %v1906 = vunpack.c.l.b16 %v1190
        %v1907 = vunpack.c.h.b16 %v1190
        %v1908 = vunpack.c.l.b16 %v1191
        %v1909 = vunpack.c.h.b16 %v1191
        %v1910 = vunpack.c.l.b16 %v1192
        %v1911 = vunpack.c.h.b16 %v1192
        %v1912 = vunpack.c.l.b16 %v1193
        %v1913 = vunpack.c.h.b16 %v1193
        %v1914 = vunpack.c.l.b16 %v1194
        %v1915 = vunpack.c.h.b16 %v1194
        %v1916 = vunpack.c.l.b16 %v1195
        %v1917 = vunpack.c.h.b16 %v1195
        %v1918 = vunpack.c.l.b16 %v1196
        %v1919 = vunpack.c.h.b16 %v1196
        %v1920 = vunpack.c.l.b16 %v1197
        %v1921 = vunpack.c.h.b16 %v1197
        %v1922 = vunpack.c.l.b16 %v1198
        %v1923 = vunpack.c.h.b16 %v1198
        %v1924 = vunpack.c.l.b16 %v1199
        %v1925 = vunpack.c.h.b16 %v1199
        %v1926 = vunpack.c.l.b16 %v1200
        %v1927 = vunpack.c.h.b16 %v1200
        %v1928 = vunpack.c.l.b16 %v1201
        %v1929 = vunpack.c.h.b16 %v1201
        %v1930 = vunpack.c.l.b16 %v1202
        %v1931 = vunpack.c.h.b16 %v1202
        %v1932 = vunpack.c.l.b16 %v1203
        %v1933 = vunpack.c.h.b16 %v1203
        %v1934 = vunpack.c.l.b16 %v1204
        %v1935 = vunpack.c.h.b16 %v1204
        %v1936 = vunpack.c.l.b16 %v1205
        %v1937 = vunpack.c.h.b16 %v1205
        %v1938 = vunpack.c.l.b16 %v1206
        %v1939 = vunpack.c.h.b16 %v1206
        %v1940 = vunpack.c.l.b16 %v1207
        %v1941 = vunpack.c.h.b16 %v1207
        %v1942 = vunpack.c.l.b16 %v1208
        %v1943 = vunpack.c.h.b16 %v1208
        %v1944 = vunpack.c.l.b16 %v1209
        %v1945 = vunpack.c.h.b16 %v1209
        %v1946 = vunpack.c.l.b16 %v1210
        %v1947 = vunpack.c.h.b16 %v1210
        %v1948 = vunpack.c.l.b16 %v1211
        %v1949 = vunpack.c.h.b16 %v1211
        %v1950 = vunpack.c.l.b16 %v1212
        %v1951 = vunpack.c.h.b16 %v1212
        %v1952 = vunpack.c.l.b16 %v1213
        %v1953 = vunpack.c.h.b16 %v1213
        %v1954 = vunpack.c.l.b16 %v1214
        %v1955 = vunpack.c.h.b16 %v1214
        %v1956 = vunpack.c.l.b16 %v1215
        %v1957 = vunpack.c.h.b16 %v1215
        %v1958 = vunpack.c.l.b16 %v1216
        %v1959 = vunpack.c.h.b16 %v1216
        %v1960 = vunpack.c.l.b16 %v1217
        %v1961 = vunpack.c.h.b16 %v1217
        %v1962 = vunpack.c.l.b16 %v1218
        %v1963 = vunpack.c.h.b16 %v1218
        %v1964 = vunpack.c.l.b16 %v1219
        %v1965 = vunpack.c.h.b16 %v1219
        %v1966 = vunpack.c.l.b16 %v1220
        %v1967 = vunpack.c.h.b16 %v1220
        %v1968 = vunpack.c.l.b16 %v1221
        %v1969 = vunpack.c.h.b16 %v1221
        %v1970 = vunpack.c.l.b16 %v1222
        %v1971 = vunpack.c.h.b16 %v1222
        %v1972 = vunpack.c.l.b16 %v1223
        %v1973 = vunpack.c.h.b16 %v1223
        %v1974 = vunpack.c.l.b16 %v1224
        %v1975 = vunpack.c.h.b16 %v1224
        %v1976 = vunpack.c.l.b16 %v1225
        %v1977 = vunpack.c.h.b16 %v1225
        %v1978 = vunpack.c.l.b16 %v1226
        %v1979 = vunpack.c.h.b16 %v1226
        %v1980 = vunpack.c.l.b16 %v1227
        %v1981 = vunpack.c.h.b16 %v1227
        %v1982 = vunpack.c.l.b16 %v1228
        %v1983 = vunpack.c.h.b16 %v1228
        %v1984 = vunpack.c.l.b16 %v1229
        %v1985 = vunpack.c.h.b16 %v1229
        %v1986 = vunpack.c.l.b16 %v1230
        %v1987 = vunpack.c.h.b16 %v1230
        %v1988 = vunpack.c.l.b16 %v1231
        %v1989 = vunpack.c.h.b16 %v1231
        %v1990 = vunpack.c.l.b16 %v1232
        %v1991 = vunpack.c.h.b16 %v1232
        %v1992 = vunpack.c.l.b16 %v1233
        %v1993 = vunpack.c.h.b16 %v1233
        %v1994 = vunpack.c.l.b16 %v1234
        %v1995 = vunpack.c.h.b16 %v1234
        %v1996 = vunpack.c.l.b16 %v1235
        %v1997 = vunpack.c.h.b16 %v1235
        %v1998 = vunpack.c.l.b16 %v1236
        %v1999 = vunpack.c.h.b16 %v1236
        %v2000 = vunpack.c.l.b16 %v1237
        %v2001 = vunpack.c.h.b16 %v1237
        %v2002 = vunpack.c.l.b16 %v1238
        %v2003 = vunpack.c.h.b16 %v1238
        %v2004 = vunpack.c.l.b16 %v1239
        %v2005 = vunpack.c.h.b16 %v1239
        %v2006 = vunpack.c.l.b16 %v1240
        %v2007 = vunpack.c.h.b16 %v1240
        %v2008 = vunpack.c.l.b16 %v1241
        %v2009 = vunpack.c.h.b16 %v1241
        %v2010 = vunpack.c.l.b16 %v1242
        %v2011 = vunpack.c.h.b16 %v1242
        %v2012 = vunpack.c.l.b16 %v1243
        %v2013 = vunpack.c.h.b16 %v1243
        %v2014 = vunpack.c.l.b16 %v1244
        %v2015 = vunpack.c.h.b16 %v1244
        %v2016 = vunpack.c.l.b16 %v1245
        %v2017 = vunpack.c.h.b16 %v1245
        %v2018 = vunpack.c.l.b16 %v1246
        %v2019 = vunpack.c.h.b16 %v1246
        %v2020 = vunpack.c.l.b16 %v1247
        %v2021 = vunpack.c.h.b16 %v1247
        %v2022 = vunpack.c.l.b16 %v1248
        %v2023 = vunpack.c.h.b16 %v1248
        %v2024 = vunpack.c.l.b16 %v1249
        %v2025 = vunpack.c.h.b16 %v1249
        %v2026 = vunpack.c.l.b16 %v1250
        %v2027 = vunpack.c.h.b16 %v1250
        %v2028 = vunpack.c.l.b16 %v1251
        %v2029 = vunpack.c.h.b16 %v1251
        %v2030 = vunpack.c.l.b16 %v1252
        %v2031 = vunpack.c.h.b16 %v1252
        %v2032 = vunpack.c.l.b16 %v1253
        %v2033 = vunpack.c.h.b16 %v1253
        %v2034 = vunpack.c.l.b16 %v1254
        %v2035 = vunpack.c.h.b16 %v1254
        %v2036 = vunpack.c.l.b16 %v1255
        %v2037 = vunpack.c.h.b16 %v1255
        %v2038 = vunpack.c.l.b16 %v1256
        %v2039 = vunpack.c.h.b16 %v1256
        %v2040 = vunpack.c.l.b16 %v1257
        %v2041 = vunpack.c.h.b16 %v1257
        %v2042 = vunpack.c.l.b16 %v1258
        %v2043 = vunpack.c.h.b16 %v1258
        %v2044 = vunpack.c.l.b16 %v1259
        %v2045 = vunpack.c.h.b16 %v1259
        %v2046 = vunpack.c.l.b16 %v1260
        %v2047 = vunpack.c.h.b16 %v1260
        %v2048 = vunpack.c.l.b16 %v1261
        %v2049 = vunpack.c.h.b16 %v1261
        %v2050 = vunpack.c.l.b16 %v1262
        %v2051 = vunpack.c.h.b16 %v1262
        %v2052 = vunpack.c.l.b16 %v1263
        %v2053 = vunpack.c.h.b16 %v1263
        %v2054 = vunpack.c.l.b16 %v1264
        %v2055 = vunpack.c.h.b16 %v1264
        %v2056 = vunpack.c.l.b16 %v1265
        %v2057 = vunpack.c.h.b16 %v1265
        %v2058 = vunpack.c.l.b16 %v1266
        %v2059 = vunpack.c.h.b16 %v1266
        %v2060 = vunpack.c.l.b16 %v1267
        %v2061 = vunpack.c.h.b16 %v1267
        %v2062 = vunpack.c.l.b16 %v1268
        %v2063 = vunpack.c.h.b16 %v1268
        %v2064 = vunpack.c.l.b16 %v1269
        %v2065 = vunpack.c.h.b16 %v1269
        %v2066 = vunpack.c.l.b16 %v1270
        %v2067 = vunpack.c.h.b16 %v1270
        %v2068 = vunpack.c.l.b16 %v1271
        %v2069 = vunpack.c.h.b16 %v1271
        %v2070 = vunpack.c.l.b16 %v1272
        %v2071 = vunpack.c.h.b16 %v1272
        %v2072 = vunpack.c.l.b16 %v1273
        %v2073 = vunpack.c.h.b16 %v1273
        %v2074 = vunpack.c.l.b16 %v1274
        %v2075 = vunpack.c.h.b16 %v1274
        %v2076 = vunpack.c.l.b16 %v1275
        %v2077 = vunpack.c.h.b16 %v1275
        %v2078 = vunpack.c.l.b16 %v1276
        %v2079 = vunpack.c.h.b16 %v1276
        %v2080 = vunpack.c.l.b16 %v1277
        %v2081 = vunpack.c.h.b16 %v1277
        %v2082 = vunpack.c.l.b16 %v1278
        %v2083 = vunpack.c.h.b16 %v1278
        %v2084 = vunpack.c.l.b16 %v1279
        %v2085 = vunpack.c.h.b16 %v1279
        %v2086 = vunpack.c.l.b16 %v1280
        %v2087 = vunpack.c.h.b16 %v1280
        %v2088 = vunpack.c.l.b16 %v1281
        %v2089 = vunpack.c.h.b16 %v1281
        %v2090 = vunpack.c.l.b16 %v1282
        %v2091 = vunpack.c.h.b16 %v1282
        %v2092 = vunpack.c.l.b16 %v1283
        %v2093 = vunpack.c.h.b16 %v1283
        %v2094 = vpack.c.b16 %v1590, %v1582
        %v2095 = vpack.c.b16 %v1591, %v1583
        %v2096 = vpack.c.b16 %v1592, %v1584
        %v2097 = vpack.c.b16 %v1593, %v1585
        %v2098 = vpack.c.b16 %v1594, %v1586
        %v2099 = vpack.c.b16 %v1595, %v1587
        %v2100 = vpack.c.b16 %v1596, %v1588
        %v2101 = vpack.c.b16 %v1597, %v1589
        %v2102 = vpack.c.b16 %v1606, %v1598
        %v2103 = vpack.c.b16 %v1607, %v1599
        %v2104 = vpack.c.b16 %v1608, %v1600
        %v2105 = vpack.c.b16 %v1609, %v1601
        %v2106 = vpack.c.b16 %v1610, %v1602
        %v2107 = vpack.c.b16 %v1611, %v1603
        %v2108 = vpack.c.b16 %v1612, %v1604
        %v2109 = vpack.c.b16 %v1613, %v1605
        %v2110 = vpack.c.b16 %v1622, %v1614
        %v2111 = vpack.c.b16 %v1623, %v1615
        %v2112 = vpack.c.b16 %v1624, %v1616
        %v2113 = vpack.c.b16 %v1625, %v1617
        %v2114 = vpack.c.b16 %v1626, %v1618
        %v2115 = vpack.c.b16 %v1627, %v1619
        %v2116 = vpack.c.b16 %v1628, %v1620
        %v2117 = vpack.c.b16 %v1629, %v1621
        %v2118 = vpack.c.b16 %v1638, %v1630
        %v2119 = vpack.c.b16 %v1639, %v1631
        %v2120 = vpack.c.b16 %v1640, %v1632
        %v2121 = vpack.c.b16 %v1641, %v1633
        %v2122 = vpack.c.b16 %v1642, %v1634
        %v2123 = vpack.c.b16 %v1643, %v1635
        %v2124 = vpack.c.b16 %v1644, %v1636
        %v2125 = vpack.c.b16 %v1645, %v1637
        %v2126 = vpack.c.b16 %v1654, %v1646
        %v2127 = vpack.c.b16 %v1655, %v1647
        %v2128 = vpack.c.b16 %v1656, %v1648
        %v2129 = vpack.c.b16 %v1657, %v1649
        %v2130 = vpack.c.b16 %v1658, %v1650
        %v2131 = vpack.c.b16 %v1659, %v1651
        %v2132 = vpack.c.b16 %v1660, %v1652
        %v2133 = vpack.c.b16 %v1661, %v1653
        %v2134 = vpack.c.b16 %v1670, %v1662
        %v2135 = vpack.c.b16 %v1671, %v1663
        %v2136 = vpack.c.b16 %v1672, %v1664
        %v2137 = vpack.c.b16 %v1673, %v1665
        %v2138 = vpack.c.b16 %v1674, %v1666
        %v2139 = vpack.c.b16 %v1675, %v1667
        %v2140 = vpack.c.b16 %v1676, %v1668
        %v2141 = vpack.c.b16 %v1677, %v1669
        %v2142 = vpack.c.b16 %v1686, %v1678
        %v2143 = vpack.c.b16 %v1687, %v1679
        %v2144 = vpack.c.b16 %v1688, %v1680
        %v2145 = vpack.c.b16 %v1689, %v1681
        %v2146 = vpack.c.b16 %v1690, %v1682
        %v2147 = vpack.c.b16 %v1691, %v1683
        %v2148 = vpack.c.b16 %v1692, %v1684
        %v2149 = vpack.c.b16 %v1693, %v1685
        %v2150 = vpack.c.b16 %v1702, %v1694
        %v2151 = vpack.c.b16 %v1703, %v1695
        %v2152 = vpack.c.b16 %v1704, %v1696
        %v2153 = vpack.c.b16 %v1705, %v1697
        %v2154 = vpack.c.b16 %v1706, %v1698
        %v2155 = vpack.c.b16 %v1707, %v1699
        %v2156 = vpack.c.b16 %v1708, %v1700
        %v2157 = vpack.c.b16 %v1709, %v1701
        %v2158 = vpack.c.b16 %v1718, %v1710
        %v2159 = vpack.c.b16 %v1719, %v1711
        %v2160 = vpack.c.b16 %v1720, %v1712
        %v2161 = vpack.c.b16 %v1721, %v1713
        %v2162 = vpack.c.b16 %v1722, %v1714
        %v2163 = vpack.c.b16 %v1723, %v1715
        %v2164 = vpack.c.b16 %v1724, %v1716
        %v2165 = vpack.c.b16 %v1725, %v1717
        %v2166 = vpack.c.b16 %v1734, %v1726
        %v2167 = vpack.c.b16 %v1735, %v1727
        %v2168 = vpack.c.b16 %v1736, %v1728
        %v2169 = vpack.c.b16 %v1737, %v1729
        %v2170 = vpack.c.b16 %v1738, %v1730
        %v2171 = vpack.c.b16 %v1739, %v1731
        %v2172 = vpack.c.b16 %v1740, %v1732
        %v2173 = vpack.c.b16 %v1741, %v1733
        %v2174 = vpack.c.b16 %v1750, %v1742
        %v2175 = vpack.c.b16 %v1751, %v1743
        %v2176 = vpack.c.b16 %v1752, %v1744
        %v2177 = vpack.c.b16 %v1753, %v1745
        %v2178 = vpack.c.b16 %v1754, %v1746
        %v2179 = vpack.c.b16 %v1755, %v1747
        %v2180 = vpack.c.b16 %v1756, %v1748
        %v2181 = vpack.c.b16 %v1757, %v1749
        %v2182 = vpack.c.b16 %v1766, %v1758
        %v2183 = vpack.c.b16 %v1767, %v1759
        %v2184 = vpack.c.b16 %v1768, %v1760
        %v2185 = vpack.c.b16 %v1769, %v1761
        %v2186 = vpack.c.b16 %v1770, %v1762
        %v2187 = vpack.c.b16 %v1771, %v1763
        %v2188 = vpack.c.b16 %v1772, %v1764
        %v2189 = vpack.c.b16 %v1773, %v1765
        %v2190 = vpack.c.b16 %v1782, %v1774
        %v2191 = vpack.c.b16 %v1783, %v1775
        %v2192 = vpack.c.b16 %v1784, %v1776
        %v2193 = vpack.c.b16 %v1785, %v1777
        %v2194 = vpack.c.b16 %v1786, %v1778
        %v2195 = vpack.c.b16 %v1787, %v1779
        %v2196 = vpack.c.b16 %v1788, %v1780
        %v2197 = vpack.c.b16 %v1789, %v1781
        %v2198 = vpack.c.b16 %v1798, %v1790
        %v2199 = vpack.c.b16 %v1799, %v1791
        %v2200 = vpack.c.b16 %v1800, %v1792
        %v2201 = vpack.c.b16 %v1801, %v1793
        %v2202 = vpack.c.b16 %v1802, %v1794
        %v2203 = vpack.c.b16 %v1803, %v1795
        %v2204 = vpack.c.b16 %v1804, %v1796
        %v2205 = vpack.c.b16 %v1805, %v1797
        %v2206 = vpack.c.b16 %v1814, %v1806
        %v2207 = vpack.c.b16 %v1815, %v1807
        %v2208 = vpack.c.b16 %v1816, %v1808
        %v2209 = vpack.c.b16 %v1817, %v1809
        %v2210 = vpack.c.b16 %v1818, %v1810
        %v2211 = vpack.c.b16 %v1819, %v1811
        %v2212 = vpack.c.b16 %v1820, %v1812
        %v2213 = vpack.c.b16 %v1821, %v1813
        %v2214 = vpack.c.b16 %v1830, %v1822
        %v2215 = vpack.c.b16 %v1831, %v1823
        %v2216 = vpack.c.b16 %v1832, %v1824
        %v2217 = vpack.c.b16 %v1833, %v1825
        %v2218 = vpack.c.b16 %v1834, %v1826
        %v2219 = vpack.c.b16 %v1835, %v1827
        %v2220 = vpack.c.b16 %v1836, %v1828
        %v2221 = vpack.c.b16 %v1837, %v1829
        %v2222 = vpack.c.b16 %v1846, %v1838
        %v2223 = vpack.c.b16 %v1847, %v1839
        %v2224 = vpack.c.b16 %v1848, %v1840
        %v2225 = vpack.c.b16 %v1849, %v1841
        %v2226 = vpack.c.b16 %v1850, %v1842
        %v2227 = vpack.c.b16 %v1851, %v1843
        %v2228 = vpack.c.b16 %v1852, %v1844
        %v2229 = vpack.c.b16 %v1853, %v1845
        %v2230 = vpack.c.b16 %v1862, %v1854
        %v2231 = vpack.c.b16 %v1863, %v1855
        %v2232 = vpack.c.b16 %v1864, %v1856
        %v2233 = vpack.c.b16 %v1865, %v1857
        %v2234 = vpack.c.b16 %v1866, %v1858
        %v2235 = vpack.c.b16 %v1867, %v1859
        %v2236 = vpack.c.b16 %v1868, %v1860
        %v2237 = vpack.c.b16 %v1869, %v1861
        %v2238 = vpack.c.b16 %v1878, %v1870
        %v2239 = vpack.c.b16 %v1879, %v1871
        %v2240 = vpack.c.b16 %v1880, %v1872
        %v2241 = vpack.c.b16 %v1881, %v1873
        %v2242 = vpack.c.b16 %v1882, %v1874
        %v2243 = vpack.c.b16 %v1883, %v1875
        %v2244 = vpack.c.b16 %v1884, %v1876
        %v2245 = vpack.c.b16 %v1885, %v1877
        %v2246 = vpack.c.b16 %v1894, %v1886
        %v2247 = vpack.c.b16 %v1895, %v1887
        %v2248 = vpack.c.b16 %v1896, %v1888
        %v2249 = vpack.c.b16 %v1897, %v1889
        %v2250 = vpack.c.b16 %v1898, %v1890
        %v2251 = vpack.c.b16 %v1899, %v1891
        %v2252 = vpack.c.b16 %v1900, %v1892
        %v2253 = vpack.c.b16 %v1901, %v1893
        %v2254 = vpack.c.b16 %v1910, %v1902
        %v2255 = vpack.c.b16 %v1911, %v1903
        %v2256 = vpack.c.b16 %v1912, %v1904
        %v2257 = vpack.c.b16 %v1913, %v1905
        %v2258 = vpack.c.b16 %v1914, %v1906
        %v2259 = vpack.c.b16 %v1915, %v1907
        %v2260 = vpack.c.b16 %v1916, %v1908
        %v2261 = vpack.c.b16 %v1917, %v1909
        %v2262 = vpack.c.b16 %v1926, %v1918
        %v2263 = vpack.c.b16 %v1927, %v1919
        %v2264 = vpack.c.b16 %v1928, %v1920
        %v2265 = vpack.c.b16 %v1929, %v1921
        %v2266 = vpack.c.b16 %v1930, %v1922
        %v2267 = vpack.c.b16 %v1931, %v1923
        %v2268 = vpack.c.b16 %v1932, %v1924
        %v2269 = vpack.c.b16 %v1933, %v1925
        %v2270 = vpack.c.b16 %v1942, %v1934
        %v2271 = vpack.c.b16 %v1943, %v1935
        %v2272 = vpack.c.b16 %v1944, %v1936
        %v2273 = vpack.c.b16 %v1945, %v1937
        %v2274 = vpack.c.b16 %v1946, %v1938
        %v2275 = vpack.c.b16 %v1947, %v1939
        %v2276 = vpack.c.b16 %v1948, %v1940
        %v2277 = vpack.c.b16 %v1949, %v1941
        %v2278 = vpack.c.b16 %v1958, %v1950
        %v2279 = vpack.c.b16 %v1959, %v1951
        %v2280 = vpack.c.b16 %v1960, %v1952
        %v2281 = vpack.c.b16 %v1961, %v1953
        %v2282 = vpack.c.b16 %v1962, %v1954
        %v2283 = vpack.c.b16 %v1963, %v1955
        %v2284 = vpack.c.b16 %v1964, %v1956
        %v2285 = vpack.c.b16 %v1965, %v1957
        %v2286 = vpack.c.b16 %v1974, %v1966
        %v2287 = vpack.c.b16 %v1975, %v1967
        %v2288 = vpack.c.b16 %v1976, %v1968
        %v2289 = vpack.c.b16 %v1977, %v1969
        %v2290 = vpack.c.b16 %v1978, %v1970
        %v2291 = vpack.c.b16 %v1979, %v1971
        %v2292 = vpack.c.b16 %v1980, %v1972
        %v2293 = vpack.c.b16 %v1981, %v1973
        %v2294 = vpack.c.b16 %v1990, %v1982
        %v2295 = vpack.c.b16 %v1991, %v1983
        %v2296 = vpack.c.b16 %v1992, %v1984
        %v2297 = vpack.c.b16 %v1993, %v1985
        %v2298 = vpack.c.b16 %v1994, %v1986
        %v2299 = vpack.c.b16 %v1995, %v1987
        %v2300 = vpack.c.b16 %v1996, %v1988
        %v2301 = vpack.c.b16 %v1997, %v1989
        %v2302 = vpack.c.b16 %v2006, %v1998
        %v2303 = vpack.c.b16 %v2007, %v1999
        %v2304 = vpack.c.b16 %v2008, %v2000
        %v2305 = vpack.c.b16 %v2009, %v2001
        %v2306 = vpack.c.b16 %v2010, %v2002
        %v2307 = vpack.c.b16 %v2011, %v2003
        %v2308 = vpack.c.b16 %v2012, %v2004
        %v2309 = vpack.c.b16 %v2013, %v2005
        %v2310 = vpack.c.b16 %v2022, %v2014
        %v2311 = vpack.c.b16 %v2023, %v2015
        %v2312 = vpack.c.b16 %v2024, %v2016
        %v2313 = vpack.c.b16 %v2025, %v2017
        %v2314 = vpack.c.b16 %v2026, %v2018
        %v2315 = vpack.c.b16 %v2027, %v2019
        %v2316 = vpack.c.b16 %v2028, %v2020
        %v2317 = vpack.c.b16 %v2029, %v2021
        %v2318 = vpack.c.b16 %v2038, %v2030
        %v2319 = vpack.c.b16 %v2039, %v2031
        %v2320 = vpack.c.b16 %v2040, %v2032
        %v2321 = vpack.c.b16 %v2041, %v2033
        %v2322 = vpack.c.b16 %v2042, %v2034
        %v2323 = vpack.c.b16 %v2043, %v2035
        %v2324 = vpack.c.b16 %v2044, %v2036
        %v2325 = vpack.c.b16 %v2045, %v2037
        %v2326 = vpack.c.b16 %v2054, %v2046
        %v2327 = vpack.c.b16 %v2055, %v2047
        %v2328 = vpack.c.b16 %v2056, %v2048
        %v2329 = vpack.c.b16 %v2057, %v2049
        %v2330 = vpack.c.b16 %v2058, %v2050
        %v2331 = vpack.c.b16 %v2059, %v2051
        %v2332 = vpack.c.b16 %v2060, %v2052
        %v2333 = vpack.c.b16 %v2061, %v2053
        %v2334 = vpack.c.b16 %v2070, %v2062
        %v2335 = vpack.c.b16 %v2071, %v2063
        %v2336 = vpack.c.b16 %v2072, %v2064
        %v2337 = vpack.c.b16 %v2073, %v2065
        %v2338 = vpack.c.b16 %v2074, %v2066
        %v2339 = vpack.c.b16 %v2075, %v2067
        %v2340 = vpack.c.b16 %v2076, %v2068
        %v2341 = vpack.c.b16 %v2077, %v2069
        %v2342 = vpack.c.b16 %v2086, %v2078
        %v2343 = vpack.c.b16 %v2087, %v2079
        %v2344 = vpack.c.b16 %v2088, %v2080
        %v2345 = vpack.c.b16 %v2089, %v2081
        %v2346 = vpack.c.b16 %v2090, %v2082
        %v2347 = vpack.c.b16 %v2091, %v2083
        %v2348 = vpack.c.b16 %v2092, %v2084
        %v2349 = vpack.c.b16 %v2093, %v2085
        %2606 = vmatprep.subr.bf16.mxu0 %v2095
        %2607 = vmatpush1.bf16.msra.mxu0 %v2094
        %2608 = vmatprep.subr.bf16.mxu0 %v2103
        %2609 = vmatpush1.bf16.msra.mxu0 %v2102
        %2610 = vmatprep.subr.bf16.mxu0 %v2111
        %2611 = vmatpush1.bf16.msra.mxu0 %v2110
        %2612 = vmatprep.subr.bf16.mxu0 %v2119
        %2613 = vmatpush1.bf16.msra.mxu0 %v2118
        %2614 = vmatprep.subr.bf16.mxu0 %v2127
        %2615 = vmatpush1.bf16.msra.mxu0 %v2126
        %2616 = vmatprep.subr.bf16.mxu0 %v2135
        %2617 = vmatpush1.bf16.msra.mxu0 %v2134
        %2618 = vmatprep.subr.bf16.mxu0 %v2143
        %2619 = vmatpush1.bf16.msra.mxu0 %v2142
        %2620 = vmatprep.subr.bf16.mxu0 %v2151
        %2621 = vmatpush1.bf16.msra.mxu0 %v2150
        %2622 = vmatprep.subr.bf16.mxu0 %v2159
        %2623 = vmatpush1.bf16.msra.mxu0 %v2158
        %2624 = vmatprep.subr.bf16.mxu0 %v2167
        %2625 = vmatpush1.bf16.msra.mxu0 %v2166
        %2626 = vmatprep.subr.bf16.mxu0 %v2175
        %2627 = vmatpush1.bf16.msra.mxu0 %v2174
        %2628 = vmatprep.subr.bf16.mxu0 %v2183
        %2629 = vmatpush1.bf16.msra.mxu0 %v2182
        %2630 = vmatprep.subr.bf16.mxu0 %v2191
        %2631 = vmatpush1.bf16.msra.mxu0 %v2190
        %2632 = vmatprep.subr.bf16.mxu0 %v2199
        %2633 = vmatpush1.bf16.msra.mxu0 %v2198
        %2634 = vmatprep.subr.bf16.mxu0 %v2207
        %2635 = vmatpush1.bf16.msra.mxu0 %v2206
        %2636 = vmatprep.subr.bf16.mxu0 %v2215
        %2637 = vmatpush1.bf16.msra.mxu0 %v2214
        %2638 = vmatprep.mubr.bf16.mxu0 %v1025
        %2639 = vmatmul.mubr.bf16.gmra.mrb[0].mxu0 %v1024
        %v2640 = vpop.f32.mrb[0].mxu0
        %v2641 = vadd.f32 %v1289, %v2640
        %v2642 = vpop.f32.mrb[0].mxu0
        %v2643 = vadd.f32 %v1293, %v2642
        %v2644 = vpop.f32.mrb[0].mxu0
        %v2645 = vadd.f32 %v1289, %v2644
        %v2646 = vpop.f32.mrb[0].mxu0
        %v2647 = vadd.f32 %v1293, %v2646
        %2648 = vdwg.mxu0
        %2649 = vmatprep.subr.bf16.mxu0 %v2223
        %2650 = vmatpush1.bf16.msra.mxu0 %v2222
        %2651 = vmatprep.subr.bf16.mxu0 %v2231
        %2652 = vmatpush1.bf16.msra.mxu0 %v2230
        %2653 = vmatprep.subr.bf16.mxu0 %v2239
        %2654 = vmatpush1.bf16.msra.mxu0 %v2238
        %2655 = vmatprep.subr.bf16.mxu0 %v2247
        %2656 = vmatpush1.bf16.msra.mxu0 %v2246
        %2657 = vmatprep.subr.bf16.mxu0 %v2255
        %2658 = vmatpush1.bf16.msra.mxu0 %v2254
        %2659 = vmatprep.subr.bf16.mxu0 %v2263
        %2660 = vmatpush1.bf16.msra.mxu0 %v2262
        %2661 = vmatprep.subr.bf16.mxu0 %v2271
        %2662 = vmatpush1.bf16.msra.mxu0 %v2270
        %2663 = vmatprep.subr.bf16.mxu0 %v2279
        %2664 = vmatpush1.bf16.msra.mxu0 %v2278
        %2665 = vmatprep.subr.bf16.mxu0 %v2287
        %2666 = vmatpush1.bf16.msra.mxu0 %v2286
        %2667 = vmatprep.subr.bf16.mxu0 %v2295
        %2668 = vmatpush1.bf16.msra.mxu0 %v2294
        %2669 = vmatprep.subr.bf16.mxu0 %v2303
        %2670 = vmatpush1.bf16.msra.mxu0 %v2302
        %2671 = vmatprep.subr.bf16.mxu0 %v2311
        %2672 = vmatpush1.bf16.msra.mxu0 %v2310
        %2673 = vmatprep.subr.bf16.mxu0 %v2319
        %2674 = vmatpush1.bf16.msra.mxu0 %v2318
        %2675 = vmatprep.subr.bf16.mxu0 %v2327
        %2676 = vmatpush1.bf16.msra.mxu0 %v2326
        %2677 = vmatprep.subr.bf16.mxu0 %v2335
        %2678 = vmatpush1.bf16.msra.mxu0 %v2334
        %2679 = vmatprep.subr.bf16.mxu0 %v2343
        %2680 = vmatpush1.bf16.msra.mxu0 %v2342
        %2681 = vmatprep.mubr.bf16.mxu0 %v1027
        %2682 = vmatmul.mubr.bf16.gmra.mrb[0].mxu0 %v1026
        %v2683 = vpop.f32.mrb[0].mxu0
        %v2684 = vadd.f32 %v2641, %v2683
        %v2685 = vpop.f32.mrb[0].mxu0
        %v2686 = vadd.f32 %v2643, %v2685
        %v2687 = vpop.f32.mrb[0].mxu0
        %v2688 = vadd.f32 %v2645, %v2687
        %v2689 = vpop.f32.mrb[0].mxu0
        %v2690 = vadd.f32 %v2647, %v2689
        %2691 = vdwg.mxu0
        %2692 = vmatprep.subr.bf16.mxu0 %v2097
        %2693 = vmatpush1.bf16.msra.mxu0 %v2096
        %2694 = vmatprep.subr.bf16.mxu0 %v2105
        %2695 = vmatpush1.bf16.msra.mxu0 %v2104
        %2696 = vmatprep.subr.bf16.mxu0 %v2113
        %2697 = vmatpush1.bf16.msra.mxu0 %v2112
        %2698 = vmatprep.subr.bf16.mxu0 %v2121
        %2699 = vmatpush1.bf16.msra.mxu0 %v2120
        %2700 = vmatprep.subr.bf16.mxu0 %v2129
        %2701 = vmatpush1.bf16.msra.mxu0 %v2128
        %2702 = vmatprep.subr.bf16.mxu0 %v2137
        %2703 = vmatpush1.bf16.msra.mxu0 %v2136
        %2704 = vmatprep.subr.bf16.mxu0 %v2145
        %2705 = vmatpush1.bf16.msra.mxu0 %v2144
        %2706 = vmatprep.subr.bf16.mxu0 %v2153
        %2707 = vmatpush1.bf16.msra.mxu0 %v2152
        %2708 = vmatprep.subr.bf16.mxu0 %v2161
        %2709 = vmatpush1.bf16.msra.mxu0 %v2160
        %2710 = vmatprep.subr.bf16.mxu0 %v2169
        %2711 = vmatpush1.bf16.msra.mxu0 %v2168
        %2712 = vmatprep.subr.bf16.mxu0 %v2177
        %2713 = vmatpush1.bf16.msra.mxu0 %v2176
        %2714 = vmatprep.subr.bf16.mxu0 %v2185
        %2715 = vmatpush1.bf16.msra.mxu0 %v2184
        %2716 = vmatprep.subr.bf16.mxu0 %v2193
        %2717 = vmatpush1.bf16.msra.mxu0 %v2192
        %2718 = vmatprep.subr.bf16.mxu0 %v2201
        %2719 = vmatpush1.bf16.msra.mxu0 %v2200
        %2720 = vmatprep.subr.bf16.mxu0 %v2209
        %2721 = vmatpush1.bf16.msra.mxu0 %v2208
        %2722 = vmatprep.subr.bf16.mxu0 %v2217
        %2723 = vmatpush1.bf16.msra.mxu0 %v2216
        %2724 = vmatprep.mubr.bf16.mxu0 %v1025
        %2725 = vmatmul.mubr.bf16.gmra.mrb[0].mxu0 %v1024
        %v2726 = vpop.f32.mrb[0].mxu0
        %v2727 = vadd.f32 %v1297, %v2726
        %v2728 = vpop.f32.mrb[0].mxu0
        %v2729 = vadd.f32 %v1301, %v2728
        %v2730 = vpop.f32.mrb[0].mxu0
        %v2731 = vadd.f32 %v1297, %v2730
        %v2732 = vpop.f32.mrb[0].mxu0
        %v2733 = vadd.f32 %v1301, %v2732
        %2734 = vdwg.mxu0
        %2735 = vmatprep.subr.bf16.mxu0 %v2225
        %2736 = vmatpush1.bf16.msra.mxu0 %v2224
        %2737 = vmatprep.subr.bf16.mxu0 %v2233
        %2738 = vmatpush1.bf16.msra.mxu0 %v2232
        %2739 = vmatprep.subr.bf16.mxu0 %v2241
        %2740 = vmatpush1.bf16.msra.mxu0 %v2240
        %2741 = vmatprep.subr.bf16.mxu0 %v2249
        %2742 = vmatpush1.bf16.msra.mxu0 %v2248
        %2743 = vmatprep.subr.bf16.mxu0 %v2257
        %2744 = vmatpush1.bf16.msra.mxu0 %v2256
        %2745 = vmatprep.subr.bf16.mxu0 %v2265
        %2746 = vmatpush1.bf16.msra.mxu0 %v2264
        %2747 = vmatprep.subr.bf16.mxu0 %v2273
        %2748 = vmatpush1.bf16.msra.mxu0 %v2272
        %2749 = vmatprep.subr.bf16.mxu0 %v2281
        %2750 = vmatpush1.bf16.msra.mxu0 %v2280
        %2751 = vmatprep.subr.bf16.mxu0 %v2289
        %2752 = vmatpush1.bf16.msra.mxu0 %v2288
        %2753 = vmatprep.subr.bf16.mxu0 %v2297
        %2754 = vmatpush1.bf16.msra.mxu0 %v2296
        %2755 = vmatprep.subr.bf16.mxu0 %v2305
        %2756 = vmatpush1.bf16.msra.mxu0 %v2304
        %2757 = vmatprep.subr.bf16.mxu0 %v2313
        %2758 = vmatpush1.bf16.msra.mxu0 %v2312
        %2759 = vmatprep.subr.bf16.mxu0 %v2321
        %2760 = vmatpush1.bf16.msra.mxu0 %v2320
        %2761 = vmatprep.subr.bf16.mxu0 %v2329
        %2762 = vmatpush1.bf16.msra.mxu0 %v2328
        %2763 = vmatprep.subr.bf16.mxu0 %v2337
        %2764 = vmatpush1.bf16.msra.mxu0 %v2336
        %2765 = vmatprep.subr.bf16.mxu0 %v2345
        %2766 = vmatpush1.bf16.msra.mxu0 %v2344
        %2767 = vmatprep.mubr.bf16.mxu0 %v1027
        %2768 = vmatmul.mubr.bf16.gmra.mrb[0].mxu0 %v1026
        %v2769 = vpop.f32.mrb[0].mxu0
        %v2770 = vadd.f32 %v2727, %v2769
        %v2771 = vpop.f32.mrb[0].mxu0
        %v2772 = vadd.f32 %v2729, %v2771
        %v2773 = vpop.f32.mrb[0].mxu0
        %v2774 = vadd.f32 %v2731, %v2773
        %v2775 = vpop.f32.mrb[0].mxu0
        %v2776 = vadd.f32 %v2733, %v2775
        %2777 = vdwg.mxu0
        %2778 = vmatprep.subr.bf16.mxu0 %v2099
        %2779 = vmatpush1.bf16.msra.mxu0 %v2098
        %2780 = vmatprep.subr.bf16.mxu0 %v2107
        %2781 = vmatpush1.bf16.msra.mxu0 %v2106
        %2782 = vmatprep.subr.bf16.mxu0 %v2115
        %2783 = vmatpush1.bf16.msra.mxu0 %v2114
        %2784 = vmatprep.subr.bf16.mxu0 %v2123
        %2785 = vmatpush1.bf16.msra.mxu0 %v2122
        %2786 = vmatprep.subr.bf16.mxu0 %v2131
        %2787 = vmatpush1.bf16.msra.mxu0 %v2130
        %2788 = vmatprep.subr.bf16.mxu0 %v2139
        %2789 = vmatpush1.bf16.msra.mxu0 %v2138
        %2790 = vmatprep.subr.bf16.mxu0 %v2147
        %2791 = vmatpush1.bf16.msra.mxu0 %v2146
        %2792 = vmatprep.subr.bf16.mxu0 %v2155
        %2793 = vmatpush1.bf16.msra.mxu0 %v2154
        %2794 = vmatprep.subr.bf16.mxu0 %v2163
        %2795 = vmatpush1.bf16.msra.mxu0 %v2162
        %2796 = vmatprep.subr.bf16.mxu0 %v2171
        %2797 = vmatpush1.bf16.msra.mxu0 %v2170
        %2798 = vmatprep.subr.bf16.mxu0 %v2179
        %2799 = vmatpush1.bf16.msra.mxu0 %v2178
        %2800 = vmatprep.subr.bf16.mxu0 %v2187
        %2801 = vmatpush1.bf16.msra.mxu0 %v2186
        %2802 = vmatprep.subr.bf16.mxu0 %v2195
        %2803 = vmatpush1.bf16.msra.mxu0 %v2194
        %2804 = vmatprep.subr.bf16.mxu0 %v2203
        %2805 = vmatpush1.bf16.msra.mxu0 %v2202
        %2806 = vmatprep.subr.bf16.mxu0 %v2211
        %2807 = vmatpush1.bf16.msra.mxu0 %v2210
        %2808 = vmatprep.subr.bf16.mxu0 %v2219
        %2809 = vmatpush1.bf16.msra.mxu0 %v2218
        %2810 = vmatprep.mubr.bf16.mxu0 %v1025
        %2811 = vmatmul.mubr.bf16.gmra.mrb[0].mxu0 %v1024
        %v2812 = vpop.f32.mrb[0].mxu0
        %v2813 = vadd.f32 %v1305, %v2812
        %v2814 = vpop.f32.mrb[0].mxu0
        %v2815 = vadd.f32 %v1309, %v2814
        %v2816 = vpop.f32.mrb[0].mxu0
        %v2817 = vadd.f32 %v1305, %v2816
        %v2818 = vpop.f32.mrb[0].mxu0
        %v2819 = vadd.f32 %v1309, %v2818
        %2820 = vdwg.mxu0
        %2821 = vmatprep.subr.bf16.mxu0 %v2227
        %2822 = vmatpush1.bf16.msra.mxu0 %v2226
        %2823 = vmatprep.subr.bf16.mxu0 %v2235
        %2824 = vmatpush1.bf16.msra.mxu0 %v2234
        %2825 = vmatprep.subr.bf16.mxu0 %v2243
        %2826 = vmatpush1.bf16.msra.mxu0 %v2242
        %2827 = vmatprep.subr.bf16.mxu0 %v2251
        %2828 = vmatpush1.bf16.msra.mxu0 %v2250
        %2829 = vmatprep.subr.bf16.mxu0 %v2259
        %2830 = vmatpush1.bf16.msra.mxu0 %v2258
        %2831 = vmatprep.subr.bf16.mxu0 %v2267
        %2832 = vmatpush1.bf16.msra.mxu0 %v2266
        %2833 = vmatprep.subr.bf16.mxu0 %v2275
        %2834 = vmatpush1.bf16.msra.mxu0 %v2274
        %2835 = vmatprep.subr.bf16.mxu0 %v2283
        %2836 = vmatpush1.bf16.msra.mxu0 %v2282
        %2837 = vmatprep.subr.bf16.mxu0 %v2291
        %2838 = vmatpush1.bf16.msra.mxu0 %v2290
        %2839 = vmatprep.subr.bf16.mxu0 %v2299
        %2840 = vmatpush1.bf16.msra.mxu0 %v2298
        %2841 = vmatprep.subr.bf16.mxu0 %v2307
        %2842 = vmatpush1.bf16.msra.mxu0 %v2306
        %2843 = vmatprep.subr.bf16.mxu0 %v2315
        %2844 = vmatpush1.bf16.msra.mxu0 %v2314
        %2845 = vmatprep.subr.bf16.mxu0 %v2323
        %2846 = vmatpush1.bf16.msra.mxu0 %v2322
        %2847 = vmatprep.subr.bf16.mxu0 %v2331
        %2848 = vmatpush1.bf16.msra.mxu0 %v2330
        %2849 = vmatprep.subr.bf16.mxu0 %v2339
        %2850 = vmatpush1.bf16.msra.mxu0 %v2338
        %2851 = vmatprep.subr.bf16.mxu0 %v2347
        %2852 = vmatpush1.bf16.msra.mxu0 %v2346
        %2853 = vmatprep.mubr.bf16.mxu0 %v1027
        %2854 = vmatmul.mubr.bf16.gmra.mrb[0].mxu0 %v1026
        %v2855 = vpop.f32.mrb[0].mxu0
        %v2856 = vadd.f32 %v2813, %v2855
        %v2857 = vpop.f32.mrb[0].mxu0
        %v2858 = vadd.f32 %v2815, %v2857
        %v2859 = vpop.f32.mrb[0].mxu0
        %v2860 = vadd.f32 %v2817, %v2859
        %v2861 = vpop.f32.mrb[0].mxu0
        %v2862 = vadd.f32 %v2819, %v2861
        %2863 = vdwg.mxu0
        %2864 = vmatprep.subr.bf16.mxu0 %v2101
        %2865 = vmatpush1.bf16.msra.mxu0 %v2100
        %2866 = vmatprep.subr.bf16.mxu0 %v2109
        %2867 = vmatpush1.bf16.msra.mxu0 %v2108
        %2868 = vmatprep.subr.bf16.mxu0 %v2117
        %2869 = vmatpush1.bf16.msra.mxu0 %v2116
        %2870 = vmatprep.subr.bf16.mxu0 %v2125
        %2871 = vmatpush1.bf16.msra.mxu0 %v2124
        %2872 = vmatprep.subr.bf16.mxu0 %v2133
        %2873 = vmatpush1.bf16.msra.mxu0 %v2132
        %2874 = vmatprep.subr.bf16.mxu0 %v2141
        %2875 = vmatpush1.bf16.msra.mxu0 %v2140
        %2876 = vmatprep.subr.bf16.mxu0 %v2149
        %2877 = vmatpush1.bf16.msra.mxu0 %v2148
        %2878 = vmatprep.subr.bf16.mxu0 %v2157
        %2879 = vmatpush1.bf16.msra.mxu0 %v2156
        %2880 = vmatprep.subr.bf16.mxu0 %v2165
        %2881 = vmatpush1.bf16.msra.mxu0 %v2164
        %2882 = vmatprep.subr.bf16.mxu0 %v2173
        %2883 = vmatpush1.bf16.msra.mxu0 %v2172
        %2884 = vmatprep.subr.bf16.mxu0 %v2181
        %2885 = vmatpush1.bf16.msra.mxu0 %v2180
        %2886 = vmatprep.subr.bf16.mxu0 %v2189
        %2887 = vmatpush1.bf16.msra.mxu0 %v2188
        %2888 = vmatprep.subr.bf16.mxu0 %v2197
        %2889 = vmatpush1.bf16.msra.mxu0 %v2196
        %2890 = vmatprep.subr.bf16.mxu0 %v2205
        %2891 = vmatpush1.bf16.msra.mxu0 %v2204
        %2892 = vmatprep.subr.bf16.mxu0 %v2213
        %2893 = vmatpush1.bf16.msra.mxu0 %v2212
        %2894 = vmatprep.subr.bf16.mxu0 %v2221
        %2895 = vmatpush1.bf16.msra.mxu0 %v2220
        %2896 = vmatprep.mubr.bf16.mxu0 %v1025
        %2897 = vmatmul.mubr.bf16.gmra.mrb[0].mxu0 %v1024
        %v2898 = vpop.f32.mrb[0].mxu0
        %v2899 = vadd.f32 %v1313, %v2898
        %v2900 = vpop.f32.mrb[0].mxu0
        %v2901 = vadd.f32 %v1317, %v2900
        %v2902 = vpop.f32.mrb[0].mxu0
        %v2903 = vadd.f32 %v1313, %v2902
        %v2904 = vpop.f32.mrb[0].mxu0
        %v2905 = vadd.f32 %v1317, %v2904
        %2906 = vdwg.mxu0
        %2907 = vmatprep.subr.bf16.mxu0 %v2229
        %2908 = vmatpush1.bf16.msra.mxu0 %v2228
        %2909 = vmatprep.subr.bf16.mxu0 %v2237
        %2910 = vmatpush1.bf16.msra.mxu0 %v2236
        %2911 = vmatprep.subr.bf16.mxu0 %v2245
        %2912 = vmatpush1.bf16.msra.mxu0 %v2244
        %2913 = vmatprep.subr.bf16.mxu0 %v2253
        %2914 = vmatpush1.bf16.msra.mxu0 %v2252
        %2915 = vmatprep.subr.bf16.mxu0 %v2261
        %2916 = vmatpush1.bf16.msra.mxu0 %v2260
        %2917 = vmatprep.subr.bf16.mxu0 %v2269
        %2918 = vmatpush1.bf16.msra.mxu0 %v2268
        %2919 = vmatprep.subr.bf16.mxu0 %v2277
        %2920 = vmatpush1.bf16.msra.mxu0 %v2276
        %2921 = vmatprep.subr.bf16.mxu0 %v2285
        %2922 = vmatpush1.bf16.msra.mxu0 %v2284
        %2923 = vmatprep.subr.bf16.mxu0 %v2293
        %2924 = vmatpush1.bf16.msra.mxu0 %v2292
        %2925 = vmatprep.subr.bf16.mxu0 %v2301
        %2926 = vmatpush1.bf16.msra.mxu0 %v2300
        %2927 = vmatprep.subr.bf16.mxu0 %v2309
        %2928 = vmatpush1.bf16.msra.mxu0 %v2308
        %2929 = vmatprep.subr.bf16.mxu0 %v2317
        %2930 = vmatpush1.bf16.msra.mxu0 %v2316
        %2931 = vmatprep.subr.bf16.mxu0 %v2325
        %2932 = vmatpush1.bf16.msra.mxu0 %v2324
        %2933 = vmatprep.subr.bf16.mxu0 %v2333
        %2934 = vmatpush1.bf16.msra.mxu0 %v2332
        %2935 = vmatprep.subr.bf16.mxu0 %v2341
        %2936 = vmatpush1.bf16.msra.mxu0 %v2340
        %2937 = vmatprep.subr.bf16.mxu0 %v2349
        %2938 = vmatpush1.bf16.msra.mxu0 %v2348
        %2939 = vmatprep.mubr.bf16.mxu0 %v1027
        %2940 = vmatmul.mubr.bf16.gmra.mrb[0].mxu0 %v1026
        %v2941 = vpop.f32.mrb[0].mxu0
        %v2942 = vadd.f32 %v2899, %v2941
        %v2943 = vpop.f32.mrb[0].mxu0
        %v2944 = vadd.f32 %v2901, %v2943
        %v2945 = vpop.f32.mrb[0].mxu0
        %v2946 = vadd.f32 %v2903, %v2945
        %v2947 = vpop.f32.mrb[0].mxu0
        %v2948 = vadd.f32 %v2905, %v2947
        %2949 = vdwg.mxu0
        %vm2950 = vcmp.gt.f32.partialorder %v2684, 0.0
        %vm2951 = vcmp.gt.f32.partialorder %v2686, 0.0
        %vm2952 = vcmp.gt.f32.partialorder %v2770, 0.0
        %vm2953 = vcmp.gt.f32.partialorder %v2772, 0.0
        %vm2954 = vcmp.gt.f32.partialorder %v2856, 0.0
        %vm2955 = vcmp.gt.f32.partialorder %v2858, 0.0
        %vm2956 = vcmp.gt.f32.partialorder %v2942, 0.0
        %vm2957 = vcmp.gt.f32.partialorder %v2944, 0.0
        %vm2958 = vcmp.gt.f32.partialorder %v2688, 0.0
        %vm2959 = vcmp.gt.f32.partialorder %v2690, 0.0
        %vm2960 = vcmp.gt.f32.partialorder %v2774, 0.0
        %vm2961 = vcmp.gt.f32.partialorder %v2776, 0.0
        %vm2962 = vcmp.gt.f32.partialorder %v2860, 0.0
        %vm2963 = vcmp.gt.f32.partialorder %v2862, 0.0
        %vm2964 = vcmp.gt.f32.partialorder %v2946, 0.0
        %vm2965 = vcmp.gt.f32.partialorder %v2948, 0.0
        %v2966 = vmul.f32 %v2684, 0.2
        %v2967 = vmul.f32 %v2686, 0.2
        %v2968 = vmul.f32 %v2770, 0.2
        %v2969 = vmul.f32 %v2772, 0.2
        %v2970 = vmul.f32 %v2856, 0.2
        %v2971 = vmul.f32 %v2858, 0.2
        %v2972 = vmul.f32 %v2942, 0.2
        %v2973 = vmul.f32 %v2944, 0.2
        %v2974 = vmul.f32 %v2688, 0.2
        %v2975 = vmul.f32 %v2690, 0.2
        %v2976 = vmul.f32 %v2774, 0.2
        %v2977 = vmul.f32 %v2776, 0.2
        %v2978 = vmul.f32 %v2860, 0.2
        %v2979 = vmul.f32 %v2862, 0.2
        %v2980 = vmul.f32 %v2946, 0.2
        %v2981 = vmul.f32 %v2948, 0.2
        %v2982 = vsel %vm2950, %v2684, %v2966
        %v2983 = vsel %vm2951, %v2686, %v2967
        %v2984 = vsel %vm2952, %v2770, %v2968
        %v2985 = vsel %vm2953, %v2772, %v2969
        %v2986 = vsel %vm2954, %v2856, %v2970
        %v2987 = vsel %vm2955, %v2858, %v2971
        %v2988 = vsel %vm2956, %v2942, %v2972
        %v2989 = vsel %vm2957, %v2944, %v2973
        %v2990 = vsel %vm2958, %v2688, %v2974
        %v2991 = vsel %vm2959, %v2690, %v2975
        %v2992 = vsel %vm2960, %v2774, %v2976
        %v2993 = vsel %vm2961, %v2776, %v2977
        %v2994 = vsel %vm2962, %v2860, %v2978
        %v2995 = vsel %vm2963, %v2862, %v2979
        %v2996 = vsel %vm2964, %v2946, %v2980
        %v2997 = vsel %vm2965, %v2948, %v2981
        %v2998 = vpack.c.bf16 %v2990, %v2982
        %v2999 = vpack.c.bf16 %v2991, %v2983
        %v3000 = vpack.c.bf16 %v2992, %v2984
        %v3001 = vpack.c.bf16 %v2993, %v2985
        %v3002 = vpack.c.bf16 %v2994, %v2986
        %v3003 = vpack.c.bf16 %v2995, %v2987
        %v3004 = vpack.c.bf16 %v2996, %v2988
        %v3005 = vpack.c.bf16 %v2997, %v2989
        %v3006 = vld [vmem:[%s7] sm:$0xff]
        %v3007 = vld [vmem:[%s7 + $0x8] sm:$0xff]
        %v3008 = vld [vmem:[%s7 + $0x10] sm:$0xff]
        %v3009 = vld [vmem:[%s7 + $0x18] sm:$0xf]
        %v3010 = vld [vmem:[%s7 + $0x1c] sm:$0xff]
        %v3011 = vld [vmem:[%s7 + $0x24] sm:$0xff]
        %v3012 = vld [vmem:[%s7 + $0x2c] sm:$0xff]
        %v3013 = vld [vmem:[%s7 + $0x34] sm:$0xf]
        %v3014 = vld [vmem:[%s7 + $0x38] sm:$0xff]
        %v3015 = vld [vmem:[%s7 + $0x40] sm:$0xff]
        %v3016 = vld [vmem:[%s7 + $0x48] sm:$0xff]
        %v3017 = vld [vmem:[%s7 + $0x50] sm:$0xf]
        %v3018 = vld [vmem:[%s7 + $0x54] sm:$0xff]
        %v3019 = vld [vmem:[%s7 + $0x5c] sm:$0xff]
        %v3020 = vld [vmem:[%s7 + $0x64] sm:$0xff]
        %v3021 = vld [vmem:[%s7 + $0x6c] sm:$0xf]
        %v3022 = vld [vmem:[%s7 + $0x70] sm:$0xff]
        %v3023 = vld [vmem:[%s7 + $0x78] sm:$0xff]
        %v3024 = vld [vmem:[%s7 + $0x80] sm:$0xff]
        %v3025 = vld [vmem:[%s7 + $0x88] sm:$0xf]
        %v3026 = vld [vmem:[%s7 + $0x8c] sm:$0xff]
        %v3027 = vld [vmem:[%s7 + $0x94] sm:$0xff]
        %v3028 = vld [vmem:[%s7 + $0x9c] sm:$0xff]
        %v3029 = vld [vmem:[%s7 + $0xa4] sm:$0xf]
        %v3030 = vld [vmem:[%s7 + $0xa8] sm:$0xff]
        %v3031 = vld [vmem:[%s7 + $0xb0] sm:$0xff]
        %v3032 = vld [vmem:[%s7 + $0xb8] sm:$0xff]
        %v3033 = vld [vmem:[%s7 + $0xc0] sm:$0xf]
        %v3034 = vld [vmem:[%s7 + $0xc4] sm:$0xff]
        %v3035 = vld [vmem:[%s7 + $0xcc] sm:$0xff]
        %v3036 = vld [vmem:[%s7 + $0xd4] sm:$0xff]
        %v3037 = vld [vmem:[%s7 + $0xdc] sm:$0xf]
        %v3038 = vld [vmem:[%s7 + $0xe0] sm:$0xff]
        %v3039 = vld [vmem:[%s7 + $0xe8] sm:$0xff]
        %v3040 = vld [vmem:[%s7 + $0xf0] sm:$0xff]
        %v3041 = vld [vmem:[%s7 + $0xf8] sm:$0xf]
        %v3042 = vld [vmem:[%s7 + $0xfc] sm:$0xff]
        %v3043 = vld [vmem:[%s7 + $0x104] sm:$0xff]
        %v3044 = vld [vmem:[%s7 + $0x10c] sm:$0xff]
        %v3045 = vld [vmem:[%s7 + $0x114] sm:$0xf]
        %v3046 = vld [vmem:[%s7 + $0x118] sm:$0xff]
        %v3047 = vld [vmem:[%s7 + $0x120] sm:$0xff]
        %v3048 = vld [vmem:[%s7 + $0x128] sm:$0xff]
        %v3049 = vld [vmem:[%s7 + $0x130] sm:$0xf]
        %v3050 = vld [vmem:[%s7 + $0x134] sm:$0xff]
        %v3051 = vld [vmem:[%s7 + $0x13c] sm:$0xff]
        %v3052 = vld [vmem:[%s7 + $0x144] sm:$0xff]
        %v3053 = vld [vmem:[%s7 + $0x14c] sm:$0xf]
        %v3054 = vld [vmem:[%s7 + $0x150] sm:$0xff]
        %v3055 = vld [vmem:[%s7 + $0x158] sm:$0xff]
        %v3056 = vld [vmem:[%s7 + $0x160] sm:$0xff]
        %v3057 = vld [vmem:[%s7 + $0x168] sm:$0xf]
        %v3058 = vld [vmem:[%s7 + $0x16c] sm:$0xff]
        %v3059 = vld [vmem:[%s7 + $0x174] sm:$0xff]
        %v3060 = vld [vmem:[%s7 + $0x17c] sm:$0xff]
        %v3061 = vld [vmem:[%s7 + $0x184] sm:$0xf]
        %v3062 = vld [vmem:[%s7 + $0x188] sm:$0xff]
        %v3063 = vld [vmem:[%s7 + $0x190] sm:$0xff]
        %v3064 = vld [vmem:[%s7 + $0x198] sm:$0xff]
        %v3065 = vld [vmem:[%s7 + $0x1a0] sm:$0xf]
        %v3066 = vld [vmem:[%s7 + $0x1a4] sm:$0xff]
        %v3067 = vld [vmem:[%s7 + $0x1ac] sm:$0xff]
        %v3068 = vld [vmem:[%s7 + $0x1b4] sm:$0xff]
        %v3069 = vld [vmem:[%s7 + $0x1bc] sm:$0xf]
        %v3070 = vld [vmem:[%s7 + $0x1c0] sm:$0xff]
        %v3071 = vld [vmem:[%s7 + $0x1c8] sm:$0xff]
        %v3072 = vld [vmem:[%s7 + $0x1d0] sm:$0xff]
        %v3073 = vld [vmem:[%s7 + $0x1d8] sm:$0xf]
        %v3074 = vld [vmem:[%s7 + $0x1dc] sm:$0xff]
        %v3075 = vld [vmem:[%s7 + $0x1e4] sm:$0xff]
        %v3076 = vld [vmem:[%s7 + $0x1ec] sm:$0xff]
        %v3077 = vld [vmem:[%s7 + $0x1f4] sm:$0xf]
        %v3078 = vld [vmem:[%s7 + $0x1f8] sm:$0xff]
        %v3079 = vld [vmem:[%s7 + $0x200] sm:$0xff]
        %v3080 = vld [vmem:[%s7 + $0x208] sm:$0xff]
        %v3081 = vld [vmem:[%s7 + $0x210] sm:$0xf]
        %v3082 = vld [vmem:[%s7 + $0x214] sm:$0xff]
        %v3083 = vld [vmem:[%s7 + $0x21c] sm:$0xff]
        %v3084 = vld [vmem:[%s7 + $0x224] sm:$0xff]
        %v3085 = vld [vmem:[%s7 + $0x22c] sm:$0xf]
        %v3086 = vld [vmem:[%s7 + $0x230] sm:$0xff]
        %v3087 = vld [vmem:[%s7 + $0x238] sm:$0xff]
        %v3088 = vld [vmem:[%s7 + $0x240] sm:$0xff]
        %v3089 = vld [vmem:[%s7 + $0x248] sm:$0xf]
        %v3090 = vld [vmem:[%s7 + $0x24c] sm:$0xff]
        %v3091 = vld [vmem:[%s7 + $0x254] sm:$0xff]
        %v3092 = vld [vmem:[%s7 + $0x25c] sm:$0xff]
        %v3093 = vld [vmem:[%s7 + $0x264] sm:$0xf]
        %v3094 = vld [vmem:[%s7 + $0x268] sm:$0xff]
        %v3095 = vld [vmem:[%s7 + $0x270] sm:$0xff]
        %v3096 = vld [vmem:[%s7 + $0x278] sm:$0xff]
        %v3097 = vld [vmem:[%s7 + $0x280] sm:$0xf]
        %v3098 = vld [vmem:[%s7 + $0x284] sm:$0xff]
        %v3099 = vld [vmem:[%s7 + $0x28c] sm:$0xff]
        %v3100 = vld [vmem:[%s7 + $0x294] sm:$0xff]
        %v3101 = vld [vmem:[%s7 + $0x29c] sm:$0xf]
        %v3102 = vld [vmem:[%s7 + $0x2a0] sm:$0xff]
        %v3103 = vld [vmem:[%s7 + $0x2a8] sm:$0xff]
        %v3104 = vld [vmem:[%s7 + $0x2b0] sm:$0xff]
        %v3105 = vld [vmem:[%s7 + $0x2b8] sm:$0xf]
        %v3106 = vld [vmem:[%s7 + $0x2bc] sm:$0xff]
        %v3107 = vld [vmem:[%s7 + $0x2c4] sm:$0xff]
        %v3108 = vld [vmem:[%s7 + $0x2cc] sm:$0xff]
        %v3109 = vld [vmem:[%s7 + $0x2d4] sm:$0xf]
        %v3110 = vld [vmem:[%s7 + $0x2d8] sm:$0xff]
        %v3111 = vld [vmem:[%s7 + $0x2e0] sm:$0xff]
        %v3112 = vld [vmem:[%s7 + $0x2e8] sm:$0xff]
        %v3113 = vld [vmem:[%s7 + $0x2f0] sm:$0xf]
        %v3114 = vld [vmem:[%s7 + $0x2f4] sm:$0xff]
        %v3115 = vld [vmem:[%s7 + $0x2fc] sm:$0xff]
        %v3116 = vld [vmem:[%s7 + $0x304] sm:$0xff]
        %v3117 = vld [vmem:[%s7 + $0x30c] sm:$0xf]
        %v3118 = vld [vmem:[%s7 + $0x310] sm:$0xff]
        %v3119 = vld [vmem:[%s7 + $0x318] sm:$0xff]
        %v3120 = vld [vmem:[%s7 + $0x320] sm:$0xff]
        %v3121 = vld [vmem:[%s7 + $0x328] sm:$0xf]
        %v3122 = vld [vmem:[%s7 + $0x32c] sm:$0xff]
        %v3123 = vld [vmem:[%s7 + $0x334] sm:$0xff]
        %v3124 = vld [vmem:[%s7 + $0x33c] sm:$0xff]
        %v3125 = vld [vmem:[%s7 + $0x344] sm:$0xf]
        %v3126 = vld [vmem:[%s7 + $0x348] sm:$0xff]
        %v3127 = vld [vmem:[%s7 + $0x350] sm:$0xff]
        %v3128 = vld [vmem:[%s7 + $0x358] sm:$0xff]
        %v3129 = vld [vmem:[%s7 + $0x360] sm:$0xf]
        %v3130 = vld [vmem:[%s7 + $0x364] sm:$0xff]
        %v3131 = vld [vmem:[%s7 + $0x36c] sm:$0xff]
        %v3132 = vld [vmem:[%s7 + $0x374] sm:$0xff]
        %v3133 = vld [vmem:[%s7 + $0x37c] sm:$0xf]
        %v3134 = vld [vmem:[%s7 + $0x380] sm:$0xff]
        %v3135 = vld [vmem:[%s7 + $0x388] sm:$0xff]
        %v3136 = vld [vmem:[%s7 + $0x390] sm:$0xff]
        %v3137 = vld [vmem:[%s7 + $0x398] sm:$0xf]
        %v3138 = vld [vmem:[%s7 + $0x39c] sm:$0xff]
        %v3139 = vld [vmem:[%s7 + $0x3a4] sm:$0xff]
        %v3140 = vld [vmem:[%s7 + $0x3ac] sm:$0xff]
        %v3141 = vld [vmem:[%s7 + $0x3b4] sm:$0xf]
        %v3142 = vld [vmem:[%s7 + $0x3b8] sm:$0xff]
        %v3143 = vld [vmem:[%s7 + $0x3c0] sm:$0xff]
        %v3144 = vld [vmem:[%s7 + $0x3c8] sm:$0xff]
        %v3145 = vld [vmem:[%s7 + $0x3d0] sm:$0xf]
        %v3146 = vld [vmem:[%s7 + $0x3d4] sm:$0xff]
        %v3147 = vld [vmem:[%s7 + $0x3dc] sm:$0xff]
        %v3148 = vld [vmem:[%s7 + $0x3e4] sm:$0xff]
        %v3149 = vld [vmem:[%s7 + $0x3ec] sm:$0xf]
        %v3150 = vld [vmem:[%s7 + $0x3f0] sm:$0xff]
        %v3151 = vld [vmem:[%s7 + $0x3f8] sm:$0xff]
        %v3152 = vld [vmem:[%s7 + $0x400] sm:$0xff]
        %v3153 = vld [vmem:[%s7 + $0x408] sm:$0xf]
        %v3154 = vld [vmem:[%s7 + $0x40c] sm:$0xff]
        %v3155 = vld [vmem:[%s7 + $0x414] sm:$0xff]
        %v3156 = vld [vmem:[%s7 + $0x41c] sm:$0xff]
        %v3157 = vld [vmem:[%s7 + $0x424] sm:$0xf]
        %v3158 = vld [vmem:[%s7 + $0x428] sm:$0xff]
        %v3159 = vld [vmem:[%s7 + $0x430] sm:$0xff]
        %v3160 = vld [vmem:[%s7 + $0x438] sm:$0xff]
        %v3161 = vld [vmem:[%s7 + $0x440] sm:$0xf]
        %v3162 = vld [vmem:[%s7 + $0x444] sm:$0xff]
        %v3163 = vld [vmem:[%s7 + $0x44c] sm:$0xff]
        %v3164 = vld [vmem:[%s7 + $0x454] sm:$0xff]
        %v3165 = vld [vmem:[%s7 + $0x45c] sm:$0xf]
        %v3166 = vld [vmem:[%s7 + $0x460] sm:$0xff]
        %v3167 = vld [vmem:[%s7 + $0x468] sm:$0xff]
        %v3168 = vld [vmem:[%s7 + $0x470] sm:$0xff]
        %v3169 = vld [vmem:[%s7 + $0x478] sm:$0xf]
        %v3170 = vld [vmem:[%s7 + $0x47c] sm:$0xff]
        %v3171 = vld [vmem:[%s7 + $0x484] sm:$0xff]
        %v3172 = vld [vmem:[%s7 + $0x48c] sm:$0xff]
        %v3173 = vld [vmem:[%s7 + $0x494] sm:$0xf]
        %v3174 = vld [vmem:[%s7 + $0x498] sm:$0xff]
        %v3175 = vld [vmem:[%s7 + $0x4a0] sm:$0xff]
        %v3176 = vld [vmem:[%s7 + $0x4a8] sm:$0xff]
        %v3177 = vld [vmem:[%s7 + $0x4b0] sm:$0xf]
        %v3178 = vld [vmem:[%s7 + $0x4b4] sm:$0xff]
        %v3179 = vld [vmem:[%s7 + $0x4bc] sm:$0xff]
        %v3180 = vld [vmem:[%s7 + $0x4c4] sm:$0xff]
        %v3181 = vld [vmem:[%s7 + $0x4cc] sm:$0xf]
        %v3182 = vld [vmem:[%s7 + $0x4d0] sm:$0xff]
        %v3183 = vld [vmem:[%s7 + $0x4d8] sm:$0xff]
        %v3184 = vld [vmem:[%s7 + $0x4e0] sm:$0xff]
        %v3185 = vld [vmem:[%s7 + $0x4e8] sm:$0xf]
        %v3186 = vld [vmem:[%s7 + $0x4ec] sm:$0xff]
        %v3187 = vld [vmem:[%s7 + $0x4f4] sm:$0xff]
        %v3188 = vld [vmem:[%s7 + $0x4fc] sm:$0xff]
        %v3189 = vld [vmem:[%s7 + $0x504] sm:$0xf]
        %v3190 = vld [vmem:[%s7 + $0x508] sm:$0xff]
        %v3191 = vld [vmem:[%s7 + $0x510] sm:$0xff]
        %v3192 = vld [vmem:[%s7 + $0x518] sm:$0xff]
        %v3193 = vld [vmem:[%s7 + $0x520] sm:$0xf]
        %v3194 = vld [vmem:[%s7 + $0x524] sm:$0xff]
        %v3195 = vld [vmem:[%s7 + $0x52c] sm:$0xff]
        %v3196 = vld [vmem:[%s7 + $0x534] sm:$0xff]
        %v3197 = vld [vmem:[%s7 + $0x53c] sm:$0xf]
        %v3198 = vld [vmem:[%s7 + $0x540] sm:$0xff]
        %v3199 = vld [vmem:[%s7 + $0x548] sm:$0xff]
        %v3200 = vld [vmem:[%s7 + $0x550] sm:$0xff]
        %v3201 = vld [vmem:[%s7 + $0x558] sm:$0xf]
        %v3202 = vld [vmem:[%s7 + $0x55c] sm:$0xff]
        %v3203 = vld [vmem:[%s7 + $0x564] sm:$0xff]
        %v3204 = vld [vmem:[%s7 + $0x56c] sm:$0xff]
        %v3205 = vld [vmem:[%s7 + $0x574] sm:$0xf]
        %v3206 = vld [vmem:[%s7 + $0x578] sm:$0xff]
        %v3207 = vld [vmem:[%s7 + $0x580] sm:$0xff]
        %v3208 = vld [vmem:[%s7 + $0x588] sm:$0xff]
        %v3209 = vld [vmem:[%s7 + $0x590] sm:$0xf]
        %v3210 = vld [vmem:[%s7 + $0x594] sm:$0xff]
        %v3211 = vld [vmem:[%s7 + $0x59c] sm:$0xff]
        %v3212 = vld [vmem:[%s7 + $0x5a4] sm:$0xff]
        %v3213 = vld [vmem:[%s7 + $0x5ac] sm:$0xf]
        %v3214 = vld [vmem:[%s7 + $0x5b0] sm:$0xff]
        %v3215 = vld [vmem:[%s7 + $0x5b8] sm:$0xff]
        %v3216 = vld [vmem:[%s7 + $0x5c0] sm:$0xff]
        %v3217 = vld [vmem:[%s7 + $0x5c8] sm:$0xf]
        %v3218 = vld [vmem:[%s7 + $0x5cc] sm:$0xff]
        %v3219 = vld [vmem:[%s7 + $0x5d4] sm:$0xff]
        %v3220 = vld [vmem:[%s7 + $0x5dc] sm:$0xff]
        %v3221 = vld [vmem:[%s7 + $0x5e4] sm:$0xf]
        %v3222 = vld [vmem:[%s7 + $0x5e8] sm:$0xff]
        %v3223 = vld [vmem:[%s7 + $0x5f0] sm:$0xff]
        %v3224 = vld [vmem:[%s7 + $0x5f8] sm:$0xff]
        %v3225 = vld [vmem:[%s7 + $0x600] sm:$0xf]
        %v3226 = vld [vmem:[%s7 + $0x604] sm:$0xff]
        %v3227 = vld [vmem:[%s7 + $0x60c] sm:$0xff]
        %v3228 = vld [vmem:[%s7 + $0x614] sm:$0xff]
        %v3229 = vld [vmem:[%s7 + $0x61c] sm:$0xf]
        %v3230 = vld [vmem:[%s7 + $0x620] sm:$0xff]
        %v3231 = vld [vmem:[%s7 + $0x628] sm:$0xff]
        %v3232 = vld [vmem:[%s7 + $0x630] sm:$0xff]
        %v3233 = vld [vmem:[%s7 + $0x638] sm:$0xf]
        %v3234 = vld [vmem:[%s7 + $0x63c] sm:$0xff]
        %v3235 = vld [vmem:[%s7 + $0x644] sm:$0xff]
        %v3236 = vld [vmem:[%s7 + $0x64c] sm:$0xff]
        %v3237 = vld [vmem:[%s7 + $0x654] sm:$0xf]
        %v3238 = vld [vmem:[%s7 + $0x658] sm:$0xff]
        %v3239 = vld [vmem:[%s7 + $0x660] sm:$0xff]
        %v3240 = vld [vmem:[%s7 + $0x668] sm:$0xff]
        %v3241 = vld [vmem:[%s7 + $0x670] sm:$0xf]
        %v3242 = vld [vmem:[%s7 + $0x674] sm:$0xff]
        %v3243 = vld [vmem:[%s7 + $0x67c] sm:$0xff]
        %v3244 = vld [vmem:[%s7 + $0x684] sm:$0xff]
        %v3245 = vld [vmem:[%s7 + $0x68c] sm:$0xf]
        %v3246 = vld [vmem:[%s7 + $0x690] sm:$0xff]
        %v3247 = vld [vmem:[%s7 + $0x698] sm:$0xff]
        %v3248 = vld [vmem:[%s7 + $0x6a0] sm:$0xff]
        %v3249 = vld [vmem:[%s7 + $0x6a8] sm:$0xf]
        %v3250 = vld [vmem:[%s7 + $0x6ac] sm:$0xff]
        %v3251 = vld [vmem:[%s7 + $0x6b4] sm:$0xff]
        %v3252 = vld [vmem:[%s7 + $0x6bc] sm:$0xff]
        %v3253 = vld [vmem:[%s7 + $0x6c4] sm:$0xf]
        %v3254 = vld [vmem:[%s7 + $0x6c8] sm:$0xff]
        %v3255 = vld [vmem:[%s7 + $0x6d0] sm:$0xff]
        %v3256 = vld [vmem:[%s7 + $0x6d8] sm:$0xff]
        %v3257 = vld [vmem:[%s7 + $0x6e0] sm:$0xf]
        %v3258 = vld [vmem:[%s7 + $0x6e4] sm:$0xff]
        %v3259 = vld [vmem:[%s7 + $0x6ec] sm:$0xff]
        %v3260 = vld [vmem:[%s7 + $0x6f4] sm:$0xff]
        %v3261 = vld [vmem:[%s7 + $0x6fc] sm:$0xf]
        %v3262 = vld [vmem:[%s7 + $0x700] sm:$0xff]
        %v3263 = vld [vmem:[%s7 + $0x708] sm:$0xff]
        %v3264 = vld [vmem:[%s7 + $0x710] sm:$0xff]
        %v3265 = vld [vmem:[%s7 + $0x718] sm:$0xf]
        %v3266 = vld [vmem:[%s7 + $0x71c] sm:$0xff]
        %v3267 = vld [vmem:[%s7 + $0x724] sm:$0xff]
        %v3268 = vld [vmem:[%s7 + $0x72c] sm:$0xff]
        %v3269 = vld [vmem:[%s7 + $0x734] sm:$0xf]
        %v3270 = vld [vmem:[%s7 + $0x738] sm:$0xff]
        %v3271 = vld [vmem:[%s7 + $0x740] sm:$0xff]
        %v3272 = vld [vmem:[%s7 + $0x748] sm:$0xff]
        %v3273 = vld [vmem:[%s7 + $0x750] sm:$0xf]
        %v3274 = vld [vmem:[%s7 + $0x754] sm:$0xff]
        %v3275 = vld [vmem:[%s7 + $0x75c] sm:$0xff]
        %v3276 = vld [vmem:[%s7 + $0x764] sm:$0xff]
        %v3277 = vld [vmem:[%s7 + $0x76c] sm:$0xf]
        %v3278 = vld [vmem:[%s7 + $0x770] sm:$0xff]
        %v3279 = vld [vmem:[%s7 + $0x778] sm:$0xff]
        %v3280 = vld [vmem:[%s7 + $0x780] sm:$0xff]
        %v3281 = vld [vmem:[%s7 + $0x788] sm:$0xf]
        %v3282 = vld [vmem:[%s7 + $0x78c] sm:$0xff]
        %v3283 = vld [vmem:[%s7 + $0x794] sm:$0xff]
        %v3284 = vld [vmem:[%s7 + $0x79c] sm:$0xff]
        %v3285 = vld [vmem:[%s7 + $0x7a4] sm:$0xf]
        %v3286 = vld [vmem:[%s7 + $0x7a8] sm:$0xff]
        %v3287 = vld [vmem:[%s7 + $0x7b0] sm:$0xff]
        %v3288 = vld [vmem:[%s7 + $0x7b8] sm:$0xff]
        %v3289 = vld [vmem:[%s7 + $0x7c0] sm:$0xf]
        %v3290 = vld [vmem:[%s7 + $0x7c4] sm:$0xff]
        %v3291 = vld [vmem:[%s7 + $0x7cc] sm:$0xff]
        %v3292 = vld [vmem:[%s7 + $0x7d4] sm:$0xff]
        %v3293 = vld [vmem:[%s7 + $0x7dc] sm:$0xf]
        %v3294 = vld [vmem:[%s7 + $0x7e0] sm:$0xff]
        %v3295 = vld [vmem:[%s7 + $0x7e8] sm:$0xff]
        %v3296 = vld [vmem:[%s7 + $0x7f0] sm:$0xff]
        %v3297 = vld [vmem:[%s7 + $0x7f8] sm:$0xf]
        %v3298 = vld [vmem:[%s7 + $0x7fc] sm:$0xff]
        %v3299 = vld [vmem:[%s7 + $0x804] sm:$0xff]
        %v3300 = vld [vmem:[%s7 + $0x80c] sm:$0xff]
        %v3301 = vld [vmem:[%s7 + $0x814] sm:$0xf]
        %v3302 = vld [vmem:[%s7 + $0x818] sm:$0xff]
        %v3303 = vld [vmem:[%s7 + $0x820] sm:$0xff]
        %v3304 = vld [vmem:[%s7 + $0x828] sm:$0xff]
        %v3305 = vld [vmem:[%s7 + $0x830] sm:$0xf]
        %v3306 = vld [vmem:[%s7 + $0x834] sm:$0xff]
        %v3307 = vld [vmem:[%s7 + $0x83c] sm:$0xff]
        %v3308 = vld [vmem:[%s7 + $0x844] sm:$0xff]
        %v3309 = vld [vmem:[%s7 + $0x84c] sm:$0xf]
        %v3310 = vld [vmem:[%s7 + $0x850] sm:$0xff]
        %v3311 = vld [vmem:[%s7 + $0x858] sm:$0xff]
        %v3312 = vld [vmem:[%s7 + $0x860] sm:$0xff]
        %v3313 = vld [vmem:[%s7 + $0x868] sm:$0xf]
        %v3314 = vld [vmem:[%s7 + $0x86c] sm:$0xff]
        %v3315 = vld [vmem:[%s7 + $0x874] sm:$0xff]
        %v3316 = vld [vmem:[%s7 + $0x87c] sm:$0xff]
        %v3317 = vld [vmem:[%s7 + $0x884] sm:$0xf]
        %v3318 = vld [vmem:[%s7 + $0x888] sm:$0xff]
        %v3319 = vld [vmem:[%s7 + $0x890] sm:$0xff]
        %v3320 = vld [vmem:[%s7 + $0x898] sm:$0xff]
        %v3321 = vld [vmem:[%s7 + $0x8a0] sm:$0xf]
        %v3322 = vld [vmem:[%s7 + $0x8a4] sm:$0xff]
        %v3323 = vld [vmem:[%s7 + $0x8ac] sm:$0xff]
        %v3324 = vld [vmem:[%s7 + $0x8b4] sm:$0xff]
        %v3325 = vld [vmem:[%s7 + $0x8bc] sm:$0xf]
        %v3326 = vld [vmem:[%s7 + $0x8c0] sm:$0xff]
        %v3327 = vld [vmem:[%s7 + $0x8c8] sm:$0xff]
        %v3328 = vld [vmem:[%s7 + $0x8d0] sm:$0xff]
        %v3329 = vld [vmem:[%s7 + $0x8d8] sm:$0xf]
        %v3330 = vld [vmem:[%s7 + $0x8dc] sm:$0xff]
        %v3331 = vld [vmem:[%s7 + $0x8e4] sm:$0xff]
        %v3332 = vld [vmem:[%s7 + $0x8ec] sm:$0xff]
        %v3333 = vld [vmem:[%s7 + $0x8f4] sm:$0xf]
        %v3334 = vld [vmem:[%s7 + $0x8f8] sm:$0xff]
        %v3335 = vld [vmem:[%s7 + $0x900] sm:$0xff]
        %v3336 = vld [vmem:[%s7 + $0x908] sm:$0xff]
        %v3337 = vld [vmem:[%s7 + $0x910] sm:$0xf]
        %v3338 = vld [vmem:[%s7 + $0x914] sm:$0xff]
        %v3339 = vld [vmem:[%s7 + $0x91c] sm:$0xff]
        %v3340 = vld [vmem:[%s7 + $0x924] sm:$0xff]
        %v3341 = vld [vmem:[%s7 + $0x92c] sm:$0xf]
        %v3342 = vld [vmem:[%s7 + $0x930] sm:$0xff]
        %v3343 = vld [vmem:[%s7 + $0x938] sm:$0xff]
        %v3344 = vld [vmem:[%s7 + $0x940] sm:$0xff]
        %v3345 = vld [vmem:[%s7 + $0x948] sm:$0xf]
        %v3346 = vld [vmem:[%s7 + $0x94c] sm:$0xff]
        %v3347 = vld [vmem:[%s7 + $0x954] sm:$0xff]
        %v3348 = vld [vmem:[%s7 + $0x95c] sm:$0xff]
        %v3349 = vld [vmem:[%s7 + $0x964] sm:$0xf]
        %v3350 = vld [vmem:[%s7 + $0x968] sm:$0xff]
        %v3351 = vld [vmem:[%s7 + $0x970] sm:$0xff]
        %v3352 = vld [vmem:[%s7 + $0x978] sm:$0xff]
        %v3353 = vld [vmem:[%s7 + $0x980] sm:$0xf]
        %v3354 = vld [vmem:[%s7 + $0x984] sm:$0xff]
        %v3355 = vld [vmem:[%s7 + $0x98c] sm:$0xff]
        %v3356 = vld [vmem:[%s7 + $0x994] sm:$0xff]
        %v3357 = vld [vmem:[%s7 + $0x99c] sm:$0xf]
        %v3358 = vld [vmem:[%s7 + $0x9a0] sm:$0xff]
        %v3359 = vld [vmem:[%s7 + $0x9a8] sm:$0xff]
        %v3360 = vld [vmem:[%s7 + $0x9b0] sm:$0xff]
        %v3361 = vld [vmem:[%s7 + $0x9b8] sm:$0xf]
        %v3362 = vld [vmem:[%s7 + $0x9bc] sm:$0xff]
        %v3363 = vld [vmem:[%s7 + $0x9c4] sm:$0xff]
        %v3364 = vld [vmem:[%s7 + $0x9cc] sm:$0xff]
        %v3365 = vld [vmem:[%s7 + $0x9d4] sm:$0xf]
        %v3366 = vld [vmem:[%s7 + $0x9d8] sm:$0xff]
        %v3367 = vld [vmem:[%s7 + $0x9e0] sm:$0xff]
        %v3368 = vld [vmem:[%s7 + $0x9e8] sm:$0xff]
        %v3369 = vld [vmem:[%s7 + $0x9f0] sm:$0xf]
        %v3370 = vld [vmem:[%s7 + $0x9f4] sm:$0xff]
        %v3371 = vld [vmem:[%s7 + $0x9fc] sm:$0xff]
        %v3372 = vld [vmem:[%s7 + $0xa04] sm:$0xff]
        %v3373 = vld [vmem:[%s7 + $0xa0c] sm:$0xf]
        %v3374 = vld [vmem:[%s7 + $0xa10] sm:$0xff]
        %v3375 = vld [vmem:[%s7 + $0xa18] sm:$0xff]
        %v3376 = vld [vmem:[%s7 + $0xa20] sm:$0xff]
        %v3377 = vld [vmem:[%s7 + $0xa28] sm:$0xf]
        %v3378 = vld [vmem:[%s7 + $0xa2c] sm:$0xff]
        %v3379 = vld [vmem:[%s7 + $0xa34] sm:$0xff]
        %v3380 = vld [vmem:[%s7 + $0xa3c] sm:$0xff]
        %v3381 = vld [vmem:[%s7 + $0xa44] sm:$0xf]
        %v3382 = vld [vmem:[%s7 + $0xa48] sm:$0xff]
        %v3383 = vld [vmem:[%s7 + $0xa50] sm:$0xff]
        %v3384 = vld [vmem:[%s7 + $0xa58] sm:$0xff]
        %v3385 = vld [vmem:[%s7 + $0xa60] sm:$0xf]
        %v3386 = vld [vmem:[%s7 + $0xa64] sm:$0xff]
        %v3387 = vld [vmem:[%s7 + $0xa6c] sm:$0xff]
        %v3388 = vld [vmem:[%s7 + $0xa74] sm:$0xff]
        %v3389 = vld [vmem:[%s7 + $0xa7c] sm:$0xf]
        %v3390 = vld [vmem:[%s7 + $0xa80] sm:$0xff]
        %v3391 = vld [vmem:[%s7 + $0xa88] sm:$0xff]
        %v3392 = vld [vmem:[%s7 + $0xa90] sm:$0xff]
        %v3393 = vld [vmem:[%s7 + $0xa98] sm:$0xf]
        %v3394 = vld [vmem:[%s7 + $0xa9c] sm:$0xff]
        %v3395 = vld [vmem:[%s7 + $0xaa4] sm:$0xff]
        %v3396 = vld [vmem:[%s7 + $0xaac] sm:$0xff]
        %v3397 = vld [vmem:[%s7 + $0xab4] sm:$0xf]
        %v3398 = vld [vmem:[%s7 + $0xab8] sm:$0xff]
        %v3399 = vld [vmem:[%s7 + $0xac0] sm:$0xff]
        %v3400 = vld [vmem:[%s7 + $0xac8] sm:$0xff]
        %v3401 = vld [vmem:[%s7 + $0xad0] sm:$0xf]
        %v3402 = vld [vmem:[%s7 + $0xad4] sm:$0xff]
        %v3403 = vld [vmem:[%s7 + $0xadc] sm:$0xff]
        %v3404 = vld [vmem:[%s7 + $0xae4] sm:$0xff]
        %v3405 = vld [vmem:[%s7 + $0xaec] sm:$0xf]
        %v3406 = vld [vmem:[%s7 + $0xaf0] sm:$0xff]
        %v3407 = vld [vmem:[%s7 + $0xaf8] sm:$0xff]
        %v3408 = vld [vmem:[%s7 + $0xb00] sm:$0xff]
        %v3409 = vld [vmem:[%s7 + $0xb08] sm:$0xf]
        %v3410 = vld [vmem:[%s7 + $0xb0c] sm:$0xff]
        %v3411 = vld [vmem:[%s7 + $0xb14] sm:$0xff]
        %v3412 = vld [vmem:[%s7 + $0xb1c] sm:$0xff]
        %v3413 = vld [vmem:[%s7 + $0xb24] sm:$0xf]
        %v3414 = vld [vmem:[%s7 + $0xb28] sm:$0xff]
        %v3415 = vld [vmem:[%s7 + $0xb30] sm:$0xff]
        %v3416 = vld [vmem:[%s7 + $0xb38] sm:$0xff]
        %v3417 = vld [vmem:[%s7 + $0xb40] sm:$0xf]
        %v3418 = vld [vmem:[%s7 + $0xb44] sm:$0xff]
        %v3419 = vld [vmem:[%s7 + $0xb4c] sm:$0xff]
        %v3420 = vld [vmem:[%s7 + $0xb54] sm:$0xff]
        %v3421 = vld [vmem:[%s7 + $0xb5c] sm:$0xf]
        %v3422 = vld [vmem:[%s7 + $0xb60] sm:$0xff]
        %v3423 = vld [vmem:[%s7 + $0xb68] sm:$0xff]
        %v3424 = vld [vmem:[%s7 + $0xb70] sm:$0xff]
        %v3425 = vld [vmem:[%s7 + $0xb78] sm:$0xf]
        %v3426 = vld [vmem:[%s7 + $0xb7c] sm:$0xff]
        %v3427 = vld [vmem:[%s7 + $0xb84] sm:$0xff]
        %v3428 = vld [vmem:[%s7 + $0xb8c] sm:$0xff]
        %v3429 = vld [vmem:[%s7 + $0xb94] sm:$0xf]
        %v3430 = vld [vmem:[%s7 + $0xb98] sm:$0xff]
        %v3431 = vld [vmem:[%s7 + $0xba0] sm:$0xff]
        %v3432 = vld [vmem:[%s7 + $0xba8] sm:$0xff]
        %v3433 = vld [vmem:[%s7 + $0xbb0] sm:$0xf]
        %v3434 = vld [vmem:[%s7 + $0xbb4] sm:$0xff]
        %v3435 = vld [vmem:[%s7 + $0xbbc] sm:$0xff]
        %v3436 = vld [vmem:[%s7 + $0xbc4] sm:$0xff]
        %v3437 = vld [vmem:[%s7 + $0xbcc] sm:$0xf]
        %v3438 = vld [vmem:[%s7 + $0xbd0] sm:$0xff]
        %v3439 = vld [vmem:[%s7 + $0xbd8] sm:$0xff]
        %v3440 = vld [vmem:[%s7 + $0xbe0] sm:$0xff]
        %v3441 = vld [vmem:[%s7 + $0xbe8] sm:$0xf]
        %v3442 = vld [vmem:[%s7 + $0xbec] sm:$0xff]
        %v3443 = vld [vmem:[%s7 + $0xbf4] sm:$0xff]
        %v3444 = vld [vmem:[%s7 + $0xbfc] sm:$0xff]
        %v3445 = vld [vmem:[%s7 + $0xc04] sm:$0xf]
        %v3446 = vld [vmem:[%s7 + $0xc08] sm:$0xff]
        %v3447 = vld [vmem:[%s7 + $0xc10] sm:$0xff]
        %v3448 = vld [vmem:[%s7 + $0xc18] sm:$0xff]
        %v3449 = vld [vmem:[%s7 + $0xc20] sm:$0xf]
        %v3450 = vld [vmem:[%s7 + $0xc24] sm:$0xff]
        %v3451 = vld [vmem:[%s7 + $0xc2c] sm:$0xff]
        %v3452 = vld [vmem:[%s7 + $0xc34] sm:$0xff]
        %v3453 = vld [vmem:[%s7 + $0xc3c] sm:$0xf]
        %v3454 = vld [vmem:[%s7 + $0xc40] sm:$0xff]
        %v3455 = vld [vmem:[%s7 + $0xc48] sm:$0xff]
        %v3456 = vld [vmem:[%s7 + $0xc50] sm:$0xff]
        %v3457 = vld [vmem:[%s7 + $0xc58] sm:$0xf]
        %v3458 = vld [vmem:[%s7 + $0xc5c] sm:$0xff]
        %v3459 = vld [vmem:[%s7 + $0xc64] sm:$0xff]
        %v3460 = vld [vmem:[%s7 + $0xc6c] sm:$0xff]
        %v3461 = vld [vmem:[%s7 + $0xc74] sm:$0xf]
        %v3462 = vld [vmem:[%s7 + $0xc78] sm:$0xff]
        %v3463 = vld [vmem:[%s7 + $0xc80] sm:$0xff]
        %v3464 = vld [vmem:[%s7 + $0xc88] sm:$0xff]
        %v3465 = vld [vmem:[%s7 + $0xc90] sm:$0xf]
        %v3466 = vld [vmem:[%s7 + $0xc94] sm:$0xff]
        %v3467 = vld [vmem:[%s7 + $0xc9c] sm:$0xff]
        %v3468 = vld [vmem:[%s7 + $0xca4] sm:$0xff]
        %v3469 = vld [vmem:[%s7 + $0xcac] sm:$0xf]
        %v3470 = vld [vmem:[%s7 + $0xcb0] sm:$0xff]
        %v3471 = vld [vmem:[%s7 + $0xcb8] sm:$0xff]
        %v3472 = vld [vmem:[%s7 + $0xcc0] sm:$0xff]
        %v3473 = vld [vmem:[%s7 + $0xcc8] sm:$0xf]
        %v3474 = vld [vmem:[%s7 + $0xccc] sm:$0xff]
        %v3475 = vld [vmem:[%s7 + $0xcd4] sm:$0xff]
        %v3476 = vld [vmem:[%s7 + $0xcdc] sm:$0xff]
        %v3477 = vld [vmem:[%s7 + $0xce4] sm:$0xf]
        %v3478 = vld [vmem:[%s7 + $0xce8] sm:$0xff]
        %v3479 = vld [vmem:[%s7 + $0xcf0] sm:$0xff]
        %v3480 = vld [vmem:[%s7 + $0xcf8] sm:$0xff]
        %v3481 = vld [vmem:[%s7 + $0xd00] sm:$0xf]
        %v3482 = vld [vmem:[%s7 + $0xd04] sm:$0xff]
        %v3483 = vld [vmem:[%s7 + $0xd0c] sm:$0xff]
        %v3484 = vld [vmem:[%s7 + $0xd14] sm:$0xff]
        %v3485 = vld [vmem:[%s7 + $0xd1c] sm:$0xf]
        %v3486 = vld [vmem:[%s7 + $0xd20] sm:$0xff]
        %v3487 = vld [vmem:[%s7 + $0xd28] sm:$0xff]
        %v3488 = vld [vmem:[%s7 + $0xd30] sm:$0xff]
        %v3489 = vld [vmem:[%s7 + $0xd38] sm:$0xf]
        %v3490 = vld [vmem:[%s7 + $0xd3c] sm:$0xff]
        %v3491 = vld [vmem:[%s7 + $0xd44] sm:$0xff]
        %v3492 = vld [vmem:[%s7 + $0xd4c] sm:$0xff]
        %v3493 = vld [vmem:[%s7 + $0xd54] sm:$0xf]
        %v3494 = vld [vmem:[%s7 + $0xd58] sm:$0xff]
        %v3495 = vld [vmem:[%s7 + $0xd60] sm:$0xff]
        %v3496 = vld [vmem:[%s7 + $0xd68] sm:$0xff]
        %v3497 = vld [vmem:[%s7 + $0xd70] sm:$0xf]
        %v3498 = vld [vmem:[%s7 + $0xd74] sm:$0xff]
        %v3499 = vld [vmem:[%s7 + $0xd7c] sm:$0xff]
        %v3500 = vld [vmem:[%s7 + $0xd84] sm:$0xff]
        %v3501 = vld [vmem:[%s7 + $0xd8c] sm:$0xf]
        %v3502 = vld [vmem:[%s7 + $0xd90] sm:$0xff]
        %v3503 = vld [vmem:[%s7 + $0xd98] sm:$0xff]
        %v3504 = vld [vmem:[%s7 + $0xda0] sm:$0xff]
        %v3505 = vld [vmem:[%s7 + $0xda8] sm:$0xf]
        %v3506 = vld [vmem:[%s7 + $0xdac] sm:$0xff]
        %v3507 = vld [vmem:[%s7 + $0xdb4] sm:$0xff]
        %v3508 = vld [vmem:[%s7 + $0xdbc] sm:$0xff]
        %v3509 = vld [vmem:[%s7 + $0xdc4] sm:$0xf]
        %v3510 = vld [vmem:[%s7 + $0xdc8] sm:$0xff]
        %v3511 = vld [vmem:[%s7 + $0xdd0] sm:$0xff]
        %v3512 = vld [vmem:[%s7 + $0xdd8] sm:$0xff]
        %v3513 = vld [vmem:[%s7 + $0xde0] sm:$0xf]
        %v3514 = vld [vmem:[%s7 + $0xde4] sm:$0xff]
        %v3515 = vld [vmem:[%s7 + $0xdec] sm:$0xff]
        %v3516 = vld [vmem:[%s7 + $0xdf4] sm:$0xff]
        %v3517 = vld [vmem:[%s7 + $0xdfc] sm:$0xf]
        %v3518 = vld [vmem:[%s8] sm:$0x7f]
        %v3520 = vlaneseq
        %v3521 = vshrl.u32 %v3520, 7
        %v3522 = vsub.s32 0, %v3521
        %v3523 = vrot.slane %v3518, %v3522
        %v3524 = vlaneseq
        %v3525 = vshrl.u32 %v3524, 7
        %v3526 = vsub.s32 1, %v3525
        %v3527 = vrot.slane %v3518, %v3526
        %v3528 = vlaneseq
        %v3529 = vshrl.u32 %v3528, 7
        %v3530 = vsub.s32 2, %v3529
        %v3531 = vrot.slane %v3518, %v3530
        %v3532 = vlaneseq
        %v3533 = vshrl.u32 %v3532, 7
        %v3534 = vsub.s32 3, %v3533
        %v3535 = vrot.slane %v3518, %v3534
        %v3536 = vlaneseq
        %v3537 = vshrl.u32 %v3536, 7
        %v3538 = vsub.s32 4, %v3537
        %v3539 = vrot.slane %v3518, %v3538
        %v3540 = vlaneseq
        %v3541 = vshrl.u32 %v3540, 7
        %v3542 = vsub.s32 5, %v3541
        %v3543 = vrot.slane %v3518, %v3542
        %v3544 = vlaneseq
        %v3545 = vshrl.u32 %v3544, 7
        %v3546 = vsub.s32 6, %v3545
        %v3547 = vrot.slane %v3518, %v3546
        %v4067 = vunpack.c.l.b16 %v3006
        %v4068 = vunpack.c.h.b16 %v3006
        %v4069 = vunpack.c.l.b16 %v3007
        %v4070 = vunpack.c.h.b16 %v3007
        %v4071 = vunpack.c.l.b16 %v3008
        %v4072 = vunpack.c.h.b16 %v3008
        %v4073 = vunpack.c.l.b16 %v3009
        %v4074 = vunpack.c.l.b16 %v3010
        %v4075 = vunpack.c.h.b16 %v3010
        %v4076 = vunpack.c.l.b16 %v3011
        %v4077 = vunpack.c.h.b16 %v3011
        %v4078 = vunpack.c.l.b16 %v3012
        %v4079 = vunpack.c.h.b16 %v3012
        %v4080 = vunpack.c.l.b16 %v3013
        %v4081 = vunpack.c.l.b16 %v3014
        %v4082 = vunpack.c.h.b16 %v3014
        %v4083 = vunpack.c.l.b16 %v3015
        %v4084 = vunpack.c.h.b16 %v3015
        %v4085 = vunpack.c.l.b16 %v3016
        %v4086 = vunpack.c.h.b16 %v3016
        %v4087 = vunpack.c.l.b16 %v3017
        %v4088 = vunpack.c.l.b16 %v3018
        %v4089 = vunpack.c.h.b16 %v3018
        %v4090 = vunpack.c.l.b16 %v3019
        %v4091 = vunpack.c.h.b16 %v3019
        %v4092 = vunpack.c.l.b16 %v3020
        %v4093 = vunpack.c.h.b16 %v3020
        %v4094 = vunpack.c.l.b16 %v3021
        %v4095 = vunpack.c.l.b16 %v3022
        %v4096 = vunpack.c.h.b16 %v3022
        %v4097 = vunpack.c.l.b16 %v3023
        %v4098 = vunpack.c.h.b16 %v3023
        %v4099 = vunpack.c.l.b16 %v3024
        %v4100 = vunpack.c.h.b16 %v3024
        %v4101 = vunpack.c.l.b16 %v3025
        %v4102 = vunpack.c.l.b16 %v3026
        %v4103 = vunpack.c.h.b16 %v3026
        %v4104 = vunpack.c.l.b16 %v3027
        %v4105 = vunpack.c.h.b16 %v3027
        %v4106 = vunpack.c.l.b16 %v3028
        %v4107 = vunpack.c.h.b16 %v3028
        %v4108 = vunpack.c.l.b16 %v3029
        %v4109 = vunpack.c.l.b16 %v3030
        %v4110 = vunpack.c.h.b16 %v3030
        %v4111 = vunpack.c.l.b16 %v3031
        %v4112 = vunpack.c.h.b16 %v3031
        %v4113 = vunpack.c.l.b16 %v3032
        %v4114 = vunpack.c.h.b16 %v3032
        %v4115 = vunpack.c.l.b16 %v3033
        %v4116 = vunpack.c.l.b16 %v3034
        %v4117 = vunpack.c.h.b16 %v3034
        %v4118 = vunpack.c.l.b16 %v3035
        %v4119 = vunpack.c.h.b16 %v3035
        %v4120 = vunpack.c.l.b16 %v3036
        %v4121 = vunpack.c.h.b16 %v3036
        %v4122 = vunpack.c.l.b16 %v3037
        %v4123 = vunpack.c.l.b16 %v3038
        %v4124 = vunpack.c.h.b16 %v3038
        %v4125 = vunpack.c.l.b16 %v3039
        %v4126 = vunpack.c.h.b16 %v3039
        %v4127 = vunpack.c.l.b16 %v3040
        %v4128 = vunpack.c.h.b16 %v3040
        %v4129 = vunpack.c.l.b16 %v3041
        %v4130 = vunpack.c.l.b16 %v3042
        %v4131 = vunpack.c.h.b16 %v3042
        %v4132 = vunpack.c.l.b16 %v3043
        %v4133 = vunpack.c.h.b16 %v3043
        %v4134 = vunpack.c.l.b16 %v3044
        %v4135 = vunpack.c.h.b16 %v3044
        %v4136 = vunpack.c.l.b16 %v3045
        %v4137 = vunpack.c.l.b16 %v3046
        %v4138 = vunpack.c.h.b16 %v3046
        %v4139 = vunpack.c.l.b16 %v3047
        %v4140 = vunpack.c.h.b16 %v3047
        %v4141 = vunpack.c.l.b16 %v3048
        %v4142 = vunpack.c.h.b16 %v3048
        %v4143 = vunpack.c.l.b16 %v3049
        %v4144 = vunpack.c.l.b16 %v3050
        %v4145 = vunpack.c.h.b16 %v3050
        %v4146 = vunpack.c.l.b16 %v3051
        %v4147 = vunpack.c.h.b16 %v3051
        %v4148 = vunpack.c.l.b16 %v3052
        %v4149 = vunpack.c.h.b16 %v3052
        %v4150 = vunpack.c.l.b16 %v3053
        %v4151 = vunpack.c.l.b16 %v3054
        %v4152 = vunpack.c.h.b16 %v3054
        %v4153 = vunpack.c.l.b16 %v3055
        %v4154 = vunpack.c.h.b16 %v3055
        %v4155 = vunpack.c.l.b16 %v3056
        %v4156 = vunpack.c.h.b16 %v3056
        %v4157 = vunpack.c.l.b16 %v3057
        %v4158 = vunpack.c.l.b16 %v3058
        %v4159 = vunpack.c.h.b16 %v3058
        %v4160 = vunpack.c.l.b16 %v3059
        %v4161 = vunpack.c.h.b16 %v3059
        %v4162 = vunpack.c.l.b16 %v3060
        %v4163 = vunpack.c.h.b16 %v3060
        %v4164 = vunpack.c.l.b16 %v3061
        %v4165 = vunpack.c.l.b16 %v3062
        %v4166 = vunpack.c.h.b16 %v3062
        %v4167 = vunpack.c.l.b16 %v3063
        %v4168 = vunpack.c.h.b16 %v3063
        %v4169 = vunpack.c.l.b16 %v3064
        %v4170 = vunpack.c.h.b16 %v3064
        %v4171 = vunpack.c.l.b16 %v3065
        %v4172 = vunpack.c.l.b16 %v3066
        %v4173 = vunpack.c.h.b16 %v3066
        %v4174 = vunpack.c.l.b16 %v3067
        %v4175 = vunpack.c.h.b16 %v3067
        %v4176 = vunpack.c.l.b16 %v3068
        %v4177 = vunpack.c.h.b16 %v3068
        %v4178 = vunpack.c.l.b16 %v3069
        %v4179 = vunpack.c.l.b16 %v3070
        %v4180 = vunpack.c.h.b16 %v3070
        %v4181 = vunpack.c.l.b16 %v3071
        %v4182 = vunpack.c.h.b16 %v3071
        %v4183 = vunpack.c.l.b16 %v3072
        %v4184 = vunpack.c.h.b16 %v3072
        %v4185 = vunpack.c.l.b16 %v3073
        %v4186 = vunpack.c.l.b16 %v3074
        %v4187 = vunpack.c.h.b16 %v3074
        %v4188 = vunpack.c.l.b16 %v3075
        %v4189 = vunpack.c.h.b16 %v3075
        %v4190 = vunpack.c.l.b16 %v3076
        %v4191 = vunpack.c.h.b16 %v3076
        %v4192 = vunpack.c.l.b16 %v3077
        %v4193 = vunpack.c.l.b16 %v3078
        %v4194 = vunpack.c.h.b16 %v3078
        %v4195 = vunpack.c.l.b16 %v3079
        %v4196 = vunpack.c.h.b16 %v3079
        %v4197 = vunpack.c.l.b16 %v3080
        %v4198 = vunpack.c.h.b16 %v3080
        %v4199 = vunpack.c.l.b16 %v3081
        %v4200 = vunpack.c.l.b16 %v3082
        %v4201 = vunpack.c.h.b16 %v3082
        %v4202 = vunpack.c.l.b16 %v3083
        %v4203 = vunpack.c.h.b16 %v3083
        %v4204 = vunpack.c.l.b16 %v3084
        %v4205 = vunpack.c.h.b16 %v3084
        %v4206 = vunpack.c.l.b16 %v3085
        %v4207 = vunpack.c.l.b16 %v3086
        %v4208 = vunpack.c.h.b16 %v3086
        %v4209 = vunpack.c.l.b16 %v3087
        %v4210 = vunpack.c.h.b16 %v3087
        %v4211 = vunpack.c.l.b16 %v3088
        %v4212 = vunpack.c.h.b16 %v3088
        %v4213 = vunpack.c.l.b16 %v3089
        %v4214 = vunpack.c.l.b16 %v3090
        %v4215 = vunpack.c.h.b16 %v3090
        %v4216 = vunpack.c.l.b16 %v3091
        %v4217 = vunpack.c.h.b16 %v3091
        %v4218 = vunpack.c.l.b16 %v3092
        %v4219 = vunpack.c.h.b16 %v3092
        %v4220 = vunpack.c.l.b16 %v3093
        %v4221 = vunpack.c.l.b16 %v3094
        %v4222 = vunpack.c.h.b16 %v3094
        %v4223 = vunpack.c.l.b16 %v3095
        %v4224 = vunpack.c.h.b16 %v3095
        %v4225 = vunpack.c.l.b16 %v3096
        %v4226 = vunpack.c.h.b16 %v3096
        %v4227 = vunpack.c.l.b16 %v3097
        %v4228 = vunpack.c.l.b16 %v3098
        %v4229 = vunpack.c.h.b16 %v3098
        %v4230 = vunpack.c.l.b16 %v3099
        %v4231 = vunpack.c.h.b16 %v3099
        %v4232 = vunpack.c.l.b16 %v3100
        %v4233 = vunpack.c.h.b16 %v3100
        %v4234 = vunpack.c.l.b16 %v3101
        %v4235 = vunpack.c.l.b16 %v3102
        %v4236 = vunpack.c.h.b16 %v3102
        %v4237 = vunpack.c.l.b16 %v3103
        %v4238 = vunpack.c.h.b16 %v3103
        %v4239 = vunpack.c.l.b16 %v3104
        %v4240 = vunpack.c.h.b16 %v3104
        %v4241 = vunpack.c.l.b16 %v3105
        %v4242 = vunpack.c.l.b16 %v3106
        %v4243 = vunpack.c.h.b16 %v3106
        %v4244 = vunpack.c.l.b16 %v3107
        %v4245 = vunpack.c.h.b16 %v3107
        %v4246 = vunpack.c.l.b16 %v3108
        %v4247 = vunpack.c.h.b16 %v3108
        %v4248 = vunpack.c.l.b16 %v3109
        %v4249 = vunpack.c.l.b16 %v3110
        %v4250 = vunpack.c.h.b16 %v3110
        %v4251 = vunpack.c.l.b16 %v3111
        %v4252 = vunpack.c.h.b16 %v3111
        %v4253 = vunpack.c.l.b16 %v3112
        %v4254 = vunpack.c.h.b16 %v3112
        %v4255 = vunpack.c.l.b16 %v3113
        %v4256 = vunpack.c.l.b16 %v3114
        %v4257 = vunpack.c.h.b16 %v3114
        %v4258 = vunpack.c.l.b16 %v3115
        %v4259 = vunpack.c.h.b16 %v3115
        %v4260 = vunpack.c.l.b16 %v3116
        %v4261 = vunpack.c.h.b16 %v3116
        %v4262 = vunpack.c.l.b16 %v3117
        %v4263 = vunpack.c.l.b16 %v3118
        %v4264 = vunpack.c.h.b16 %v3118
        %v4265 = vunpack.c.l.b16 %v3119
        %v4266 = vunpack.c.h.b16 %v3119
        %v4267 = vunpack.c.l.b16 %v3120
        %v4268 = vunpack.c.h.b16 %v3120
        %v4269 = vunpack.c.l.b16 %v3121
        %v4270 = vunpack.c.l.b16 %v3122
        %v4271 = vunpack.c.h.b16 %v3122
        %v4272 = vunpack.c.l.b16 %v3123
        %v4273 = vunpack.c.h.b16 %v3123
        %v4274 = vunpack.c.l.b16 %v3124
        %v4275 = vunpack.c.h.b16 %v3124
        %v4276 = vunpack.c.l.b16 %v3125
        %v4277 = vunpack.c.l.b16 %v3126
        %v4278 = vunpack.c.h.b16 %v3126
        %v4279 = vunpack.c.l.b16 %v3127
        %v4280 = vunpack.c.h.b16 %v3127
        %v4281 = vunpack.c.l.b16 %v3128
        %v4282 = vunpack.c.h.b16 %v3128
        %v4283 = vunpack.c.l.b16 %v3129
        %v4284 = vunpack.c.l.b16 %v3130
        %v4285 = vunpack.c.h.b16 %v3130
        %v4286 = vunpack.c.l.b16 %v3131
        %v4287 = vunpack.c.h.b16 %v3131
        %v4288 = vunpack.c.l.b16 %v3132
        %v4289 = vunpack.c.h.b16 %v3132
        %v4290 = vunpack.c.l.b16 %v3133
        %v4291 = vunpack.c.l.b16 %v3134
        %v4292 = vunpack.c.h.b16 %v3134
        %v4293 = vunpack.c.l.b16 %v3135
        %v4294 = vunpack.c.h.b16 %v3135
        %v4295 = vunpack.c.l.b16 %v3136
        %v4296 = vunpack.c.h.b16 %v3136
        %v4297 = vunpack.c.l.b16 %v3137
        %v4298 = vunpack.c.l.b16 %v3138
        %v4299 = vunpack.c.h.b16 %v3138
        %v4300 = vunpack.c.l.b16 %v3139
        %v4301 = vunpack.c.h.b16 %v3139
        %v4302 = vunpack.c.l.b16 %v3140
        %v4303 = vunpack.c.h.b16 %v3140
        %v4304 = vunpack.c.l.b16 %v3141
        %v4305 = vunpack.c.l.b16 %v3142
        %v4306 = vunpack.c.h.b16 %v3142
        %v4307 = vunpack.c.l.b16 %v3143
        %v4308 = vunpack.c.h.b16 %v3143
        %v4309 = vunpack.c.l.b16 %v3144
        %v4310 = vunpack.c.h.b16 %v3144
        %v4311 = vunpack.c.l.b16 %v3145
        %v4312 = vunpack.c.l.b16 %v3146
        %v4313 = vunpack.c.h.b16 %v3146
        %v4314 = vunpack.c.l.b16 %v3147
        %v4315 = vunpack.c.h.b16 %v3147
        %v4316 = vunpack.c.l.b16 %v3148
        %v4317 = vunpack.c.h.b16 %v3148
        %v4318 = vunpack.c.l.b16 %v3149
        %v4319 = vunpack.c.l.b16 %v3150
        %v4320 = vunpack.c.h.b16 %v3150
        %v4321 = vunpack.c.l.b16 %v3151
        %v4322 = vunpack.c.h.b16 %v3151
        %v4323 = vunpack.c.l.b16 %v3152
        %v4324 = vunpack.c.h.b16 %v3152
        %v4325 = vunpack.c.l.b16 %v3153
        %v4326 = vunpack.c.l.b16 %v3154
        %v4327 = vunpack.c.h.b16 %v3154
        %v4328 = vunpack.c.l.b16 %v3155
        %v4329 = vunpack.c.h.b16 %v3155
        %v4330 = vunpack.c.l.b16 %v3156
        %v4331 = vunpack.c.h.b16 %v3156
        %v4332 = vunpack.c.l.b16 %v3157
        %v4333 = vunpack.c.l.b16 %v3158
        %v4334 = vunpack.c.h.b16 %v3158
        %v4335 = vunpack.c.l.b16 %v3159
        %v4336 = vunpack.c.h.b16 %v3159
        %v4337 = vunpack.c.l.b16 %v3160
        %v4338 = vunpack.c.h.b16 %v3160
        %v4339 = vunpack.c.l.b16 %v3161
        %v4340 = vunpack.c.l.b16 %v3162
        %v4341 = vunpack.c.h.b16 %v3162
        %v4342 = vunpack.c.l.b16 %v3163
        %v4343 = vunpack.c.h.b16 %v3163
        %v4344 = vunpack.c.l.b16 %v3164
        %v4345 = vunpack.c.h.b16 %v3164
        %v4346 = vunpack.c.l.b16 %v3165
        %v4347 = vunpack.c.l.b16 %v3166
        %v4348 = vunpack.c.h.b16 %v3166
        %v4349 = vunpack.c.l.b16 %v3167
        %v4350 = vunpack.c.h.b16 %v3167
        %v4351 = vunpack.c.l.b16 %v3168
        %v4352 = vunpack.c.h.b16 %v3168
        %v4353 = vunpack.c.l.b16 %v3169
        %v4354 = vunpack.c.l.b16 %v3170
        %v4355 = vunpack.c.h.b16 %v3170
        %v4356 = vunpack.c.l.b16 %v3171
        %v4357 = vunpack.c.h.b16 %v3171
        %v4358 = vunpack.c.l.b16 %v3172
        %v4359 = vunpack.c.h.b16 %v3172
        %v4360 = vunpack.c.l.b16 %v3173
        %v4361 = vunpack.c.l.b16 %v3174
        %v4362 = vunpack.c.h.b16 %v3174
        %v4363 = vunpack.c.l.b16 %v3175
        %v4364 = vunpack.c.h.b16 %v3175
        %v4365 = vunpack.c.l.b16 %v3176
        %v4366 = vunpack.c.h.b16 %v3176
        %v4367 = vunpack.c.l.b16 %v3177
        %v4368 = vunpack.c.l.b16 %v3178
        %v4369 = vunpack.c.h.b16 %v3178
        %v4370 = vunpack.c.l.b16 %v3179
        %v4371 = vunpack.c.h.b16 %v3179
        %v4372 = vunpack.c.l.b16 %v3180
        %v4373 = vunpack.c.h.b16 %v3180
        %v4374 = vunpack.c.l.b16 %v3181
        %v4375 = vunpack.c.l.b16 %v3182
        %v4376 = vunpack.c.h.b16 %v3182
        %v4377 = vunpack.c.l.b16 %v3183
        %v4378 = vunpack.c.h.b16 %v3183
        %v4379 = vunpack.c.l.b16 %v3184
        %v4380 = vunpack.c.h.b16 %v3184
        %v4381 = vunpack.c.l.b16 %v3185
        %v4382 = vunpack.c.l.b16 %v3186
        %v4383 = vunpack.c.h.b16 %v3186
        %v4384 = vunpack.c.l.b16 %v3187
        %v4385 = vunpack.c.h.b16 %v3187
        %v4386 = vunpack.c.l.b16 %v3188
        %v4387 = vunpack.c.h.b16 %v3188
        %v4388 = vunpack.c.l.b16 %v3189
        %v4389 = vunpack.c.l.b16 %v3190
        %v4390 = vunpack.c.h.b16 %v3190
        %v4391 = vunpack.c.l.b16 %v3191
        %v4392 = vunpack.c.h.b16 %v3191
        %v4393 = vunpack.c.l.b16 %v3192
        %v4394 = vunpack.c.h.b16 %v3192
        %v4395 = vunpack.c.l.b16 %v3193
        %v4396 = vunpack.c.l.b16 %v3194
        %v4397 = vunpack.c.h.b16 %v3194
        %v4398 = vunpack.c.l.b16 %v3195
        %v4399 = vunpack.c.h.b16 %v3195
        %v4400 = vunpack.c.l.b16 %v3196
        %v4401 = vunpack.c.h.b16 %v3196
        %v4402 = vunpack.c.l.b16 %v3197
        %v4403 = vunpack.c.l.b16 %v3198
        %v4404 = vunpack.c.h.b16 %v3198
        %v4405 = vunpack.c.l.b16 %v3199
        %v4406 = vunpack.c.h.b16 %v3199
        %v4407 = vunpack.c.l.b16 %v3200
        %v4408 = vunpack.c.h.b16 %v3200
        %v4409 = vunpack.c.l.b16 %v3201
        %v4410 = vunpack.c.l.b16 %v3202
        %v4411 = vunpack.c.h.b16 %v3202
        %v4412 = vunpack.c.l.b16 %v3203
        %v4413 = vunpack.c.h.b16 %v3203
        %v4414 = vunpack.c.l.b16 %v3204
        %v4415 = vunpack.c.h.b16 %v3204
        %v4416 = vunpack.c.l.b16 %v3205
        %v4417 = vunpack.c.l.b16 %v3206
        %v4418 = vunpack.c.h.b16 %v3206
        %v4419 = vunpack.c.l.b16 %v3207
        %v4420 = vunpack.c.h.b16 %v3207
        %v4421 = vunpack.c.l.b16 %v3208
        %v4422 = vunpack.c.h.b16 %v3208
        %v4423 = vunpack.c.l.b16 %v3209
        %v4424 = vunpack.c.l.b16 %v3210
        %v4425 = vunpack.c.h.b16 %v3210
        %v4426 = vunpack.c.l.b16 %v3211
        %v4427 = vunpack.c.h.b16 %v3211
        %v4428 = vunpack.c.l.b16 %v3212
        %v4429 = vunpack.c.h.b16 %v3212
        %v4430 = vunpack.c.l.b16 %v3213
        %v4431 = vunpack.c.l.b16 %v3214
        %v4432 = vunpack.c.h.b16 %v3214
        %v4433 = vunpack.c.l.b16 %v3215
        %v4434 = vunpack.c.h.b16 %v3215
        %v4435 = vunpack.c.l.b16 %v3216
        %v4436 = vunpack.c.h.b16 %v3216
        %v4437 = vunpack.c.l.b16 %v3217
        %v4438 = vunpack.c.l.b16 %v3218
        %v4439 = vunpack.c.h.b16 %v3218
        %v4440 = vunpack.c.l.b16 %v3219
        %v4441 = vunpack.c.h.b16 %v3219
        %v4442 = vunpack.c.l.b16 %v3220
        %v4443 = vunpack.c.h.b16 %v3220
        %v4444 = vunpack.c.l.b16 %v3221
        %v4445 = vunpack.c.l.b16 %v3222
        %v4446 = vunpack.c.h.b16 %v3222
        %v4447 = vunpack.c.l.b16 %v3223
        %v4448 = vunpack.c.h.b16 %v3223
        %v4449 = vunpack.c.l.b16 %v3224
        %v4450 = vunpack.c.h.b16 %v3224
        %v4451 = vunpack.c.l.b16 %v3225
        %v4452 = vunpack.c.l.b16 %v3226
        %v4453 = vunpack.c.h.b16 %v3226
        %v4454 = vunpack.c.l.b16 %v3227
        %v4455 = vunpack.c.h.b16 %v3227
        %v4456 = vunpack.c.l.b16 %v3228
        %v4457 = vunpack.c.h.b16 %v3228
        %v4458 = vunpack.c.l.b16 %v3229
        %v4459 = vunpack.c.l.b16 %v3230
        %v4460 = vunpack.c.h.b16 %v3230
        %v4461 = vunpack.c.l.b16 %v3231
        %v4462 = vunpack.c.h.b16 %v3231
        %v4463 = vunpack.c.l.b16 %v3232
        %v4464 = vunpack.c.h.b16 %v3232
        %v4465 = vunpack.c.l.b16 %v3233
        %v4466 = vunpack.c.l.b16 %v3234
        %v4467 = vunpack.c.h.b16 %v3234
        %v4468 = vunpack.c.l.b16 %v3235
        %v4469 = vunpack.c.h.b16 %v3235
        %v4470 = vunpack.c.l.b16 %v3236
        %v4471 = vunpack.c.h.b16 %v3236
        %v4472 = vunpack.c.l.b16 %v3237
        %v4473 = vunpack.c.l.b16 %v3238
        %v4474 = vunpack.c.h.b16 %v3238
        %v4475 = vunpack.c.l.b16 %v3239
        %v4476 = vunpack.c.h.b16 %v3239
        %v4477 = vunpack.c.l.b16 %v3240
        %v4478 = vunpack.c.h.b16 %v3240
        %v4479 = vunpack.c.l.b16 %v3241
        %v4480 = vunpack.c.l.b16 %v3242
        %v4481 = vunpack.c.h.b16 %v3242
        %v4482 = vunpack.c.l.b16 %v3243
        %v4483 = vunpack.c.h.b16 %v3243
        %v4484 = vunpack.c.l.b16 %v3244
        %v4485 = vunpack.c.h.b16 %v3244
        %v4486 = vunpack.c.l.b16 %v3245
        %v4487 = vunpack.c.l.b16 %v3246
        %v4488 = vunpack.c.h.b16 %v3246
        %v4489 = vunpack.c.l.b16 %v3247
        %v4490 = vunpack.c.h.b16 %v3247
        %v4491 = vunpack.c.l.b16 %v3248
        %v4492 = vunpack.c.h.b16 %v3248
        %v4493 = vunpack.c.l.b16 %v3249
        %v4494 = vunpack.c.l.b16 %v3250
        %v4495 = vunpack.c.h.b16 %v3250
        %v4496 = vunpack.c.l.b16 %v3251
        %v4497 = vunpack.c.h.b16 %v3251
        %v4498 = vunpack.c.l.b16 %v3252
        %v4499 = vunpack.c.h.b16 %v3252
        %v4500 = vunpack.c.l.b16 %v3253
        %v4501 = vunpack.c.l.b16 %v3254
        %v4502 = vunpack.c.h.b16 %v3254
        %v4503 = vunpack.c.l.b16 %v3255
        %v4504 = vunpack.c.h.b16 %v3255
        %v4505 = vunpack.c.l.b16 %v3256
        %v4506 = vunpack.c.h.b16 %v3256
        %v4507 = vunpack.c.l.b16 %v3257
        %v4508 = vunpack.c.l.b16 %v3258
        %v4509 = vunpack.c.h.b16 %v3258
        %v4510 = vunpack.c.l.b16 %v3259
        %v4511 = vunpack.c.h.b16 %v3259
        %v4512 = vunpack.c.l.b16 %v3260
        %v4513 = vunpack.c.h.b16 %v3260
        %v4514 = vunpack.c.l.b16 %v3261
        %v4515 = vunpack.c.l.b16 %v3262
        %v4516 = vunpack.c.h.b16 %v3262
        %v4517 = vunpack.c.l.b16 %v3263
        %v4518 = vunpack.c.h.b16 %v3263
        %v4519 = vunpack.c.l.b16 %v3264
        %v4520 = vunpack.c.h.b16 %v3264
        %v4521 = vunpack.c.l.b16 %v3265
        %v4522 = vunpack.c.l.b16 %v3266
        %v4523 = vunpack.c.h.b16 %v3266
        %v4524 = vunpack.c.l.b16 %v3267
        %v4525 = vunpack.c.h.b16 %v3267
        %v4526 = vunpack.c.l.b16 %v3268
        %v4527 = vunpack.c.h.b16 %v3268
        %v4528 = vunpack.c.l.b16 %v3269
        %v4529 = vunpack.c.l.b16 %v3270
        %v4530 = vunpack.c.h.b16 %v3270
        %v4531 = vunpack.c.l.b16 %v3271
        %v4532 = vunpack.c.h.b16 %v3271
        %v4533 = vunpack.c.l.b16 %v3272
        %v4534 = vunpack.c.h.b16 %v3272
        %v4535 = vunpack.c.l.b16 %v3273
        %v4536 = vunpack.c.l.b16 %v3274
        %v4537 = vunpack.c.h.b16 %v3274
        %v4538 = vunpack.c.l.b16 %v3275
        %v4539 = vunpack.c.h.b16 %v3275
        %v4540 = vunpack.c.l.b16 %v3276
        %v4541 = vunpack.c.h.b16 %v3276
        %v4542 = vunpack.c.l.b16 %v3277
        %v4543 = vunpack.c.l.b16 %v3278
        %v4544 = vunpack.c.h.b16 %v3278
        %v4545 = vunpack.c.l.b16 %v3279
        %v4546 = vunpack.c.h.b16 %v3279
        %v4547 = vunpack.c.l.b16 %v3280
        %v4548 = vunpack.c.h.b16 %v3280
        %v4549 = vunpack.c.l.b16 %v3281
        %v4550 = vunpack.c.l.b16 %v3282
        %v4551 = vunpack.c.h.b16 %v3282
        %v4552 = vunpack.c.l.b16 %v3283
        %v4553 = vunpack.c.h.b16 %v3283
        %v4554 = vunpack.c.l.b16 %v3284
        %v4555 = vunpack.c.h.b16 %v3284
        %v4556 = vunpack.c.l.b16 %v3285
        %v4557 = vunpack.c.l.b16 %v3286
        %v4558 = vunpack.c.h.b16 %v3286
        %v4559 = vunpack.c.l.b16 %v3287
        %v4560 = vunpack.c.h.b16 %v3287
        %v4561 = vunpack.c.l.b16 %v3288
        %v4562 = vunpack.c.h.b16 %v3288
        %v4563 = vunpack.c.l.b16 %v3289
        %v4564 = vunpack.c.l.b16 %v3290
        %v4565 = vunpack.c.h.b16 %v3290
        %v4566 = vunpack.c.l.b16 %v3291
        %v4567 = vunpack.c.h.b16 %v3291
        %v4568 = vunpack.c.l.b16 %v3292
        %v4569 = vunpack.c.h.b16 %v3292
        %v4570 = vunpack.c.l.b16 %v3293
        %v4571 = vunpack.c.l.b16 %v3294
        %v4572 = vunpack.c.h.b16 %v3294
        %v4573 = vunpack.c.l.b16 %v3295
        %v4574 = vunpack.c.h.b16 %v3295
        %v4575 = vunpack.c.l.b16 %v3296
        %v4576 = vunpack.c.h.b16 %v3296
        %v4577 = vunpack.c.l.b16 %v3297
        %v4578 = vunpack.c.l.b16 %v3298
        %v4579 = vunpack.c.h.b16 %v3298
        %v4580 = vunpack.c.l.b16 %v3299
        %v4581 = vunpack.c.h.b16 %v3299
        %v4582 = vunpack.c.l.b16 %v3300
        %v4583 = vunpack.c.h.b16 %v3300
        %v4584 = vunpack.c.l.b16 %v3301
        %v4585 = vunpack.c.l.b16 %v3302
        %v4586 = vunpack.c.h.b16 %v3302
        %v4587 = vunpack.c.l.b16 %v3303
        %v4588 = vunpack.c.h.b16 %v3303
        %v4589 = vunpack.c.l.b16 %v3304
        %v4590 = vunpack.c.h.b16 %v3304
        %v4591 = vunpack.c.l.b16 %v3305
        %v4592 = vunpack.c.l.b16 %v3306
        %v4593 = vunpack.c.h.b16 %v3306
        %v4594 = vunpack.c.l.b16 %v3307
        %v4595 = vunpack.c.h.b16 %v3307
        %v4596 = vunpack.c.l.b16 %v3308
        %v4597 = vunpack.c.h.b16 %v3308
        %v4598 = vunpack.c.l.b16 %v3309
        %v4599 = vunpack.c.l.b16 %v3310
        %v4600 = vunpack.c.h.b16 %v3310
        %v4601 = vunpack.c.l.b16 %v3311
        %v4602 = vunpack.c.h.b16 %v3311
        %v4603 = vunpack.c.l.b16 %v3312
        %v4604 = vunpack.c.h.b16 %v3312
        %v4605 = vunpack.c.l.b16 %v3313
        %v4606 = vunpack.c.l.b16 %v3314
        %v4607 = vunpack.c.h.b16 %v3314
        %v4608 = vunpack.c.l.b16 %v3315
        %v4609 = vunpack.c.h.b16 %v3315
        %v4610 = vunpack.c.l.b16 %v3316
        %v4611 = vunpack.c.h.b16 %v3316
        %v4612 = vunpack.c.l.b16 %v3317
        %v4613 = vunpack.c.l.b16 %v3318
        %v4614 = vunpack.c.h.b16 %v3318
        %v4615 = vunpack.c.l.b16 %v3319
        %v4616 = vunpack.c.h.b16 %v3319
        %v4617 = vunpack.c.l.b16 %v3320
        %v4618 = vunpack.c.h.b16 %v3320
        %v4619 = vunpack.c.l.b16 %v3321
        %v4620 = vunpack.c.l.b16 %v3322
        %v4621 = vunpack.c.h.b16 %v3322
        %v4622 = vunpack.c.l.b16 %v3323
        %v4623 = vunpack.c.h.b16 %v3323
        %v4624 = vunpack.c.l.b16 %v3324
        %v4625 = vunpack.c.h.b16 %v3324
        %v4626 = vunpack.c.l.b16 %v3325
        %v4627 = vunpack.c.l.b16 %v3326
        %v4628 = vunpack.c.h.b16 %v3326
        %v4629 = vunpack.c.l.b16 %v3327
        %v4630 = vunpack.c.h.b16 %v3327
        %v4631 = vunpack.c.l.b16 %v3328
        %v4632 = vunpack.c.h.b16 %v3328
        %v4633 = vunpack.c.l.b16 %v3329
        %v4634 = vunpack.c.l.b16 %v3330
        %v4635 = vunpack.c.h.b16 %v3330
        %v4636 = vunpack.c.l.b16 %v3331
        %v4637 = vunpack.c.h.b16 %v3331
        %v4638 = vunpack.c.l.b16 %v3332
        %v4639 = vunpack.c.h.b16 %v3332
        %v4640 = vunpack.c.l.b16 %v3333
        %v4641 = vunpack.c.l.b16 %v3334
        %v4642 = vunpack.c.h.b16 %v3334
        %v4643 = vunpack.c.l.b16 %v3335
        %v4644 = vunpack.c.h.b16 %v3335
        %v4645 = vunpack.c.l.b16 %v3336
        %v4646 = vunpack.c.h.b16 %v3336
        %v4647 = vunpack.c.l.b16 %v3337
        %v4648 = vunpack.c.l.b16 %v3338
        %v4649 = vunpack.c.h.b16 %v3338
        %v4650 = vunpack.c.l.b16 %v3339
        %v4651 = vunpack.c.h.b16 %v3339
        %v4652 = vunpack.c.l.b16 %v3340
        %v4653 = vunpack.c.h.b16 %v3340
        %v4654 = vunpack.c.l.b16 %v3341
        %v4655 = vunpack.c.l.b16 %v3342
        %v4656 = vunpack.c.h.b16 %v3342
        %v4657 = vunpack.c.l.b16 %v3343
        %v4658 = vunpack.c.h.b16 %v3343
        %v4659 = vunpack.c.l.b16 %v3344
        %v4660 = vunpack.c.h.b16 %v3344
        %v4661 = vunpack.c.l.b16 %v3345
        %v4662 = vunpack.c.l.b16 %v3346
        %v4663 = vunpack.c.h.b16 %v3346
        %v4664 = vunpack.c.l.b16 %v3347
        %v4665 = vunpack.c.h.b16 %v3347
        %v4666 = vunpack.c.l.b16 %v3348
        %v4667 = vunpack.c.h.b16 %v3348
        %v4668 = vunpack.c.l.b16 %v3349
        %v4669 = vunpack.c.l.b16 %v3350
        %v4670 = vunpack.c.h.b16 %v3350
        %v4671 = vunpack.c.l.b16 %v3351
        %v4672 = vunpack.c.h.b16 %v3351
        %v4673 = vunpack.c.l.b16 %v3352
        %v4674 = vunpack.c.h.b16 %v3352
        %v4675 = vunpack.c.l.b16 %v3353
        %v4676 = vunpack.c.l.b16 %v3354
        %v4677 = vunpack.c.h.b16 %v3354
        %v4678 = vunpack.c.l.b16 %v3355
        %v4679 = vunpack.c.h.b16 %v3355
        %v4680 = vunpack.c.l.b16 %v3356
        %v4681 = vunpack.c.h.b16 %v3356
        %v4682 = vunpack.c.l.b16 %v3357
        %v4683 = vunpack.c.l.b16 %v3358
        %v4684 = vunpack.c.h.b16 %v3358
        %v4685 = vunpack.c.l.b16 %v3359
        %v4686 = vunpack.c.h.b16 %v3359
        %v4687 = vunpack.c.l.b16 %v3360
        %v4688 = vunpack.c.h.b16 %v3360
        %v4689 = vunpack.c.l.b16 %v3361
        %v4690 = vunpack.c.l.b16 %v3362
        %v4691 = vunpack.c.h.b16 %v3362
        %v4692 = vunpack.c.l.b16 %v3363
        %v4693 = vunpack.c.h.b16 %v3363
        %v4694 = vunpack.c.l.b16 %v3364
        %v4695 = vunpack.c.h.b16 %v3364
        %v4696 = vunpack.c.l.b16 %v3365
        %v4697 = vunpack.c.l.b16 %v3366
        %v4698 = vunpack.c.h.b16 %v3366
        %v4699 = vunpack.c.l.b16 %v3367
        %v4700 = vunpack.c.h.b16 %v3367
        %v4701 = vunpack.c.l.b16 %v3368
        %v4702 = vunpack.c.h.b16 %v3368
        %v4703 = vunpack.c.l.b16 %v3369
        %v4704 = vunpack.c.l.b16 %v3370
        %v4705 = vunpack.c.h.b16 %v3370
        %v4706 = vunpack.c.l.b16 %v3371
        %v4707 = vunpack.c.h.b16 %v3371
        %v4708 = vunpack.c.l.b16 %v3372
        %v4709 = vunpack.c.h.b16 %v3372
        %v4710 = vunpack.c.l.b16 %v3373
        %v4711 = vunpack.c.l.b16 %v3374
        %v4712 = vunpack.c.h.b16 %v3374
        %v4713 = vunpack.c.l.b16 %v3375
        %v4714 = vunpack.c.h.b16 %v3375
        %v4715 = vunpack.c.l.b16 %v3376
        %v4716 = vunpack.c.h.b16 %v3376
        %v4717 = vunpack.c.l.b16 %v3377
        %v4718 = vunpack.c.l.b16 %v3378
        %v4719 = vunpack.c.h.b16 %v3378
        %v4720 = vunpack.c.l.b16 %v3379
        %v4721 = vunpack.c.h.b16 %v3379
        %v4722 = vunpack.c.l.b16 %v3380
        %v4723 = vunpack.c.h.b16 %v3380
        %v4724 = vunpack.c.l.b16 %v3381
        %v4725 = vunpack.c.l.b16 %v3382
        %v4726 = vunpack.c.h.b16 %v3382
        %v4727 = vunpack.c.l.b16 %v3383
        %v4728 = vunpack.c.h.b16 %v3383
        %v4729 = vunpack.c.l.b16 %v3384
        %v4730 = vunpack.c.h.b16 %v3384
        %v4731 = vunpack.c.l.b16 %v3385
        %v4732 = vunpack.c.l.b16 %v3386
        %v4733 = vunpack.c.h.b16 %v3386
        %v4734 = vunpack.c.l.b16 %v3387
        %v4735 = vunpack.c.h.b16 %v3387
        %v4736 = vunpack.c.l.b16 %v3388
        %v4737 = vunpack.c.h.b16 %v3388
        %v4738 = vunpack.c.l.b16 %v3389
        %v4739 = vunpack.c.l.b16 %v3390
        %v4740 = vunpack.c.h.b16 %v3390
        %v4741 = vunpack.c.l.b16 %v3391
        %v4742 = vunpack.c.h.b16 %v3391
        %v4743 = vunpack.c.l.b16 %v3392
        %v4744 = vunpack.c.h.b16 %v3392
        %v4745 = vunpack.c.l.b16 %v3393
        %v4746 = vunpack.c.l.b16 %v3394
        %v4747 = vunpack.c.h.b16 %v3394
        %v4748 = vunpack.c.l.b16 %v3395
        %v4749 = vunpack.c.h.b16 %v3395
        %v4750 = vunpack.c.l.b16 %v3396
        %v4751 = vunpack.c.h.b16 %v3396
        %v4752 = vunpack.c.l.b16 %v3397
        %v4753 = vunpack.c.l.b16 %v3398
        %v4754 = vunpack.c.h.b16 %v3398
        %v4755 = vunpack.c.l.b16 %v3399
        %v4756 = vunpack.c.h.b16 %v3399
        %v4757 = vunpack.c.l.b16 %v3400
        %v4758 = vunpack.c.h.b16 %v3400
        %v4759 = vunpack.c.l.b16 %v3401
        %v4760 = vunpack.c.l.b16 %v3402
        %v4761 = vunpack.c.h.b16 %v3402
        %v4762 = vunpack.c.l.b16 %v3403
        %v4763 = vunpack.c.h.b16 %v3403
        %v4764 = vunpack.c.l.b16 %v3404
        %v4765 = vunpack.c.h.b16 %v3404
        %v4766 = vunpack.c.l.b16 %v3405
        %v4767 = vunpack.c.l.b16 %v3406
        %v4768 = vunpack.c.h.b16 %v3406
        %v4769 = vunpack.c.l.b16 %v3407
        %v4770 = vunpack.c.h.b16 %v3407
        %v4771 = vunpack.c.l.b16 %v3408
        %v4772 = vunpack.c.h.b16 %v3408
        %v4773 = vunpack.c.l.b16 %v3409
        %v4774 = vunpack.c.l.b16 %v3410
        %v4775 = vunpack.c.h.b16 %v3410
        %v4776 = vunpack.c.l.b16 %v3411
        %v4777 = vunpack.c.h.b16 %v3411
        %v4778 = vunpack.c.l.b16 %v3412
        %v4779 = vunpack.c.h.b16 %v3412
        %v4780 = vunpack.c.l.b16 %v3413
        %v4781 = vunpack.c.l.b16 %v3414
        %v4782 = vunpack.c.h.b16 %v3414
        %v4783 = vunpack.c.l.b16 %v3415
        %v4784 = vunpack.c.h.b16 %v3415
        %v4785 = vunpack.c.l.b16 %v3416
        %v4786 = vunpack.c.h.b16 %v3416
        %v4787 = vunpack.c.l.b16 %v3417
        %v4788 = vunpack.c.l.b16 %v3418
        %v4789 = vunpack.c.h.b16 %v3418
        %v4790 = vunpack.c.l.b16 %v3419
        %v4791 = vunpack.c.h.b16 %v3419
        %v4792 = vunpack.c.l.b16 %v3420
        %v4793 = vunpack.c.h.b16 %v3420
        %v4794 = vunpack.c.l.b16 %v3421
        %v4795 = vunpack.c.l.b16 %v3422
        %v4796 = vunpack.c.h.b16 %v3422
        %v4797 = vunpack.c.l.b16 %v3423
        %v4798 = vunpack.c.h.b16 %v3423
        %v4799 = vunpack.c.l.b16 %v3424
        %v4800 = vunpack.c.h.b16 %v3424
        %v4801 = vunpack.c.l.b16 %v3425
        %v4802 = vunpack.c.l.b16 %v3426
        %v4803 = vunpack.c.h.b16 %v3426
        %v4804 = vunpack.c.l.b16 %v3427
        %v4805 = vunpack.c.h.b16 %v3427
        %v4806 = vunpack.c.l.b16 %v3428
        %v4807 = vunpack.c.h.b16 %v3428
        %v4808 = vunpack.c.l.b16 %v3429
        %v4809 = vunpack.c.l.b16 %v3430
        %v4810 = vunpack.c.h.b16 %v3430
        %v4811 = vunpack.c.l.b16 %v3431
        %v4812 = vunpack.c.h.b16 %v3431
        %v4813 = vunpack.c.l.b16 %v3432
        %v4814 = vunpack.c.h.b16 %v3432
        %v4815 = vunpack.c.l.b16 %v3433
        %v4816 = vunpack.c.l.b16 %v3434
        %v4817 = vunpack.c.h.b16 %v3434
        %v4818 = vunpack.c.l.b16 %v3435
        %v4819 = vunpack.c.h.b16 %v3435
        %v4820 = vunpack.c.l.b16 %v3436
        %v4821 = vunpack.c.h.b16 %v3436
        %v4822 = vunpack.c.l.b16 %v3437
        %v4823 = vunpack.c.l.b16 %v3438
        %v4824 = vunpack.c.h.b16 %v3438
        %v4825 = vunpack.c.l.b16 %v3439
        %v4826 = vunpack.c.h.b16 %v3439
        %v4827 = vunpack.c.l.b16 %v3440
        %v4828 = vunpack.c.h.b16 %v3440
        %v4829 = vunpack.c.l.b16 %v3441
        %v4830 = vunpack.c.l.b16 %v3442
        %v4831 = vunpack.c.h.b16 %v3442
        %v4832 = vunpack.c.l.b16 %v3443
        %v4833 = vunpack.c.h.b16 %v3443
        %v4834 = vunpack.c.l.b16 %v3444
        %v4835 = vunpack.c.h.b16 %v3444
        %v4836 = vunpack.c.l.b16 %v3445
        %v4837 = vunpack.c.l.b16 %v3446
        %v4838 = vunpack.c.h.b16 %v3446
        %v4839 = vunpack.c.l.b16 %v3447
        %v4840 = vunpack.c.h.b16 %v3447
        %v4841 = vunpack.c.l.b16 %v3448
        %v4842 = vunpack.c.h.b16 %v3448
        %v4843 = vunpack.c.l.b16 %v3449
        %v4844 = vunpack.c.l.b16 %v3450
        %v4845 = vunpack.c.h.b16 %v3450
        %v4846 = vunpack.c.l.b16 %v3451
        %v4847 = vunpack.c.h.b16 %v3451
        %v4848 = vunpack.c.l.b16 %v3452
        %v4849 = vunpack.c.h.b16 %v3452
        %v4850 = vunpack.c.l.b16 %v3453
        %v4851 = vunpack.c.l.b16 %v3454
        %v4852 = vunpack.c.h.b16 %v3454
        %v4853 = vunpack.c.l.b16 %v3455
        %v4854 = vunpack.c.h.b16 %v3455
        %v4855 = vunpack.c.l.b16 %v3456
        %v4856 = vunpack.c.h.b16 %v3456
        %v4857 = vunpack.c.l.b16 %v3457
        %v4858 = vunpack.c.l.b16 %v3458
        %v4859 = vunpack.c.h.b16 %v3458
        %v4860 = vunpack.c.l.b16 %v3459
        %v4861 = vunpack.c.h.b16 %v3459
        %v4862 = vunpack.c.l.b16 %v3460
        %v4863 = vunpack.c.h.b16 %v3460
        %v4864 = vunpack.c.l.b16 %v3461
        %v4865 = vunpack.c.l.b16 %v3462
        %v4866 = vunpack.c.h.b16 %v3462
        %v4867 = vunpack.c.l.b16 %v3463
        %v4868 = vunpack.c.h.b16 %v3463
        %v4869 = vunpack.c.l.b16 %v3464
        %v4870 = vunpack.c.h.b16 %v3464
        %v4871 = vunpack.c.l.b16 %v3465
        %v4872 = vunpack.c.l.b16 %v3466
        %v4873 = vunpack.c.h.b16 %v3466
        %v4874 = vunpack.c.l.b16 %v3467
        %v4875 = vunpack.c.h.b16 %v3467
        %v4876 = vunpack.c.l.b16 %v3468
        %v4877 = vunpack.c.h.b16 %v3468
        %v4878 = vunpack.c.l.b16 %v3469
        %v4879 = vunpack.c.l.b16 %v3470
        %v4880 = vunpack.c.h.b16 %v3470
        %v4881 = vunpack.c.l.b16 %v3471
        %v4882 = vunpack.c.h.b16 %v3471
        %v4883 = vunpack.c.l.b16 %v3472
        %v4884 = vunpack.c.h.b16 %v3472
        %v4885 = vunpack.c.l.b16 %v3473
        %v4886 = vunpack.c.l.b16 %v3474
        %v4887 = vunpack.c.h.b16 %v3474
        %v4888 = vunpack.c.l.b16 %v3475
        %v4889 = vunpack.c.h.b16 %v3475
        %v4890 = vunpack.c.l.b16 %v3476
        %v4891 = vunpack.c.h.b16 %v3476
        %v4892 = vunpack.c.l.b16 %v3477
        %v4893 = vunpack.c.l.b16 %v3478
        %v4894 = vunpack.c.h.b16 %v3478
        %v4895 = vunpack.c.l.b16 %v3479
        %v4896 = vunpack.c.h.b16 %v3479
        %v4897 = vunpack.c.l.b16 %v3480
        %v4898 = vunpack.c.h.b16 %v3480
        %v4899 = vunpack.c.l.b16 %v3481
        %v4900 = vunpack.c.l.b16 %v3482
        %v4901 = vunpack.c.h.b16 %v3482
        %v4902 = vunpack.c.l.b16 %v3483
        %v4903 = vunpack.c.h.b16 %v3483
        %v4904 = vunpack.c.l.b16 %v3484
        %v4905 = vunpack.c.h.b16 %v3484
        %v4906 = vunpack.c.l.b16 %v3485
        %v4907 = vunpack.c.l.b16 %v3486
        %v4908 = vunpack.c.h.b16 %v3486
        %v4909 = vunpack.c.l.b16 %v3487
        %v4910 = vunpack.c.h.b16 %v3487
        %v4911 = vunpack.c.l.b16 %v3488
        %v4912 = vunpack.c.h.b16 %v3488
        %v4913 = vunpack.c.l.b16 %v3489
        %v4914 = vunpack.c.l.b16 %v3490
        %v4915 = vunpack.c.h.b16 %v3490
        %v4916 = vunpack.c.l.b16 %v3491
        %v4917 = vunpack.c.h.b16 %v3491
        %v4918 = vunpack.c.l.b16 %v3492
        %v4919 = vunpack.c.h.b16 %v3492
        %v4920 = vunpack.c.l.b16 %v3493
        %v4921 = vunpack.c.l.b16 %v3494
        %v4922 = vunpack.c.h.b16 %v3494
        %v4923 = vunpack.c.l.b16 %v3495
        %v4924 = vunpack.c.h.b16 %v3495
        %v4925 = vunpack.c.l.b16 %v3496
        %v4926 = vunpack.c.h.b16 %v3496
        %v4927 = vunpack.c.l.b16 %v3497
        %v4928 = vunpack.c.l.b16 %v3498
        %v4929 = vunpack.c.h.b16 %v3498
        %v4930 = vunpack.c.l.b16 %v3499
        %v4931 = vunpack.c.h.b16 %v3499
        %v4932 = vunpack.c.l.b16 %v3500
        %v4933 = vunpack.c.h.b16 %v3500
        %v4934 = vunpack.c.l.b16 %v3501
        %v4935 = vunpack.c.l.b16 %v3502
        %v4936 = vunpack.c.h.b16 %v3502
        %v4937 = vunpack.c.l.b16 %v3503
        %v4938 = vunpack.c.h.b16 %v3503
        %v4939 = vunpack.c.l.b16 %v3504
        %v4940 = vunpack.c.h.b16 %v3504
        %v4941 = vunpack.c.l.b16 %v3505
        %v4942 = vunpack.c.l.b16 %v3506
        %v4943 = vunpack.c.h.b16 %v3506
        %v4944 = vunpack.c.l.b16 %v3507
        %v4945 = vunpack.c.h.b16 %v3507
        %v4946 = vunpack.c.l.b16 %v3508
        %v4947 = vunpack.c.h.b16 %v3508
        %v4948 = vunpack.c.l.b16 %v3509
        %v4949 = vunpack.c.l.b16 %v3510
        %v4950 = vunpack.c.h.b16 %v3510
        %v4951 = vunpack.c.l.b16 %v3511
        %v4952 = vunpack.c.h.b16 %v3511
        %v4953 = vunpack.c.l.b16 %v3512
        %v4954 = vunpack.c.h.b16 %v3512
        %v4955 = vunpack.c.l.b16 %v3513
        %v4956 = vunpack.c.l.b16 %v3514
        %v4957 = vunpack.c.h.b16 %v3514
        %v4958 = vunpack.c.l.b16 %v3515
        %v4959 = vunpack.c.h.b16 %v3515
        %v4960 = vunpack.c.l.b16 %v3516
        %v4961 = vunpack.c.h.b16 %v3516
        %v4962 = vunpack.c.l.b16 %v3517
        %v4963 = vpack.c.b16 %v4074, %v4067
        %v4964 = vpack.c.b16 %v4075, %v4068
        %v4965 = vpack.c.b16 %v4076, %v4069
        %v4966 = vpack.c.b16 %v4077, %v4070
        %v4967 = vpack.c.b16 %v4078, %v4071
        %v4968 = vpack.c.b16 %v4079, %v4072
        %v4969 = vpack.c.b16 %v4080, %v4073
        %v4970 = vpack.c.b16 %v4088, %v4081
        %v4971 = vpack.c.b16 %v4089, %v4082
        %v4972 = vpack.c.b16 %v4090, %v4083
        %v4973 = vpack.c.b16 %v4091, %v4084
        %v4974 = vpack.c.b16 %v4092, %v4085
        %v4975 = vpack.c.b16 %v4093, %v4086
        %v4976 = vpack.c.b16 %v4094, %v4087
        %v4977 = vpack.c.b16 %v4102, %v4095
        %v4978 = vpack.c.b16 %v4103, %v4096
        %v4979 = vpack.c.b16 %v4104, %v4097
        %v4980 = vpack.c.b16 %v4105, %v4098
        %v4981 = vpack.c.b16 %v4106, %v4099
        %v4982 = vpack.c.b16 %v4107, %v4100
        %v4983 = vpack.c.b16 %v4108, %v4101
        %v4984 = vpack.c.b16 %v4116, %v4109
        %v4985 = vpack.c.b16 %v4117, %v4110
        %v4986 = vpack.c.b16 %v4118, %v4111
        %v4987 = vpack.c.b16 %v4119, %v4112
        %v4988 = vpack.c.b16 %v4120, %v4113
        %v4989 = vpack.c.b16 %v4121, %v4114
        %v4990 = vpack.c.b16 %v4122, %v4115
        %v4991 = vpack.c.b16 %v4130, %v4123
        %v4992 = vpack.c.b16 %v4131, %v4124
        %v4993 = vpack.c.b16 %v4132, %v4125
        %v4994 = vpack.c.b16 %v4133, %v4126
        %v4995 = vpack.c.b16 %v4134, %v4127
        %v4996 = vpack.c.b16 %v4135, %v4128
        %v4997 = vpack.c.b16 %v4136, %v4129
        %v4998 = vpack.c.b16 %v4144, %v4137
        %v4999 = vpack.c.b16 %v4145, %v4138
        %v5000 = vpack.c.b16 %v4146, %v4139
        %v5001 = vpack.c.b16 %v4147, %v4140
        %v5002 = vpack.c.b16 %v4148, %v4141
        %v5003 = vpack.c.b16 %v4149, %v4142
        %v5004 = vpack.c.b16 %v4150, %v4143
        %v5005 = vpack.c.b16 %v4158, %v4151
        %v5006 = vpack.c.b16 %v4159, %v4152
        %v5007 = vpack.c.b16 %v4160, %v4153
        %v5008 = vpack.c.b16 %v4161, %v4154
        %v5009 = vpack.c.b16 %v4162, %v4155
        %v5010 = vpack.c.b16 %v4163, %v4156
        %v5011 = vpack.c.b16 %v4164, %v4157
        %v5012 = vpack.c.b16 %v4172, %v4165
        %v5013 = vpack.c.b16 %v4173, %v4166
        %v5014 = vpack.c.b16 %v4174, %v4167
        %v5015 = vpack.c.b16 %v4175, %v4168
        %v5016 = vpack.c.b16 %v4176, %v4169
        %v5017 = vpack.c.b16 %v4177, %v4170
        %v5018 = vpack.c.b16 %v4178, %v4171
        %v5019 = vpack.c.b16 %v4186, %v4179
        %v5020 = vpack.c.b16 %v4187, %v4180
        %v5021 = vpack.c.b16 %v4188, %v4181
        %v5022 = vpack.c.b16 %v4189, %v4182
        %v5023 = vpack.c.b16 %v4190, %v4183
        %v5024 = vpack.c.b16 %v4191, %v4184
        %v5025 = vpack.c.b16 %v4192, %v4185
        %v5026 = vpack.c.b16 %v4200, %v4193
        %v5027 = vpack.c.b16 %v4201, %v4194
        %v5028 = vpack.c.b16 %v4202, %v4195
        %v5029 = vpack.c.b16 %v4203, %v4196
        %v5030 = vpack.c.b16 %v4204, %v4197
        %v5031 = vpack.c.b16 %v4205, %v4198
        %v5032 = vpack.c.b16 %v4206, %v4199
        %v5033 = vpack.c.b16 %v4214, %v4207
        %v5034 = vpack.c.b16 %v4215, %v4208
        %v5035 = vpack.c.b16 %v4216, %v4209
        %v5036 = vpack.c.b16 %v4217, %v4210
        %v5037 = vpack.c.b16 %v4218, %v4211
        %v5038 = vpack.c.b16 %v4219, %v4212
        %v5039 = vpack.c.b16 %v4220, %v4213
        %v5040 = vpack.c.b16 %v4228, %v4221
        %v5041 = vpack.c.b16 %v4229, %v4222
        %v5042 = vpack.c.b16 %v4230, %v4223
        %v5043 = vpack.c.b16 %v4231, %v4224
        %v5044 = vpack.c.b16 %v4232, %v4225
        %v5045 = vpack.c.b16 %v4233, %v4226
        %v5046 = vpack.c.b16 %v4234, %v4227
        %v5047 = vpack.c.b16 %v4242, %v4235
        %v5048 = vpack.c.b16 %v4243, %v4236
        %v5049 = vpack.c.b16 %v4244, %v4237
        %v5050 = vpack.c.b16 %v4245, %v4238
        %v5051 = vpack.c.b16 %v4246, %v4239
        %v5052 = vpack.c.b16 %v4247, %v4240
        %v5053 = vpack.c.b16 %v4248, %v4241
        %v5054 = vpack.c.b16 %v4256, %v4249
        %v5055 = vpack.c.b16 %v4257, %v4250
        %v5056 = vpack.c.b16 %v4258, %v4251
        %v5057 = vpack.c.b16 %v4259, %v4252
        %v5058 = vpack.c.b16 %v4260, %v4253
        %v5059 = vpack.c.b16 %v4261, %v4254
        %v5060 = vpack.c.b16 %v4262, %v4255
        %v5061 = vpack.c.b16 %v4270, %v4263
        %v5062 = vpack.c.b16 %v4271, %v4264
        %v5063 = vpack.c.b16 %v4272, %v4265
        %v5064 = vpack.c.b16 %v4273, %v4266
        %v5065 = vpack.c.b16 %v4274, %v4267
        %v5066 = vpack.c.b16 %v4275, %v4268
        %v5067 = vpack.c.b16 %v4276, %v4269
        %v5068 = vpack.c.b16 %v4284, %v4277
        %v5069 = vpack.c.b16 %v4285, %v4278
        %v5070 = vpack.c.b16 %v4286, %v4279
        %v5071 = vpack.c.b16 %v4287, %v4280
        %v5072 = vpack.c.b16 %v4288, %v4281
        %v5073 = vpack.c.b16 %v4289, %v4282
        %v5074 = vpack.c.b16 %v4290, %v4283
        %v5075 = vpack.c.b16 %v4298, %v4291
        %v5076 = vpack.c.b16 %v4299, %v4292
        %v5077 = vpack.c.b16 %v4300, %v4293
        %v5078 = vpack.c.b16 %v4301, %v4294
        %v5079 = vpack.c.b16 %v4302, %v4295
        %v5080 = vpack.c.b16 %v4303, %v4296
        %v5081 = vpack.c.b16 %v4304, %v4297
        %v5082 = vpack.c.b16 %v4312, %v4305
        %v5083 = vpack.c.b16 %v4313, %v4306
        %v5084 = vpack.c.b16 %v4314, %v4307
        %v5085 = vpack.c.b16 %v4315, %v4308
        %v5086 = vpack.c.b16 %v4316, %v4309
        %v5087 = vpack.c.b16 %v4317, %v4310
        %v5088 = vpack.c.b16 %v4318, %v4311
        %v5089 = vpack.c.b16 %v4326, %v4319
        %v5090 = vpack.c.b16 %v4327, %v4320
        %v5091 = vpack.c.b16 %v4328, %v4321
        %v5092 = vpack.c.b16 %v4329, %v4322
        %v5093 = vpack.c.b16 %v4330, %v4323
        %v5094 = vpack.c.b16 %v4331, %v4324
        %v5095 = vpack.c.b16 %v4332, %v4325
        %v5096 = vpack.c.b16 %v4340, %v4333
        %v5097 = vpack.c.b16 %v4341, %v4334
        %v5098 = vpack.c.b16 %v4342, %v4335
        %v5099 = vpack.c.b16 %v4343, %v4336
        %v5100 = vpack.c.b16 %v4344, %v4337
        %v5101 = vpack.c.b16 %v4345, %v4338
        %v5102 = vpack.c.b16 %v4346, %v4339
        %v5103 = vpack.c.b16 %v4354, %v4347
        %v5104 = vpack.c.b16 %v4355, %v4348
        %v5105 = vpack.c.b16 %v4356, %v4349
        %v5106 = vpack.c.b16 %v4357, %v4350
        %v5107 = vpack.c.b16 %v4358, %v4351
        %v5108 = vpack.c.b16 %v4359, %v4352
        %v5109 = vpack.c.b16 %v4360, %v4353
        %v5110 = vpack.c.b16 %v4368, %v4361
        %v5111 = vpack.c.b16 %v4369, %v4362
        %v5112 = vpack.c.b16 %v4370, %v4363
        %v5113 = vpack.c.b16 %v4371, %v4364
        %v5114 = vpack.c.b16 %v4372, %v4365
        %v5115 = vpack.c.b16 %v4373, %v4366
        %v5116 = vpack.c.b16 %v4374, %v4367
        %v5117 = vpack.c.b16 %v4382, %v4375
        %v5118 = vpack.c.b16 %v4383, %v4376
        %v5119 = vpack.c.b16 %v4384, %v4377
        %v5120 = vpack.c.b16 %v4385, %v4378
        %v5121 = vpack.c.b16 %v4386, %v4379
        %v5122 = vpack.c.b16 %v4387, %v4380
        %v5123 = vpack.c.b16 %v4388, %v4381
        %v5124 = vpack.c.b16 %v4396, %v4389
        %v5125 = vpack.c.b16 %v4397, %v4390
        %v5126 = vpack.c.b16 %v4398, %v4391
        %v5127 = vpack.c.b16 %v4399, %v4392
        %v5128 = vpack.c.b16 %v4400, %v4393
        %v5129 = vpack.c.b16 %v4401, %v4394
        %v5130 = vpack.c.b16 %v4402, %v4395
        %v5131 = vpack.c.b16 %v4410, %v4403
        %v5132 = vpack.c.b16 %v4411, %v4404
        %v5133 = vpack.c.b16 %v4412, %v4405
        %v5134 = vpack.c.b16 %v4413, %v4406
        %v5135 = vpack.c.b16 %v4414, %v4407
        %v5136 = vpack.c.b16 %v4415, %v4408
        %v5137 = vpack.c.b16 %v4416, %v4409
        %v5138 = vpack.c.b16 %v4424, %v4417
        %v5139 = vpack.c.b16 %v4425, %v4418
        %v5140 = vpack.c.b16 %v4426, %v4419
        %v5141 = vpack.c.b16 %v4427, %v4420
        %v5142 = vpack.c.b16 %v4428, %v4421
        %v5143 = vpack.c.b16 %v4429, %v4422
        %v5144 = vpack.c.b16 %v4430, %v4423
        %v5145 = vpack.c.b16 %v4438, %v4431
        %v5146 = vpack.c.b16 %v4439, %v4432
        %v5147 = vpack.c.b16 %v4440, %v4433
        %v5148 = vpack.c.b16 %v4441, %v4434
        %v5149 = vpack.c.b16 %v4442, %v4435
        %v5150 = vpack.c.b16 %v4443, %v4436
        %v5151 = vpack.c.b16 %v4444, %v4437
        %v5152 = vpack.c.b16 %v4452, %v4445
        %v5153 = vpack.c.b16 %v4453, %v4446
        %v5154 = vpack.c.b16 %v4454, %v4447
        %v5155 = vpack.c.b16 %v4455, %v4448
        %v5156 = vpack.c.b16 %v4456, %v4449
        %v5157 = vpack.c.b16 %v4457, %v4450
        %v5158 = vpack.c.b16 %v4458, %v4451
        %v5159 = vpack.c.b16 %v4466, %v4459
        %v5160 = vpack.c.b16 %v4467, %v4460
        %v5161 = vpack.c.b16 %v4468, %v4461
        %v5162 = vpack.c.b16 %v4469, %v4462
        %v5163 = vpack.c.b16 %v4470, %v4463
        %v5164 = vpack.c.b16 %v4471, %v4464
        %v5165 = vpack.c.b16 %v4472, %v4465
        %v5166 = vpack.c.b16 %v4480, %v4473
        %v5167 = vpack.c.b16 %v4481, %v4474
        %v5168 = vpack.c.b16 %v4482, %v4475
        %v5169 = vpack.c.b16 %v4483, %v4476
        %v5170 = vpack.c.b16 %v4484, %v4477
        %v5171 = vpack.c.b16 %v4485, %v4478
        %v5172 = vpack.c.b16 %v4486, %v4479
        %v5173 = vpack.c.b16 %v4494, %v4487
        %v5174 = vpack.c.b16 %v4495, %v4488
        %v5175 = vpack.c.b16 %v4496, %v4489
        %v5176 = vpack.c.b16 %v4497, %v4490
        %v5177 = vpack.c.b16 %v4498, %v4491
        %v5178 = vpack.c.b16 %v4499, %v4492
        %v5179 = vpack.c.b16 %v4500, %v4493
        %v5180 = vpack.c.b16 %v4508, %v4501
        %v5181 = vpack.c.b16 %v4509, %v4502
        %v5182 = vpack.c.b16 %v4510, %v4503
        %v5183 = vpack.c.b16 %v4511, %v4504
        %v5184 = vpack.c.b16 %v4512, %v4505
        %v5185 = vpack.c.b16 %v4513, %v4506
        %v5186 = vpack.c.b16 %v4514, %v4507
        %v5187 = vpack.c.b16 %v4522, %v4515
        %v5188 = vpack.c.b16 %v4523, %v4516
        %v5189 = vpack.c.b16 %v4524, %v4517
        %v5190 = vpack.c.b16 %v4525, %v4518
        %v5191 = vpack.c.b16 %v4526, %v4519
        %v5192 = vpack.c.b16 %v4527, %v4520
        %v5193 = vpack.c.b16 %v4528, %v4521
        %v5194 = vpack.c.b16 %v4536, %v4529
        %v5195 = vpack.c.b16 %v4537, %v4530
        %v5196 = vpack.c.b16 %v4538, %v4531
        %v5197 = vpack.c.b16 %v4539, %v4532
        %v5198 = vpack.c.b16 %v4540, %v4533
        %v5199 = vpack.c.b16 %v4541, %v4534
        %v5200 = vpack.c.b16 %v4542, %v4535
        %v5201 = vpack.c.b16 %v4550, %v4543
        %v5202 = vpack.c.b16 %v4551, %v4544
        %v5203 = vpack.c.b16 %v4552, %v4545
        %v5204 = vpack.c.b16 %v4553, %v4546
        %v5205 = vpack.c.b16 %v4554, %v4547
        %v5206 = vpack.c.b16 %v4555, %v4548
        %v5207 = vpack.c.b16 %v4556, %v4549
        %v5208 = vpack.c.b16 %v4564, %v4557
        %v5209 = vpack.c.b16 %v4565, %v4558
        %v5210 = vpack.c.b16 %v4566, %v4559
        %v5211 = vpack.c.b16 %v4567, %v4560
        %v5212 = vpack.c.b16 %v4568, %v4561
        %v5213 = vpack.c.b16 %v4569, %v4562
        %v5214 = vpack.c.b16 %v4570, %v4563
        %v5215 = vpack.c.b16 %v4578, %v4571
        %v5216 = vpack.c.b16 %v4579, %v4572
        %v5217 = vpack.c.b16 %v4580, %v4573
        %v5218 = vpack.c.b16 %v4581, %v4574
        %v5219 = vpack.c.b16 %v4582, %v4575
        %v5220 = vpack.c.b16 %v4583, %v4576
        %v5221 = vpack.c.b16 %v4584, %v4577
        %v5222 = vpack.c.b16 %v4592, %v4585
        %v5223 = vpack.c.b16 %v4593, %v4586
        %v5224 = vpack.c.b16 %v4594, %v4587
        %v5225 = vpack.c.b16 %v4595, %v4588
        %v5226 = vpack.c.b16 %v4596, %v4589
        %v5227 = vpack.c.b16 %v4597, %v4590
        %v5228 = vpack.c.b16 %v4598, %v4591
        %v5229 = vpack.c.b16 %v4606, %v4599
        %v5230 = vpack.c.b16 %v4607, %v4600
        %v5231 = vpack.c.b16 %v4608, %v4601
        %v5232 = vpack.c.b16 %v4609, %v4602
        %v5233 = vpack.c.b16 %v4610, %v4603
        %v5234 = vpack.c.b16 %v4611, %v4604
        %v5235 = vpack.c.b16 %v4612, %v4605
        %v5236 = vpack.c.b16 %v4620, %v4613
        %v5237 = vpack.c.b16 %v4621, %v4614
        %v5238 = vpack.c.b16 %v4622, %v4615
        %v5239 = vpack.c.b16 %v4623, %v4616
        %v5240 = vpack.c.b16 %v4624, %v4617
        %v5241 = vpack.c.b16 %v4625, %v4618
        %v5242 = vpack.c.b16 %v4626, %v4619
        %v5243 = vpack.c.b16 %v4634, %v4627
        %v5244 = vpack.c.b16 %v4635, %v4628
        %v5245 = vpack.c.b16 %v4636, %v4629
        %v5246 = vpack.c.b16 %v4637, %v4630
        %v5247 = vpack.c.b16 %v4638, %v4631
        %v5248 = vpack.c.b16 %v4639, %v4632
        %v5249 = vpack.c.b16 %v4640, %v4633
        %v5250 = vpack.c.b16 %v4648, %v4641
        %v5251 = vpack.c.b16 %v4649, %v4642
        %v5252 = vpack.c.b16 %v4650, %v4643
        %v5253 = vpack.c.b16 %v4651, %v4644
        %v5254 = vpack.c.b16 %v4652, %v4645
        %v5255 = vpack.c.b16 %v4653, %v4646
        %v5256 = vpack.c.b16 %v4654, %v4647
        %v5257 = vpack.c.b16 %v4662, %v4655
        %v5258 = vpack.c.b16 %v4663, %v4656
        %v5259 = vpack.c.b16 %v4664, %v4657
        %v5260 = vpack.c.b16 %v4665, %v4658
        %v5261 = vpack.c.b16 %v4666, %v4659
        %v5262 = vpack.c.b16 %v4667, %v4660
        %v5263 = vpack.c.b16 %v4668, %v4661
        %v5264 = vpack.c.b16 %v4676, %v4669
        %v5265 = vpack.c.b16 %v4677, %v4670
        %v5266 = vpack.c.b16 %v4678, %v4671
        %v5267 = vpack.c.b16 %v4679, %v4672
        %v5268 = vpack.c.b16 %v4680, %v4673
        %v5269 = vpack.c.b16 %v4681, %v4674
        %v5270 = vpack.c.b16 %v4682, %v4675
        %v5271 = vpack.c.b16 %v4690, %v4683
        %v5272 = vpack.c.b16 %v4691, %v4684
        %v5273 = vpack.c.b16 %v4692, %v4685
        %v5274 = vpack.c.b16 %v4693, %v4686
        %v5275 = vpack.c.b16 %v4694, %v4687
        %v5276 = vpack.c.b16 %v4695, %v4688
        %v5277 = vpack.c.b16 %v4696, %v4689
        %v5278 = vpack.c.b16 %v4704, %v4697
        %v5279 = vpack.c.b16 %v4705, %v4698
        %v5280 = vpack.c.b16 %v4706, %v4699
        %v5281 = vpack.c.b16 %v4707, %v4700
        %v5282 = vpack.c.b16 %v4708, %v4701
        %v5283 = vpack.c.b16 %v4709, %v4702
        %v5284 = vpack.c.b16 %v4710, %v4703
        %v5285 = vpack.c.b16 %v4718, %v4711
        %v5286 = vpack.c.b16 %v4719, %v4712
        %v5287 = vpack.c.b16 %v4720, %v4713
        %v5288 = vpack.c.b16 %v4721, %v4714
        %v5289 = vpack.c.b16 %v4722, %v4715
        %v5290 = vpack.c.b16 %v4723, %v4716
        %v5291 = vpack.c.b16 %v4724, %v4717
        %v5292 = vpack.c.b16 %v4732, %v4725
        %v5293 = vpack.c.b16 %v4733, %v4726
        %v5294 = vpack.c.b16 %v4734, %v4727
        %v5295 = vpack.c.b16 %v4735, %v4728
        %v5296 = vpack.c.b16 %v4736, %v4729
        %v5297 = vpack.c.b16 %v4737, %v4730
        %v5298 = vpack.c.b16 %v4738, %v4731
        %v5299 = vpack.c.b16 %v4746, %v4739
        %v5300 = vpack.c.b16 %v4747, %v4740
        %v5301 = vpack.c.b16 %v4748, %v4741
        %v5302 = vpack.c.b16 %v4749, %v4742
        %v5303 = vpack.c.b16 %v4750, %v4743
        %v5304 = vpack.c.b16 %v4751, %v4744
        %v5305 = vpack.c.b16 %v4752, %v4745
        %v5306 = vpack.c.b16 %v4760, %v4753
        %v5307 = vpack.c.b16 %v4761, %v4754
        %v5308 = vpack.c.b16 %v4762, %v4755
        %v5309 = vpack.c.b16 %v4763, %v4756
        %v5310 = vpack.c.b16 %v4764, %v4757
        %v5311 = vpack.c.b16 %v4765, %v4758
        %v5312 = vpack.c.b16 %v4766, %v4759
        %v5313 = vpack.c.b16 %v4774, %v4767
        %v5314 = vpack.c.b16 %v4775, %v4768
        %v5315 = vpack.c.b16 %v4776, %v4769
        %v5316 = vpack.c.b16 %v4777, %v4770
        %v5317 = vpack.c.b16 %v4778, %v4771
        %v5318 = vpack.c.b16 %v4779, %v4772
        %v5319 = vpack.c.b16 %v4780, %v4773
        %v5320 = vpack.c.b16 %v4788, %v4781
        %v5321 = vpack.c.b16 %v4789, %v4782
        %v5322 = vpack.c.b16 %v4790, %v4783
        %v5323 = vpack.c.b16 %v4791, %v4784
        %v5324 = vpack.c.b16 %v4792, %v4785
        %v5325 = vpack.c.b16 %v4793, %v4786
        %v5326 = vpack.c.b16 %v4794, %v4787
        %v5327 = vpack.c.b16 %v4802, %v4795
        %v5328 = vpack.c.b16 %v4803, %v4796
        %v5329 = vpack.c.b16 %v4804, %v4797
        %v5330 = vpack.c.b16 %v4805, %v4798
        %v5331 = vpack.c.b16 %v4806, %v4799
        %v5332 = vpack.c.b16 %v4807, %v4800
        %v5333 = vpack.c.b16 %v4808, %v4801
        %v5334 = vpack.c.b16 %v4816, %v4809
        %v5335 = vpack.c.b16 %v4817, %v4810
        %v5336 = vpack.c.b16 %v4818, %v4811
        %v5337 = vpack.c.b16 %v4819, %v4812
        %v5338 = vpack.c.b16 %v4820, %v4813
        %v5339 = vpack.c.b16 %v4821, %v4814
        %v5340 = vpack.c.b16 %v4822, %v4815
        %v5341 = vpack.c.b16 %v4830, %v4823
        %v5342 = vpack.c.b16 %v4831, %v4824
        %v5343 = vpack.c.b16 %v4832, %v4825
        %v5344 = vpack.c.b16 %v4833, %v4826
        %v5345 = vpack.c.b16 %v4834, %v4827
        %v5346 = vpack.c.b16 %v4835, %v4828
        %v5347 = vpack.c.b16 %v4836, %v4829
        %v5348 = vpack.c.b16 %v4844, %v4837
        %v5349 = vpack.c.b16 %v4845, %v4838
        %v5350 = vpack.c.b16 %v4846, %v4839
        %v5351 = vpack.c.b16 %v4847, %v4840
        %v5352 = vpack.c.b16 %v4848, %v4841
        %v5353 = vpack.c.b16 %v4849, %v4842
        %v5354 = vpack.c.b16 %v4850, %v4843
        %v5355 = vpack.c.b16 %v4858, %v4851
        %v5356 = vpack.c.b16 %v4859, %v4852
        %v5357 = vpack.c.b16 %v4860, %v4853
        %v5358 = vpack.c.b16 %v4861, %v4854
        %v5359 = vpack.c.b16 %v4862, %v4855
        %v5360 = vpack.c.b16 %v4863, %v4856
        %v5361 = vpack.c.b16 %v4864, %v4857
        %v5362 = vpack.c.b16 %v4872, %v4865
        %v5363 = vpack.c.b16 %v4873, %v4866
        %v5364 = vpack.c.b16 %v4874, %v4867
        %v5365 = vpack.c.b16 %v4875, %v4868
        %v5366 = vpack.c.b16 %v4876, %v4869
        %v5367 = vpack.c.b16 %v4877, %v4870
        %v5368 = vpack.c.b16 %v4878, %v4871
        %v5369 = vpack.c.b16 %v4886, %v4879
        %v5370 = vpack.c.b16 %v4887, %v4880
        %v5371 = vpack.c.b16 %v4888, %v4881
        %v5372 = vpack.c.b16 %v4889, %v4882
        %v5373 = vpack.c.b16 %v4890, %v4883
        %v5374 = vpack.c.b16 %v4891, %v4884
        %v5375 = vpack.c.b16 %v4892, %v4885
        %v5376 = vpack.c.b16 %v4900, %v4893
        %v5377 = vpack.c.b16 %v4901, %v4894
        %v5378 = vpack.c.b16 %v4902, %v4895
        %v5379 = vpack.c.b16 %v4903, %v4896
        %v5380 = vpack.c.b16 %v4904, %v4897
        %v5381 = vpack.c.b16 %v4905, %v4898
        %v5382 = vpack.c.b16 %v4906, %v4899
        %v5383 = vpack.c.b16 %v4914, %v4907
        %v5384 = vpack.c.b16 %v4915, %v4908
        %v5385 = vpack.c.b16 %v4916, %v4909
        %v5386 = vpack.c.b16 %v4917, %v4910
        %v5387 = vpack.c.b16 %v4918, %v4911
        %v5388 = vpack.c.b16 %v4919, %v4912
        %v5389 = vpack.c.b16 %v4920, %v4913
        %v5390 = vpack.c.b16 %v4928, %v4921
        %v5391 = vpack.c.b16 %v4929, %v4922
        %v5392 = vpack.c.b16 %v4930, %v4923
        %v5393 = vpack.c.b16 %v4931, %v4924
        %v5394 = vpack.c.b16 %v4932, %v4925
        %v5395 = vpack.c.b16 %v4933, %v4926
        %v5396 = vpack.c.b16 %v4934, %v4927
        %v5397 = vpack.c.b16 %v4942, %v4935
        %v5398 = vpack.c.b16 %v4943, %v4936
        %v5399 = vpack.c.b16 %v4944, %v4937
        %v5400 = vpack.c.b16 %v4945, %v4938
        %v5401 = vpack.c.b16 %v4946, %v4939
        %v5402 = vpack.c.b16 %v4947, %v4940
        %v5403 = vpack.c.b16 %v4948, %v4941
        %v5404 = vpack.c.b16 %v4956, %v4949
        %v5405 = vpack.c.b16 %v4957, %v4950
        %v5406 = vpack.c.b16 %v4958, %v4951
        %v5407 = vpack.c.b16 %v4959, %v4952
        %v5408 = vpack.c.b16 %v4960, %v4953
        %v5409 = vpack.c.b16 %v4961, %v4954
        %v5410 = vpack.c.b16 %v4962, %v4955
        %5859 = vmatprep.subr.bf16.mxu0 %v4964
        %5860 = vmatpush1.bf16.msra.mxu0 %v4963
        %5861 = vmatprep.subr.bf16.mxu0 %v4971
        %5862 = vmatpush1.bf16.msra.mxu0 %v4970
        %5863 = vmatprep.subr.bf16.mxu0 %v4978
        %5864 = vmatpush1.bf16.msra.mxu0 %v4977
        %5865 = vmatprep.subr.bf16.mxu0 %v4985
        %5866 = vmatpush1.bf16.msra.mxu0 %v4984
        %5867 = vmatprep.subr.bf16.mxu0 %v4992
        %5868 = vmatpush1.bf16.msra.mxu0 %v4991
        %5869 = vmatprep.subr.bf16.mxu0 %v4999
        %5870 = vmatpush1.bf16.msra.mxu0 %v4998
        %5871 = vmatprep.subr.bf16.mxu0 %v5006
        %5872 = vmatpush1.bf16.msra.mxu0 %v5005
        %5873 = vmatprep.subr.bf16.mxu0 %v5013
        %5874 = vmatpush1.bf16.msra.mxu0 %v5012
        %5875 = vmatprep.subr.bf16.mxu0 %v5020
        %5876 = vmatpush1.bf16.msra.mxu0 %v5019
        %5877 = vmatprep.subr.bf16.mxu0 %v5027
        %5878 = vmatpush1.bf16.msra.mxu0 %v5026
        %5879 = vmatprep.subr.bf16.mxu0 %v5034
        %5880 = vmatpush1.bf16.msra.mxu0 %v5033
        %5881 = vmatprep.subr.bf16.mxu0 %v5041
        %5882 = vmatpush1.bf16.msra.mxu0 %v5040
        %5883 = vmatprep.subr.bf16.mxu0 %v5048
        %5884 = vmatpush1.bf16.msra.mxu0 %v5047
        %5885 = vmatprep.subr.bf16.mxu0 %v5055
        %5886 = vmatpush1.bf16.msra.mxu0 %v5054
        %5887 = vmatprep.subr.bf16.mxu0 %v5062
        %5888 = vmatpush1.bf16.msra.mxu0 %v5061
        %5889 = vmatprep.subr.bf16.mxu0 %v5069
        %5890 = vmatpush1.bf16.msra.mxu0 %v5068
        %5891 = vmatprep.mubr.bf16.mxu0 %v2999
        %5892 = vmatmul.mubr.bf16.gmra.mrb[0].mxu0 %v2998
        %v5893 = vpop.f32.mrb[0].mxu0
        %v5894 = vadd.f32 %v3523, %v5893
        %v5895 = vpop.f32.mrb[0].mxu0
        %v5896 = vadd.f32 %v3527, %v5895
        %v5897 = vpop.f32.mrb[0].mxu0
        %v5898 = vadd.f32 %v3523, %v5897
        %v5899 = vpop.f32.mrb[0].mxu0
        %v5900 = vadd.f32 %v3527, %v5899
        %5901 = vdwg.mxu0
        %5902 = vmatprep.subr.bf16.mxu0 %v5076
        %5903 = vmatpush1.bf16.msra.mxu0 %v5075
        %5904 = vmatprep.subr.bf16.mxu0 %v5083
        %5905 = vmatpush1.bf16.msra.mxu0 %v5082
        %5906 = vmatprep.subr.bf16.mxu0 %v5090
        %5907 = vmatpush1.bf16.msra.mxu0 %v5089
        %5908 = vmatprep.subr.bf16.mxu0 %v5097
        %5909 = vmatpush1.bf16.msra.mxu0 %v5096
        %5910 = vmatprep.subr.bf16.mxu0 %v5104
        %5911 = vmatpush1.bf16.msra.mxu0 %v5103
        %5912 = vmatprep.subr.bf16.mxu0 %v5111
        %5913 = vmatpush1.bf16.msra.mxu0 %v5110
        %5914 = vmatprep.subr.bf16.mxu0 %v5118
        %5915 = vmatpush1.bf16.msra.mxu0 %v5117
        %5916 = vmatprep.subr.bf16.mxu0 %v5125
        %5917 = vmatpush1.bf16.msra.mxu0 %v5124
        %5918 = vmatprep.subr.bf16.mxu0 %v5132
        %5919 = vmatpush1.bf16.msra.mxu0 %v5131
        %5920 = vmatprep.subr.bf16.mxu0 %v5139
        %5921 = vmatpush1.bf16.msra.mxu0 %v5138
        %5922 = vmatprep.subr.bf16.mxu0 %v5146
        %5923 = vmatpush1.bf16.msra.mxu0 %v5145
        %5924 = vmatprep.subr.bf16.mxu0 %v5153
        %5925 = vmatpush1.bf16.msra.mxu0 %v5152
        %5926 = vmatprep.subr.bf16.mxu0 %v5160
        %5927 = vmatpush1.bf16.msra.mxu0 %v5159
        %5928 = vmatprep.subr.bf16.mxu0 %v5167
        %5929 = vmatpush1.bf16.msra.mxu0 %v5166
        %5930 = vmatprep.subr.bf16.mxu0 %v5174
        %5931 = vmatpush1.bf16.msra.mxu0 %v5173
        %5932 = vmatprep.subr.bf16.mxu0 %v5181
        %5933 = vmatpush1.bf16.msra.mxu0 %v5180
        %5934 = vmatprep.mubr.bf16.mxu0 %v3001
        %5935 = vmatmul.mubr.bf16.gmra.mrb[0].mxu0 %v3000
        %v5936 = vpop.f32.mrb[0].mxu0
        %v5937 = vadd.f32 %v5894, %v5936
        %v5938 = vpop.f32.mrb[0].mxu0
        %v5939 = vadd.f32 %v5896, %v5938
        %v5940 = vpop.f32.mrb[0].mxu0
        %v5941 = vadd.f32 %v5898, %v5940
        %v5942 = vpop.f32.mrb[0].mxu0
        %v5943 = vadd.f32 %v5900, %v5942
        %5944 = vdwg.mxu0
        %5945 = vmatprep.subr.bf16.mxu0 %v5188
        %5946 = vmatpush1.bf16.msra.mxu0 %v5187
        %5947 = vmatprep.subr.bf16.mxu0 %v5195
        %5948 = vmatpush1.bf16.msra.mxu0 %v5194
        %5949 = vmatprep.subr.bf16.mxu0 %v5202
        %5950 = vmatpush1.bf16.msra.mxu0 %v5201
        %5951 = vmatprep.subr.bf16.mxu0 %v5209
        %5952 = vmatpush1.bf16.msra.mxu0 %v5208
        %5953 = vmatprep.subr.bf16.mxu0 %v5216
        %5954 = vmatpush1.bf16.msra.mxu0 %v5215
        %5955 = vmatprep.subr.bf16.mxu0 %v5223
        %5956 = vmatpush1.bf16.msra.mxu0 %v5222
        %5957 = vmatprep.subr.bf16.mxu0 %v5230
        %5958 = vmatpush1.bf16.msra.mxu0 %v5229
        %5959 = vmatprep.subr.bf16.mxu0 %v5237
        %5960 = vmatpush1.bf16.msra.mxu0 %v5236
        %5961 = vmatprep.subr.bf16.mxu0 %v5244
        %5962 = vmatpush1.bf16.msra.mxu0 %v5243
        %5963 = vmatprep.subr.bf16.mxu0 %v5251
        %5964 = vmatpush1.bf16.msra.mxu0 %v5250
        %5965 = vmatprep.subr.bf16.mxu0 %v5258
        %5966 = vmatpush1.bf16.msra.mxu0 %v5257
        %5967 = vmatprep.subr.bf16.mxu0 %v5265
        %5968 = vmatpush1.bf16.msra.mxu0 %v5264
        %5969 = vmatprep.subr.bf16.mxu0 %v5272
        %5970 = vmatpush1.bf16.msra.mxu0 %v5271
        %5971 = vmatprep.subr.bf16.mxu0 %v5279
        %5972 = vmatpush1.bf16.msra.mxu0 %v5278
        %5973 = vmatprep.subr.bf16.mxu0 %v5286
        %5974 = vmatpush1.bf16.msra.mxu0 %v5285
        %5975 = vmatprep.subr.bf16.mxu0 %v5293
        %5976 = vmatpush1.bf16.msra.mxu0 %v5292
        %5977 = vmatprep.mubr.bf16.mxu0 %v3003
        %5978 = vmatmul.mubr.bf16.gmra.mrb[0].mxu0 %v3002
        %v5979 = vpop.f32.mrb[0].mxu0
        %v5980 = vadd.f32 %v5937, %v5979
        %v5981 = vpop.f32.mrb[0].mxu0
        %v5982 = vadd.f32 %v5939, %v5981
        %v5983 = vpop.f32.mrb[0].mxu0
        %v5984 = vadd.f32 %v5941, %v5983
        %v5985 = vpop.f32.mrb[0].mxu0
        %v5986 = vadd.f32 %v5943, %v5985
        %5987 = vdwg.mxu0
        %5988 = vmatprep.subr.bf16.mxu0 %v5300
        %5989 = vmatpush1.bf16.msra.mxu0 %v5299
        %5990 = vmatprep.subr.bf16.mxu0 %v5307
        %5991 = vmatpush1.bf16.msra.mxu0 %v5306
        %5992 = vmatprep.subr.bf16.mxu0 %v5314
        %5993 = vmatpush1.bf16.msra.mxu0 %v5313
        %5994 = vmatprep.subr.bf16.mxu0 %v5321
        %5995 = vmatpush1.bf16.msra.mxu0 %v5320
        %5996 = vmatprep.subr.bf16.mxu0 %v5328
        %5997 = vmatpush1.bf16.msra.mxu0 %v5327
        %5998 = vmatprep.subr.bf16.mxu0 %v5335
        %5999 = vmatpush1.bf16.msra.mxu0 %v5334
        %6000 = vmatprep.subr.bf16.mxu0 %v5342
        %6001 = vmatpush1.bf16.msra.mxu0 %v5341
        %6002 = vmatprep.subr.bf16.mxu0 %v5349
        %6003 = vmatpush1.bf16.msra.mxu0 %v5348
        %6004 = vmatprep.subr.bf16.mxu0 %v5356
        %6005 = vmatpush1.bf16.msra.mxu0 %v5355
        %6006 = vmatprep.subr.bf16.mxu0 %v5363
        %6007 = vmatpush1.bf16.msra.mxu0 %v5362
        %6008 = vmatprep.subr.bf16.mxu0 %v5370
        %6009 = vmatpush1.bf16.msra.mxu0 %v5369
        %6010 = vmatprep.subr.bf16.mxu0 %v5377
        %6011 = vmatpush1.bf16.msra.mxu0 %v5376
        %6012 = vmatprep.subr.bf16.mxu0 %v5384
        %6013 = vmatpush1.bf16.msra.mxu0 %v5383
        %6014 = vmatprep.subr.bf16.mxu0 %v5391
        %6015 = vmatpush1.bf16.msra.mxu0 %v5390
        %6016 = vmatprep.subr.bf16.mxu0 %v5398
        %6017 = vmatpush1.bf16.msra.mxu0 %v5397
        %6018 = vmatprep.subr.bf16.mxu0 %v5405
        %6019 = vmatpush1.bf16.msra.mxu0 %v5404
        %6020 = vmatprep.mubr.bf16.mxu0 %v3005
        %6021 = vmatmul.mubr.bf16.gmra.mrb[0].mxu0 %v3004
        %v6022 = vpop.f32.mrb[0].mxu0
        %v6023 = vadd.f32 %v5980, %v6022
        %v6024 = vpop.f32.mrb[0].mxu0
        %v6025 = vadd.f32 %v5982, %v6024
        %v6026 = vpop.f32.mrb[0].mxu0
        %v6027 = vadd.f32 %v5984, %v6026
        %v6028 = vpop.f32.mrb[0].mxu0
        %v6029 = vadd.f32 %v5986, %v6028
        %6030 = vdwg.mxu0
        %6031 = vmatprep.subr.bf16.mxu0 %v4966
        %6032 = vmatpush1.bf16.msra.mxu0 %v4965
        %6033 = vmatprep.subr.bf16.mxu0 %v4973
        %6034 = vmatpush1.bf16.msra.mxu0 %v4972
        %6035 = vmatprep.subr.bf16.mxu0 %v4980
        %6036 = vmatpush1.bf16.msra.mxu0 %v4979
        %6037 = vmatprep.subr.bf16.mxu0 %v4987
        %6038 = vmatpush1.bf16.msra.mxu0 %v4986
        %6039 = vmatprep.subr.bf16.mxu0 %v4994
        %6040 = vmatpush1.bf16.msra.mxu0 %v4993
        %6041 = vmatprep.subr.bf16.mxu0 %v5001
        %6042 = vmatpush1.bf16.msra.mxu0 %v5000
        %6043 = vmatprep.subr.bf16.mxu0 %v5008
        %6044 = vmatpush1.bf16.msra.mxu0 %v5007
        %6045 = vmatprep.subr.bf16.mxu0 %v5015
        %6046 = vmatpush1.bf16.msra.mxu0 %v5014
        %6047 = vmatprep.subr.bf16.mxu0 %v5022
        %6048 = vmatpush1.bf16.msra.mxu0 %v5021
        %6049 = vmatprep.subr.bf16.mxu0 %v5029
        %6050 = vmatpush1.bf16.msra.mxu0 %v5028
        %6051 = vmatprep.subr.bf16.mxu0 %v5036
        %6052 = vmatpush1.bf16.msra.mxu0 %v5035
        %6053 = vmatprep.subr.bf16.mxu0 %v5043
        %6054 = vmatpush1.bf16.msra.mxu0 %v5042
        %6055 = vmatprep.subr.bf16.mxu0 %v5050
        %6056 = vmatpush1.bf16.msra.mxu0 %v5049
        %6057 = vmatprep.subr.bf16.mxu0 %v5057
        %6058 = vmatpush1.bf16.msra.mxu0 %v5056
        %6059 = vmatprep.subr.bf16.mxu0 %v5064
        %6060 = vmatpush1.bf16.msra.mxu0 %v5063
        %6061 = vmatprep.subr.bf16.mxu0 %v5071
        %6062 = vmatpush1.bf16.msra.mxu0 %v5070
        %6063 = vmatprep.mubr.bf16.mxu0 %v2999
        %6064 = vmatmul.mubr.bf16.gmra.mrb[0].mxu0 %v2998
        %v6065 = vpop.f32.mrb[0].mxu0
        %v6066 = vadd.f32 %v3531, %v6065
        %v6067 = vpop.f32.mrb[0].mxu0
        %v6068 = vadd.f32 %v3535, %v6067
        %v6069 = vpop.f32.mrb[0].mxu0
        %v6070 = vadd.f32 %v3531, %v6069
        %v6071 = vpop.f32.mrb[0].mxu0
        %v6072 = vadd.f32 %v3535, %v6071
        %6073 = vdwg.mxu0
        %6074 = vmatprep.subr.bf16.mxu0 %v5078
        %6075 = vmatpush1.bf16.msra.mxu0 %v5077
        %6076 = vmatprep.subr.bf16.mxu0 %v5085
        %6077 = vmatpush1.bf16.msra.mxu0 %v5084
        %6078 = vmatprep.subr.bf16.mxu0 %v5092
        %6079 = vmatpush1.bf16.msra.mxu0 %v5091
        %6080 = vmatprep.subr.bf16.mxu0 %v5099
        %6081 = vmatpush1.bf16.msra.mxu0 %v5098
        %6082 = vmatprep.subr.bf16.mxu0 %v5106
        %6083 = vmatpush1.bf16.msra.mxu0 %v5105
        %6084 = vmatprep.subr.bf16.mxu0 %v5113
        %6085 = vmatpush1.bf16.msra.mxu0 %v5112
        %6086 = vmatprep.subr.bf16.mxu0 %v5120
        %6087 = vmatpush1.bf16.msra.mxu0 %v5119
        %6088 = vmatprep.subr.bf16.mxu0 %v5127
        %6089 = vmatpush1.bf16.msra.mxu0 %v5126
        %6090 = vmatprep.subr.bf16.mxu0 %v5134
        %6091 = vmatpush1.bf16.msra.mxu0 %v5133
        %6092 = vmatprep.subr.bf16.mxu0 %v5141
        %6093 = vmatpush1.bf16.msra.mxu0 %v5140
        %6094 = vmatprep.subr.bf16.mxu0 %v5148
        %6095 = vmatpush1.bf16.msra.mxu0 %v5147
        %6096 = vmatprep.subr.bf16.mxu0 %v5155
        %6097 = vmatpush1.bf16.msra.mxu0 %v5154
        %6098 = vmatprep.subr.bf16.mxu0 %v5162
        %6099 = vmatpush1.bf16.msra.mxu0 %v5161
        %6100 = vmatprep.subr.bf16.mxu0 %v5169
        %6101 = vmatpush1.bf16.msra.mxu0 %v5168
        %6102 = vmatprep.subr.bf16.mxu0 %v5176
        %6103 = vmatpush1.bf16.msra.mxu0 %v5175
        %6104 = vmatprep.subr.bf16.mxu0 %v5183
        %6105 = vmatpush1.bf16.msra.mxu0 %v5182
        %6106 = vmatprep.mubr.bf16.mxu0 %v3001
        %6107 = vmatmul.mubr.bf16.gmra.mrb[0].mxu0 %v3000
        %v6108 = vpop.f32.mrb[0].mxu0
        %v6109 = vadd.f32 %v6066, %v6108
        %v6110 = vpop.f32.mrb[0].mxu0
        %v6111 = vadd.f32 %v6068, %v6110
        %v6112 = vpop.f32.mrb[0].mxu0
        %v6113 = vadd.f32 %v6070, %v6112
        %v6114 = vpop.f32.mrb[0].mxu0
        %v6115 = vadd.f32 %v6072, %v6114
        %6116 = vdwg.mxu0
        %6117 = vmatprep.subr.bf16.mxu0 %v5190
        %6118 = vmatpush1.bf16.msra.mxu0 %v5189
        %6119 = vmatprep.subr.bf16.mxu0 %v5197
        %6120 = vmatpush1.bf16.msra.mxu0 %v5196
        %6121 = vmatprep.subr.bf16.mxu0 %v5204
        %6122 = vmatpush1.bf16.msra.mxu0 %v5203
        %6123 = vmatprep.subr.bf16.mxu0 %v5211
        %6124 = vmatpush1.bf16.msra.mxu0 %v5210
        %6125 = vmatprep.subr.bf16.mxu0 %v5218
        %6126 = vmatpush1.bf16.msra.mxu0 %v5217
        %6127 = vmatprep.subr.bf16.mxu0 %v5225
        %6128 = vmatpush1.bf16.msra.mxu0 %v5224
        %6129 = vmatprep.subr.bf16.mxu0 %v5232
        %6130 = vmatpush1.bf16.msra.mxu0 %v5231
        %6131 = vmatprep.subr.bf16.mxu0 %v5239
        %6132 = vmatpush1.bf16.msra.mxu0 %v5238
        %6133 = vmatprep.subr.bf16.mxu0 %v5246
        %6134 = vmatpush1.bf16.msra.mxu0 %v5245
        %6135 = vmatprep.subr.bf16.mxu0 %v5253
        %6136 = vmatpush1.bf16.msra.mxu0 %v5252
        %6137 = vmatprep.subr.bf16.mxu0 %v5260
        %6138 = vmatpush1.bf16.msra.mxu0 %v5259
        %6139 = vmatprep.subr.bf16.mxu0 %v5267
        %6140 = vmatpush1.bf16.msra.mxu0 %v5266
        %6141 = vmatprep.subr.bf16.mxu0 %v5274
        %6142 = vmatpush1.bf16.msra.mxu0 %v5273
        %6143 = vmatprep.subr.bf16.mxu0 %v5281
        %6144 = vmatpush1.bf16.msra.mxu0 %v5280
        %6145 = vmatprep.subr.bf16.mxu0 %v5288
        %6146 = vmatpush1.bf16.msra.mxu0 %v5287
        %6147 = vmatprep.subr.bf16.mxu0 %v5295
        %6148 = vmatpush1.bf16.msra.mxu0 %v5294
        %6149 = vmatprep.mubr.bf16.mxu0 %v3003
        %6150 = vmatmul.mubr.bf16.gmra.mrb[0].mxu0 %v3002
        %v6151 = vpop.f32.mrb[0].mxu0
        %v6152 = vadd.f32 %v6109, %v6151
        %v6153 = vpop.f32.mrb[0].mxu0
        %v6154 = vadd.f32 %v6111, %v6153
        %v6155 = vpop.f32.mrb[0].mxu0
        %v6156 = vadd.f32 %v6113, %v6155
        %v6157 = vpop.f32.mrb[0].mxu0
        %v6158 = vadd.f32 %v6115, %v6157
        %6159 = vdwg.mxu0
        %6160 = vmatprep.subr.bf16.mxu0 %v5302
        %6161 = vmatpush1.bf16.msra.mxu0 %v5301
        %6162 = vmatprep.subr.bf16.mxu0 %v5309
        %6163 = vmatpush1.bf16.msra.mxu0 %v5308
        %6164 = vmatprep.subr.bf16.mxu0 %v5316
        %6165 = vmatpush1.bf16.msra.mxu0 %v5315
        %6166 = vmatprep.subr.bf16.mxu0 %v5323
        %6167 = vmatpush1.bf16.msra.mxu0 %v5322
        %6168 = vmatprep.subr.bf16.mxu0 %v5330
        %6169 = vmatpush1.bf16.msra.mxu0 %v5329
        %6170 = vmatprep.subr.bf16.mxu0 %v5337
        %6171 = vmatpush1.bf16.msra.mxu0 %v5336
        %6172 = vmatprep.subr.bf16.mxu0 %v5344
        %6173 = vmatpush1.bf16.msra.mxu0 %v5343
        %6174 = vmatprep.subr.bf16.mxu0 %v5351
        %6175 = vmatpush1.bf16.msra.mxu0 %v5350
        %6176 = vmatprep.subr.bf16.mxu0 %v5358
        %6177 = vmatpush1.bf16.msra.mxu0 %v5357
        %6178 = vmatprep.subr.bf16.mxu0 %v5365
        %6179 = vmatpush1.bf16.msra.mxu0 %v5364
        %6180 = vmatprep.subr.bf16.mxu0 %v5372
        %6181 = vmatpush1.bf16.msra.mxu0 %v5371
        %6182 = vmatprep.subr.bf16.mxu0 %v5379
        %6183 = vmatpush1.bf16.msra.mxu0 %v5378
        %6184 = vmatprep.subr.bf16.mxu0 %v5386
        %6185 = vmatpush1.bf16.msra.mxu0 %v5385
        %6186 = vmatprep.subr.bf16.mxu0 %v5393
        %6187 = vmatpush1.bf16.msra.mxu0 %v5392
        %6188 = vmatprep.subr.bf16.mxu0 %v5400
        %6189 = vmatpush1.bf16.msra.mxu0 %v5399
        %6190 = vmatprep.subr.bf16.mxu0 %v5407
        %6191 = vmatpush1.bf16.msra.mxu0 %v5406
        %6192 = vmatprep.mubr.bf16.mxu0 %v3005
        %6193 = vmatmul.mubr.bf16.gmra.mrb[0].mxu0 %v3004
        %v6194 = vpop.f32.mrb[0].mxu0
        %v6195 = vadd.f32 %v6152, %v6194
        %v6196 = vpop.f32.mrb[0].mxu0
        %v6197 = vadd.f32 %v6154, %v6196
        %v6198 = vpop.f32.mrb[0].mxu0
        %v6199 = vadd.f32 %v6156, %v6198
        %v6200 = vpop.f32.mrb[0].mxu0
        %v6201 = vadd.f32 %v6158, %v6200
        %6202 = vdwg.mxu0
        %6203 = vmatprep.subr.bf16.mxu0 %v4968
        %6204 = vmatpush1.bf16.msra.mxu0 %v4967
        %6205 = vmatprep.subr.bf16.mxu0 %v4975
        %6206 = vmatpush1.bf16.msra.mxu0 %v4974
        %6207 = vmatprep.subr.bf16.mxu0 %v4982
        %6208 = vmatpush1.bf16.msra.mxu0 %v4981
        %6209 = vmatprep.subr.bf16.mxu0 %v4989
        %6210 = vmatpush1.bf16.msra.mxu0 %v4988
        %6211 = vmatprep.subr.bf16.mxu0 %v4996
        %6212 = vmatpush1.bf16.msra.mxu0 %v4995
        %6213 = vmatprep.subr.bf16.mxu0 %v5003
        %6214 = vmatpush1.bf16.msra.mxu0 %v5002
        %6215 = vmatprep.subr.bf16.mxu0 %v5010
        %6216 = vmatpush1.bf16.msra.mxu0 %v5009
        %6217 = vmatprep.subr.bf16.mxu0 %v5017
        %6218 = vmatpush1.bf16.msra.mxu0 %v5016
        %6219 = vmatprep.subr.bf16.mxu0 %v5024
        %6220 = vmatpush1.bf16.msra.mxu0 %v5023
        %6221 = vmatprep.subr.bf16.mxu0 %v5031
        %6222 = vmatpush1.bf16.msra.mxu0 %v5030
        %6223 = vmatprep.subr.bf16.mxu0 %v5038
        %6224 = vmatpush1.bf16.msra.mxu0 %v5037
        %6225 = vmatprep.subr.bf16.mxu0 %v5045
        %6226 = vmatpush1.bf16.msra.mxu0 %v5044
        %6227 = vmatprep.subr.bf16.mxu0 %v5052
        %6228 = vmatpush1.bf16.msra.mxu0 %v5051
        %6229 = vmatprep.subr.bf16.mxu0 %v5059
        %6230 = vmatpush1.bf16.msra.mxu0 %v5058
        %6231 = vmatprep.subr.bf16.mxu0 %v5066
        %6232 = vmatpush1.bf16.msra.mxu0 %v5065
        %6233 = vmatprep.subr.bf16.mxu0 %v5073
        %6234 = vmatpush1.bf16.msra.mxu0 %v5072
        %6235 = vmatprep.mubr.bf16.mxu0 %v2999
        %6236 = vmatmul.mubr.bf16.gmra.mrb[0].mxu0 %v2998
        %v6237 = vpop.f32.mrb[0].mxu0
        %v6238 = vadd.f32 %v3539, %v6237
        %v6239 = vpop.f32.mrb[0].mxu0
        %v6240 = vadd.f32 %v3543, %v6239
        %v6241 = vpop.f32.mrb[0].mxu0
        %v6242 = vadd.f32 %v3539, %v6241
        %v6243 = vpop.f32.mrb[0].mxu0
        %v6244 = vadd.f32 %v3543, %v6243
        %6245 = vdwg.mxu0
        %6246 = vmatprep.subr.bf16.mxu0 %v5080
        %6247 = vmatpush1.bf16.msra.mxu0 %v5079
        %6248 = vmatprep.subr.bf16.mxu0 %v5087
        %6249 = vmatpush1.bf16.msra.mxu0 %v5086
        %6250 = vmatprep.subr.bf16.mxu0 %v5094
        %6251 = vmatpush1.bf16.msra.mxu0 %v5093
        %6252 = vmatprep.subr.bf16.mxu0 %v5101
        %6253 = vmatpush1.bf16.msra.mxu0 %v5100
        %6254 = vmatprep.subr.bf16.mxu0 %v5108
        %6255 = vmatpush1.bf16.msra.mxu0 %v5107
        %6256 = vmatprep.subr.bf16.mxu0 %v5115
        %6257 = vmatpush1.bf16.msra.mxu0 %v5114
        %6258 = vmatprep.subr.bf16.mxu0 %v5122
        %6259 = vmatpush1.bf16.msra.mxu0 %v5121
        %6260 = vmatprep.subr.bf16.mxu0 %v5129
        %6261 = vmatpush1.bf16.msra.mxu0 %v5128
        %6262 = vmatprep.subr.bf16.mxu0 %v5136
        %6263 = vmatpush1.bf16.msra.mxu0 %v5135
        %6264 = vmatprep.subr.bf16.mxu0 %v5143
        %6265 = vmatpush1.bf16.msra.mxu0 %v5142
        %6266 = vmatprep.subr.bf16.mxu0 %v5150
        %6267 = vmatpush1.bf16.msra.mxu0 %v5149
        %6268 = vmatprep.subr.bf16.mxu0 %v5157
        %6269 = vmatpush1.bf16.msra.mxu0 %v5156
        %6270 = vmatprep.subr.bf16.mxu0 %v5164
        %6271 = vmatpush1.bf16.msra.mxu0 %v5163
        %6272 = vmatprep.subr.bf16.mxu0 %v5171
        %6273 = vmatpush1.bf16.msra.mxu0 %v5170
        %6274 = vmatprep.subr.bf16.mxu0 %v5178
        %6275 = vmatpush1.bf16.msra.mxu0 %v5177
        %6276 = vmatprep.subr.bf16.mxu0 %v5185
        %6277 = vmatpush1.bf16.msra.mxu0 %v5184
        %6278 = vmatprep.mubr.bf16.mxu0 %v3001
        %6279 = vmatmul.mubr.bf16.gmra.mrb[0].mxu0 %v3000
        %v6280 = vpop.f32.mrb[0].mxu0
        %v6281 = vadd.f32 %v6238, %v6280
        %v6282 = vpop.f32.mrb[0].mxu0
        %v6283 = vadd.f32 %v6240, %v6282
        %v6284 = vpop.f32.mrb[0].mxu0
        %v6285 = vadd.f32 %v6242, %v6284
        %v6286 = vpop.f32.mrb[0].mxu0
        %v6287 = vadd.f32 %v6244, %v6286
        %6288 = vdwg.mxu0
        %6289 = vmatprep.subr.bf16.mxu0 %v5192
        %6290 = vmatpush1.bf16.msra.mxu0 %v5191
        %6291 = vmatprep.subr.bf16.mxu0 %v5199
        %6292 = vmatpush1.bf16.msra.mxu0 %v5198
        %6293 = vmatprep.subr.bf16.mxu0 %v5206
        %6294 = vmatpush1.bf16.msra.mxu0 %v5205
        %6295 = vmatprep.subr.bf16.mxu0 %v5213
        %6296 = vmatpush1.bf16.msra.mxu0 %v5212
        %6297 = vmatprep.subr.bf16.mxu0 %v5220
        %6298 = vmatpush1.bf16.msra.mxu0 %v5219
        %6299 = vmatprep.subr.bf16.mxu0 %v5227
        %6300 = vmatpush1.bf16.msra.mxu0 %v5226
        %6301 = vmatprep.subr.bf16.mxu0 %v5234
        %6302 = vmatpush1.bf16.msra.mxu0 %v5233
        %6303 = vmatprep.subr.bf16.mxu0 %v5241
        %6304 = vmatpush1.bf16.msra.mxu0 %v5240
        %6305 = vmatprep.subr.bf16.mxu0 %v5248
        %6306 = vmatpush1.bf16.msra.mxu0 %v5247
        %6307 = vmatprep.subr.bf16.mxu0 %v5255
        %6308 = vmatpush1.bf16.msra.mxu0 %v5254
        %6309 = vmatprep.subr.bf16.mxu0 %v5262
        %6310 = vmatpush1.bf16.msra.mxu0 %v5261
        %6311 = vmatprep.subr.bf16.mxu0 %v5269
        %6312 = vmatpush1.bf16.msra.mxu0 %v5268
        %6313 = vmatprep.subr.bf16.mxu0 %v5276
        %6314 = vmatpush1.bf16.msra.mxu0 %v5275
        %6315 = vmatprep.subr.bf16.mxu0 %v5283
        %6316 = vmatpush1.bf16.msra.mxu0 %v5282
        %6317 = vmatprep.subr.bf16.mxu0 %v5290
        %6318 = vmatpush1.bf16.msra.mxu0 %v5289
        %6319 = vmatprep.subr.bf16.mxu0 %v5297
        %6320 = vmatpush1.bf16.msra.mxu0 %v5296
        %6321 = vmatprep.mubr.bf16.mxu0 %v3003
        %6322 = vmatmul.mubr.bf16.gmra.mrb[0].mxu0 %v3002
        %v6323 = vpop.f32.mrb[0].mxu0
        %v6324 = vadd.f32 %v6281, %v6323
        %v6325 = vpop.f32.mrb[0].mxu0
        %v6326 = vadd.f32 %v6283, %v6325
        %v6327 = vpop.f32.mrb[0].mxu0
        %v6328 = vadd.f32 %v6285, %v6327
        %v6329 = vpop.f32.mrb[0].mxu0
        %v6330 = vadd.f32 %v6287, %v6329
        %6331 = vdwg.mxu0
        %6332 = vmatprep.subr.bf16.mxu0 %v5304
        %6333 = vmatpush1.bf16.msra.mxu0 %v5303
        %6334 = vmatprep.subr.bf16.mxu0 %v5311
        %6335 = vmatpush1.bf16.msra.mxu0 %v5310
        %6336 = vmatprep.subr.bf16.mxu0 %v5318
        %6337 = vmatpush1.bf16.msra.mxu0 %v5317
        %6338 = vmatprep.subr.bf16.mxu0 %v5325
        %6339 = vmatpush1.bf16.msra.mxu0 %v5324
        %6340 = vmatprep.subr.bf16.mxu0 %v5332
        %6341 = vmatpush1.bf16.msra.mxu0 %v5331
        %6342 = vmatprep.subr.bf16.mxu0 %v5339
        %6343 = vmatpush1.bf16.msra.mxu0 %v5338
        %6344 = vmatprep.subr.bf16.mxu0 %v5346
        %6345 = vmatpush1.bf16.msra.mxu0 %v5345
        %6346 = vmatprep.subr.bf16.mxu0 %v5353
        %6347 = vmatpush1.bf16.msra.mxu0 %v5352
        %6348 = vmatprep.subr.bf16.mxu0 %v5360
        %6349 = vmatpush1.bf16.msra.mxu0 %v5359
        %6350 = vmatprep.subr.bf16.mxu0 %v5367
        %6351 = vmatpush1.bf16.msra.mxu0 %v5366
        %6352 = vmatprep.subr.bf16.mxu0 %v5374
        %6353 = vmatpush1.bf16.msra.mxu0 %v5373
        %6354 = vmatprep.subr.bf16.mxu0 %v5381
        %6355 = vmatpush1.bf16.msra.mxu0 %v5380
        %6356 = vmatprep.subr.bf16.mxu0 %v5388
        %6357 = vmatpush1.bf16.msra.mxu0 %v5387
        %6358 = vmatprep.subr.bf16.mxu0 %v5395
        %6359 = vmatpush1.bf16.msra.mxu0 %v5394
        %6360 = vmatprep.subr.bf16.mxu0 %v5402
        %6361 = vmatpush1.bf16.msra.mxu0 %v5401
        %6362 = vmatprep.subr.bf16.mxu0 %v5409
        %6363 = vmatpush1.bf16.msra.mxu0 %v5408
        %6364 = vmatprep.mubr.bf16.mxu0 %v3005
        %6365 = vmatmul.mubr.bf16.gmra.mrb[0].mxu0 %v3004
        %v6366 = vpop.f32.mrb[0].mxu0
        %v6367 = vadd.f32 %v6324, %v6366
        %v6368 = vpop.f32.mrb[0].mxu0
        %v6369 = vadd.f32 %v6326, %v6368
        %v6370 = vpop.f32.mrb[0].mxu0
        %v6371 = vadd.f32 %v6328, %v6370
        %v6372 = vpop.f32.mrb[0].mxu0
        %v6373 = vadd.f32 %v6330, %v6372
        %6374 = vdwg.mxu0
        %6375 = vmatprep.subr.bf16.mxu0 0
        %6376 = vmatpush1.bf16.msra.mxu0 %v4969
        %6377 = vmatprep.subr.bf16.mxu0 0
        %6378 = vmatpush1.bf16.msra.mxu0 %v4976
        %6379 = vmatprep.subr.bf16.mxu0 0
        %6380 = vmatpush1.bf16.msra.mxu0 %v4983
        %6381 = vmatprep.subr.bf16.mxu0 0
        %6382 = vmatpush1.bf16.msra.mxu0 %v4990
        %6383 = vmatprep.subr.bf16.mxu0 0
        %6384 = vmatpush1.bf16.msra.mxu0 %v4997
        %6385 = vmatprep.subr.bf16.mxu0 0
        %6386 = vmatpush1.bf16.msra.mxu0 %v5004
        %6387 = vmatprep.subr.bf16.mxu0 0
        %6388 = vmatpush1.bf16.msra.mxu0 %v5011
        %6389 = vmatprep.subr.bf16.mxu0 0
        %6390 = vmatpush1.bf16.msra.mxu0 %v5018
        %6391 = vmatprep.subr.bf16.mxu0 0
        %6392 = vmatpush1.bf16.msra.mxu0 %v5025
        %6393 = vmatprep.subr.bf16.mxu0 0
        %6394 = vmatpush1.bf16.msra.mxu0 %v5032
        %6395 = vmatprep.subr.bf16.mxu0 0
        %6396 = vmatpush1.bf16.msra.mxu0 %v5039
        %6397 = vmatprep.subr.bf16.mxu0 0
        %6398 = vmatpush1.bf16.msra.mxu0 %v5046
        %6399 = vmatprep.subr.bf16.mxu0 0
        %6400 = vmatpush1.bf16.msra.mxu0 %v5053
        %6401 = vmatprep.subr.bf16.mxu0 0
        %6402 = vmatpush1.bf16.msra.mxu0 %v5060
        %6403 = vmatprep.subr.bf16.mxu0 0
        %6404 = vmatpush1.bf16.msra.mxu0 %v5067
        %6405 = vmatprep.subr.bf16.mxu0 0
        %6406 = vmatpush1.bf16.msra.mxu0 %v5074
        %6407 = vmatprep.mubr.bf16.mxu0 %v2999
        %6408 = vmatmul.mubr.bf16.gmra.mrb[0].mxu0 %v2998
        %v6409 = vpop.f32.mrb[0].mxu0
        %v6410 = vadd.f32 %v3547, %v6409
        %v6411 = vpop.f32.mrb[0].mxu0
        %v6412 = vpop.f32.mrb[0].mxu0
        %v6413 = vadd.f32 %v3547, %v6412
        %v6414 = vpop.f32.mrb[0].mxu0
        %6415 = vdwg.mxu0
        %6416 = vmatprep.subr.bf16.mxu0 0
        %6417 = vmatpush1.bf16.msra.mxu0 %v5081
        %6418 = vmatprep.subr.bf16.mxu0 0
        %6419 = vmatpush1.bf16.msra.mxu0 %v5088
        %6420 = vmatprep.subr.bf16.mxu0 0
        %6421 = vmatpush1.bf16.msra.mxu0 %v5095
        %6422 = vmatprep.subr.bf16.mxu0 0
        %6423 = vmatpush1.bf16.msra.mxu0 %v5102
        %6424 = vmatprep.subr.bf16.mxu0 0
        %6425 = vmatpush1.bf16.msra.mxu0 %v5109
        %6426 = vmatprep.subr.bf16.mxu0 0
        %6427 = vmatpush1.bf16.msra.mxu0 %v5116
        %6428 = vmatprep.subr.bf16.mxu0 0
        %6429 = vmatpush1.bf16.msra.mxu0 %v5123
        %6430 = vmatprep.subr.bf16.mxu0 0
        %6431 = vmatpush1.bf16.msra.mxu0 %v5130
        %6432 = vmatprep.subr.bf16.mxu0 0
        %6433 = vmatpush1.bf16.msra.mxu0 %v5137
        %6434 = vmatprep.subr.bf16.mxu0 0
        %6435 = vmatpush1.bf16.msra.mxu0 %v5144
        %6436 = vmatprep.subr.bf16.mxu0 0
        %6437 = vmatpush1.bf16.msra.mxu0 %v5151
        %6438 = vmatprep.subr.bf16.mxu0 0
        %6439 = vmatpush1.bf16.msra.mxu0 %v5158
        %6440 = vmatprep.subr.bf16.mxu0 0
        %6441 = vmatpush1.bf16.msra.mxu0 %v5165
        %6442 = vmatprep.subr.bf16.mxu0 0
        %6443 = vmatpush1.bf16.msra.mxu0 %v5172
        %6444 = vmatprep.subr.bf16.mxu0 0
        %6445 = vmatpush1.bf16.msra.mxu0 %v5179
        %6446 = vmatprep.subr.bf16.mxu0 0
        %6447 = vmatpush1.bf16.msra.mxu0 %v5186
        %6448 = vmatprep.mubr.bf16.mxu0 %v3001
        %6449 = vmatmul.mubr.bf16.gmra.mrb[0].mxu0 %v3000
        %v6450 = vpop.f32.mrb[0].mxu0
        %v6451 = vadd.f32 %v6410, %v6450
        %v6452 = vpop.f32.mrb[0].mxu0
        %v6453 = vpop.f32.mrb[0].mxu0
        %v6454 = vadd.f32 %v6413, %v6453
        %v6455 = vpop.f32.mrb[0].mxu0
        %6456 = vdwg.mxu0
        %6457 = vmatprep.subr.bf16.mxu0 0
        %6458 = vmatpush1.bf16.msra.mxu0 %v5193
        %6459 = vmatprep.subr.bf16.mxu0 0
        %6460 = vmatpush1.bf16.msra.mxu0 %v5200
        %6461 = vmatprep.subr.bf16.mxu0 0
        %6462 = vmatpush1.bf16.msra.mxu0 %v5207
        %6463 = vmatprep.subr.bf16.mxu0 0
        %6464 = vmatpush1.bf16.msra.mxu0 %v5214
        %6465 = vmatprep.subr.bf16.mxu0 0
        %6466 = vmatpush1.bf16.msra.mxu0 %v5221
        %6467 = vmatprep.subr.bf16.mxu0 0
        %6468 = vmatpush1.bf16.msra.mxu0 %v5228
        %6469 = vmatprep.subr.bf16.mxu0 0
        %6470 = vmatpush1.bf16.msra.mxu0 %v5235
        %6471 = vmatprep.subr.bf16.mxu0 0
        %6472 = vmatpush1.bf16.msra.mxu0 %v5242
        %6473 = vmatprep.subr.bf16.mxu0 0
        %6474 = vmatpush1.bf16.msra.mxu0 %v5249
        %6475 = vmatprep.subr.bf16.mxu0 0
        %6476 = vmatpush1.bf16.msra.mxu0 %v5256
        %6477 = vmatprep.subr.bf16.mxu0 0
        %6478 = vmatpush1.bf16.msra.mxu0 %v5263
        %6479 = vmatprep.subr.bf16.mxu0 0
        %6480 = vmatpush1.bf16.msra.mxu0 %v5270
        %6481 = vmatprep.subr.bf16.mxu0 0
        %6482 = vmatpush1.bf16.msra.mxu0 %v5277
        %6483 = vmatprep.subr.bf16.mxu0 0
        %6484 = vmatpush1.bf16.msra.mxu0 %v5284
        %6485 = vmatprep.subr.bf16.mxu0 0
        %6486 = vmatpush1.bf16.msra.mxu0 %v5291
        %6487 = vmatprep.subr.bf16.mxu0 0
        %6488 = vmatpush1.bf16.msra.mxu0 %v5298
        %6489 = vmatprep.mubr.bf16.mxu0 %v3003
        %6490 = vmatmul.mubr.bf16.gmra.mrb[0].mxu0 %v3002
        %v6491 = vpop.f32.mrb[0].mxu0
        %v6492 = vadd.f32 %v6451, %v6491
        %v6493 = vpop.f32.mrb[0].mxu0
        %v6494 = vpop.f32.mrb[0].mxu0
        %v6495 = vadd.f32 %v6454, %v6494
        %v6496 = vpop.f32.mrb[0].mxu0
        %6497 = vdwg.mxu0
        %6498 = vmatprep.subr.bf16.mxu0 0
        %6499 = vmatpush1.bf16.msra.mxu0 %v5305
        %6500 = vmatprep.subr.bf16.mxu0 0
        %6501 = vmatpush1.bf16.msra.mxu0 %v5312
        %6502 = vmatprep.subr.bf16.mxu0 0
        %6503 = vmatpush1.bf16.msra.mxu0 %v5319
        %6504 = vmatprep.subr.bf16.mxu0 0
        %6505 = vmatpush1.bf16.msra.mxu0 %v5326
        %6506 = vmatprep.subr.bf16.mxu0 0
        %6507 = vmatpush1.bf16.msra.mxu0 %v5333
        %6508 = vmatprep.subr.bf16.mxu0 0
        %6509 = vmatpush1.bf16.msra.mxu0 %v5340
        %6510 = vmatprep.subr.bf16.mxu0 0
        %6511 = vmatpush1.bf16.msra.mxu0 %v5347
        %6512 = vmatprep.subr.bf16.mxu0 0
        %6513 = vmatpush1.bf16.msra.mxu0 %v5354
        %6514 = vmatprep.subr.bf16.mxu0 0
        %6515 = vmatpush1.bf16.msra.mxu0 %v5361
        %6516 = vmatprep.subr.bf16.mxu0 0
        %6517 = vmatpush1.bf16.msra.mxu0 %v5368
        %6518 = vmatprep.subr.bf16.mxu0 0
        %6519 = vmatpush1.bf16.msra.mxu0 %v5375
        %6520 = vmatprep.subr.bf16.mxu0 0
        %6521 = vmatpush1.bf16.msra.mxu0 %v5382
        %6522 = vmatprep.subr.bf16.mxu0 0
        %6523 = vmatpush1.bf16.msra.mxu0 %v5389
        %6524 = vmatprep.subr.bf16.mxu0 0
        %6525 = vmatpush1.bf16.msra.mxu0 %v5396
        %6526 = vmatprep.subr.bf16.mxu0 0
        %6527 = vmatpush1.bf16.msra.mxu0 %v5403
        %6528 = vmatprep.subr.bf16.mxu0 0
        %6529 = vmatpush1.bf16.msra.mxu0 %v5410
        %6530 = vmatprep.mubr.bf16.mxu0 %v3005
        %6531 = vmatmul.mubr.bf16.gmra.mrb[0].mxu0 %v3004
        %v6532 = vpop.f32.mrb[0].mxu0
        %v6533 = vadd.f32 %v6492, %v6532
        %v6534 = vpop.f32.mrb[0].mxu0
        %v6535 = vpop.f32.mrb[0].mxu0
        %v6536 = vadd.f32 %v6495, %v6535
        %v6537 = vpop.f32.mrb[0].mxu0
        %6538 = vdwg.mxu0
        %v6539 = vtanh.pop %v6023
        %v6540 = vtanh.pop %v6025
        %v6541 = vtanh.pop %v6195
        %v6542 = vtanh.pop %v6197
        %v6543 = vtanh.pop %v6367
        %v6544 = vtanh.pop %v6369
        %v6545 = vtanh.pop %v6533
        %v6546 = vtanh.pop %v6027
        %v6547 = vtanh.pop %v6029
        %v6548 = vtanh.pop %v6199
        %v6549 = vtanh.pop %v6201
        %v6550 = vtanh.pop %v6371
        %v6551 = vtanh.pop %v6373
        %v6552 = vtanh.pop %v6536
        %6553 = vst [vmem:[%s326] sm:$0xff] %v6539
        %6554 = vst [vmem:[%s326 + $0x8] sm:$0xff] %v6540
        %6555 = vst [vmem:[%s326 + $0x10] sm:$0xff] %v6541
        %6556 = vst [vmem:[%s326 + $0x18] sm:$0xff] %v6542
        %6557 = vst [vmem:[%s326 + $0x20] sm:$0xff] %v6543
        %6558 = vst [vmem:[%s326 + $0x28] sm:$0xff] %v6544
        %vm6559 = vcmask 130048
        %6560 = vst.msk [vmem:[%s326 + $0x30] sm:$0xff] %vm6559, %v6545
        %6561 = vst [vmem:[%s326 + $0x38] sm:$0xff] %v6546
        %6562 = vst [vmem:[%s326 + $0x40] sm:$0xff] %v6547
        %6563 = vst [vmem:[%s326 + $0x48] sm:$0xff] %v6548
        %6564 = vst [vmem:[%s326 + $0x50] sm:$0xff] %v6549
        %6565 = vst [vmem:[%s326 + $0x58] sm:$0xff] %v6550
        %6566 = vst [vmem:[%s326 + $0x60] sm:$0xff] %v6551
        %6567 = vst.msk [vmem:[%s326 + $0x68] sm:$0xff] %vm6559, %v6552
        %s6568 = sand.u32 %s225, 1
        %s6569 = scalar_lea.sflag [#allocation3], %s6568
        %s6570 = sand.u32 %s225, 1
        %s6571 = smul.addr %s6570, 112
        %s6572 = scalar_lea.vmem [#allocation2], %s6571
        // Predicated region
        $region57: #{tpu_custom_call.1} parent=55 // pred_check
          %p6573 = pneg %p235
        $region58: #{tpu_custom_call.1} parent=55 // pred_check_branch
          %6575 = sbr.rel (%p6573) target = $region60
        $region59: #{tpu_custom_call.1} parent=55 // pred_region
          %s6576 = smul.u32 2, %s23
          %s6578 = ssub.s32 1792, 1792
          %6579 = vsyncadd %s6569, %s6578
          %s6580 = smul.addr %s6576, 7
          %s6581 = smul.addr %s6580, 128
          %s6582 = scalar_lea.hbm %s9, %s6581
          %s6583 = sshll.u32 %s6572, 4
          %s6584 = int_to_ptr.vmem [resolvable:$true] %s6583
          %6589 = dma.vmem_to_hbm [thread:$0]  %s6584, 1792, %s6582, %s6569, 896, 896, 56
        $region60: #{tpu_custom_call.1} parent=55 // pred_fallthru
          _
      $region56: #{tpu_custom_call.1} parent=5 // pred_fallthru
        _
      %p6590 = scmp.le.s32.totalorder 2, %s18
      // Predicated region
      $region61: #{tpu_custom_call.1} parent=5 // pred_check
        %p6591 = pneg %p6590
      $region62: #{tpu_custom_call.1} parent=5 // pred_check_branch
        %6593 = sbr.rel (%p6591) target = $region64
      $region63: #{tpu_custom_call.1} parent=5 // pred_region
        %s6594 = ssub.s32 %s18, 2
        // Predicated region
        $region65: #{tpu_custom_call.1} parent=63 // pred_check
          %p6595 = pneg %p241
        $region66: #{tpu_custom_call.1} parent=63 // pred_check_branch
          %6597 = sbr.rel (%p6595) target = $region68
        $region67: #{tpu_custom_call.1} parent=63 // pred_region
          %s6598 = sand.u32 %s226, 1
          %s6599 = scalar_lea.sflag [#allocation3], %s6598
          %s6600 = sand.u32 %s226, 1
          %s6601 = smul.addr %s6600, 112
          %s6602 = scalar_lea.vmem [#allocation2], %s6601
          %6603 = dma.done %s6599, 1792
        $region68: #{tpu_custom_call.1} parent=63 // pred_fallthru
          _
      $region64: #{tpu_custom_call.1} parent=5 // pred_fallthru
        _
    $region6: #{tpu_custom_call.1} parent=1 // loop_footer
      %s22 = sadd.s32 1, %s18
    $region7: #{tpu_custom_call.1} parent=1 // loop_footer_branch
      %17 = sbr.rel target = $region3
    $region8: #{tpu_custom_call.1} parent=1 // loop_exit
      _
    %6604 = vsyncpa [#allocation3], 1
    %s6605 = scalar_lea.sflag [#allocation3], 1
    %6606 = vsyncpa %s6605, 1

</llo_original>
